<compile_context>
chip_gen: v6e
topology: v6e:2x2x1
jax: 0.10.0
libtpu: 0.0.40
codegen_flags: <defaults>
</compile_context>

<pallas_src>
from functools import partial

import jax
import jax.numpy as jnp
from jax import lax
from jax.experimental import pallas as pl
from jax.experimental.pallas import tpu as pltpu

K = 11    # depthwise kernel size
PAD = 5   # "same" padding


def _pixel_attention_kernel(x_ref, xt_ref, xb_ref, w_ref, b_ref, o_ref, xp_ref):
    """One grid step: an H-strip of one channel plane of one image (W on lanes).

    x_ref : (1, 1, TH, W)       strip of x
    xt_ref: (1, 1, HB, W)       8-row block just above the strip (halo source)
    xb_ref: (1, 1, HB, W)       8-row block just below the strip (halo source)
    w_ref : (1, K, K)           this channel's depthwise filter
    b_ref : (1, 1, 1)           this channel's bias
    o_ref : (1, 1, TH, W)       output strip
    xp_ref: (TH+2P, W+2P) f32   VMEM scratch holding the zero-padded strip
    """
    _, _, TH, W = x_ref.shape
    HB = xt_ref.shape[2]
    Hp = TH + 2 * PAD
    h = pl.program_id(2)
    nh = pl.num_programs(2)
    f32 = jnp.float32

    # ---- Stage the zero-padded strip in VMEM.  Only the PAD-wide borders are zeroed
    # (every step: the scratch is per-TensorCore under megacore sharding, so no
    # "first step only" trick); the interior is overwritten with real data.
    xp_ref[:, pl.ds(0, PAD)] = jnp.zeros((Hp, PAD), f32)
    xp_ref[:, pl.ds(PAD + W, PAD)] = jnp.zeros((Hp, PAD), f32)

    # Top halo: previous strip's last PAD rows, or zeros at the image border.
    @pl.when(h == 0)
    def _():
        xp_ref[pl.ds(0, PAD), pl.ds(PAD, W)] = jnp.zeros((PAD, W), f32)

    @pl.when(h > 0)
    def _():
        xp_ref[pl.ds(0, PAD), pl.ds(PAD, W)] = (
            xt_ref[0, 0, pl.ds(HB - PAD, PAD), :].astype(f32))

    # Bottom halo: next strip's first PAD rows, or zeros at the image border.
    @pl.when(h == nh - 1)
    def _():
        xp_ref[pl.ds(PAD + TH, PAD), pl.ds(PAD, W)] = jnp.zeros((PAD, W), f32)

    @pl.when(h < nh - 1)
    def _():
        xp_ref[pl.ds(PAD + TH, PAD), pl.ds(PAD, W)] = (
            xb_ref[0, 0, pl.ds(0, PAD), :].astype(f32))

    # Strip interior.  (Kept as a vreg copy so x stays on the auto-pipelined BlockSpec
    # path; a manual pl.ANY + make_async_copy variant would also skip this copy.)
    xp_ref[pl.ds(PAD, TH), pl.ds(PAD, W)] = x_ref[0, 0].astype(f32)

    # ---- 121-tap depthwise conv, register-blocked over RB-row slabs so the
    # accumulator stays in vregs and is stored exactly once per slab.
    RB = 8 if TH % 8 == 0 else TH
    num_rb = TH // RB
    bv = b_ref[0].astype(f32)                       # (1, 1), broadcast over the slab

    @pl.loop(0, num_rb)
    def _(rb):
        r0 = pl.multiple_of(rb * RB, RB)
        acc = jnp.zeros((RB, W), f32)
        for dy in range(K):                         # static taps: the dx lane shift
            for dx in range(K):                     # goes to the XLU, MACs to the VPU
                wv = w_ref[0, pl.ds(dy, 1), pl.ds(dx, 1)].astype(f32)   # (1, 1)
                acc = acc + wv * xp_ref[pl.ds(r0 + dy, RB), pl.ds(dx, W)]
        # Gate epilogue: sigmoid(conv + bias) * x.  x is re-read per slab (lane-aligned
        # read of x_ref) so no full-strip f32 copy of x is live across the tap loop.
        xin = x_ref[0, 0, pl.ds(r0, RB), :].astype(f32)
        z = acc + bv
        gate = 1.0 / (1.0 + jnp.exp(-z))            # exp on the EUP; exact sigmoid
        o_ref[0, 0, pl.ds(r0, RB), :] = (gate * xin).astype(o_ref.dtype)


def _pick_strip_rows(H, W):
    """Pick an H-strip size: ~2 MiB of f32 rows per strip, multiple of 8, dividing H."""
    target = max(8, min(H, (2 * 1024 * 1024) // (4 * max(W, 1))))
    if H <= target:
        return H
    target = max(8, (target // 8) * 8)
    for th in range(target, 7, -8):
        if H % th == 0:
            return th
    # TODO(synk): odd H with no multiple-of-8 divisor -> fall back to one full strip.
    return H


@partial(jax.jit, static_argnames=("strip_rows",))
def pixel_attention(x, weight, bias, *, strip_rows=None):
    """PixelAttention core: sigmoid(depthwise_conv11x11(x) + b) * x.

    x: (N, C, H, W) in native PyTorch NCHW (no layout transposes needed);
    weight: (C, K, K) (PyTorch Conv2d(C, C, 11, groups=C) weight squeezed);
    bias: (C,).
    """
    N, C, H, W = x.shape
    TH = _pick_strip_rows(H, W) if strip_rows is None else strip_rows
    assert TH == H or (H % TH == 0 and TH % 8 == 0), \
        "strip_rows must divide H and be a multiple of 8"
    nH = H // TH
    halo_h = 8 if H >= 8 else H                   # 8-row halo source blocks
    th_blocks = max(TH // halo_h, 1)
    max_halo_blk = H // halo_h - 1

    w3 = weight.reshape(C, K, K)
    b3 = bias.reshape(C, 1, 1)
    itemsize = jnp.dtype(x.dtype).itemsize

    def x_map(n, c, h):
        return (n, c, h, 0)

    def top_map(n, c, h):
        return (n, c, jnp.maximum(h * th_blocks - 1, 0), 0)

    def bot_map(n, c, h):
        return (n, c, jnp.minimum((h + 1) * th_blocks, max_halo_blk), 0)

    def w_map(n, c, h):
        return (c, 0, 0)

    return pl.pallas_call(
        _pixel_attention_kernel,
        out_shape=jax.ShapeDtypeStruct((N, C, H, W), x.dtype),
        grid_spec=pltpu.PrefetchScalarGridSpec(
            num_scalar_prefetch=0,
            grid=(N, C, nH),
            in_specs=[
                pl.BlockSpec((1, 1, TH, W), x_map),        # main strip
                pl.BlockSpec((1, 1, halo_h, W), top_map),  # halo rows above
                pl.BlockSpec((1, 1, halo_h, W), bot_map),  # halo rows below
                pl.BlockSpec((1, K, K), w_map),            # per-channel filter
                pl.BlockSpec((1, 1, 1), w_map),            # per-channel bias
            ],
            out_specs=pl.BlockSpec((1, 1, TH, W), x_map),
            scratch_shapes=[pltpu.VMEM((TH + 2 * PAD, W + 2 * PAD), jnp.float32)],
        ),
        compiler_params=pltpu.CompilerParams(
            dimension_semantics=("parallel", "parallel", "parallel"),
            vmem_limit_bytes=32 * 1024 * 1024,
        ),
        cost_estimate=pl.CostEstimate(
            flops=2 * K * K * N * C * H * W,
            transcendentals=N * C * H * W,
            bytes_accessed=(2 * N * C * H * W + 2 * N * C * nH * halo_h * W) * itemsize,
        ),
    )(x, x, x, w3, b3)


def _reference(x, weight, bias):
    """Pure-JAX depthwise conv reference (groups = C), matching PyTorch semantics."""
    C = x.shape[1]
    rhs = weight.reshape(C, 1, K, K)
    z = lax.conv_general_dilated(
        x.astype(jnp.float32), rhs.astype(jnp.float32),
        window_strides=(1, 1), padding=((PAD, PAD), (PAD, PAD)),
        dimension_numbers=("NCHW", "OIHW", "NCHW"),
        feature_group_count=C)
    z = z + bias.reshape(1, C, 1, 1)
    return (jax.nn.sigmoid(z) * x.astype(jnp.float32)).astype(x.dtype)


if __name__ == "__main__":
    key = jax.random.PRNGKey(0)
    kx, kw, kb, kx2, kw2, kb2 = jax.random.split(key, 6)

    # Small shapes implied by the module: batch=2, channels=4, spatial=16.
    N, C, H, W = 2, 4, 16, 16
    x = jax.random.normal(kx, (N, C, H, W), dtype=jnp.float32)
    weight = jax.random.normal(kw, (C, K, K), dtype=jnp.float32) * (1.0 / K)
    bias = jax.random.normal(kb, (C,), dtype=jnp.float32) * 0.1

    out = jax.block_until_ready(pixel_attention(x, weight, bias))
    ref = jax.block_until_ready(_reference(x, weight, bias))
    assert out.shape == (N, C, H, W)
    assert jnp.allclose(out, ref, atol=2e-4, rtol=2e-4), "mismatch vs reference (single strip)"

    # Also exercise the multi-strip halo path (4 strips of 16 rows).
    N2, C2, H2, W2 = 1, 3, 64, 128
    x2 = jax.random.normal(kx2, (N2, C2, H2, W2), dtype=jnp.float32)
    w2 = jax.random.normal(kw2, (C2, K, K), dtype=jnp.float32) * (1.0 / K)
    b2 = jax.random.normal(kb2, (C2,), dtype=jnp.float32) * 0.1
    out2 = jax.block_until_ready(pixel_attention(x2, w2, b2, strip_rows=16))
    ref2 = jax.block_until_ready(_reference(x2, w2, b2))
    assert jnp.allclose(out2, ref2, atol=2e-4, rtol=2e-4), "mismatch vs reference (halo strips)"

    print("KERNEL_OK")
</pallas_src>

<mosaic_0001>
module attributes {stable_mosaic.version = 11 : i64} {
  func.func @_pixel_attention_kernel(%arg0: i32, %arg1: i32, %arg2: i32, %arg3: memref<1x1x16x16xf32, #tpu.memory_space<vmem>>, %arg4: memref<1x1x8x16xf32, #tpu.memory_space<vmem>>, %arg5: memref<1x1x8x16xf32, #tpu.memory_space<vmem>>, %arg6: memref<1x11x11xf32, #tpu.memory_space<vmem>>, %arg7: memref<1x1x1xf32, #tpu.memory_space<vmem>>, %arg8: memref<1x1x16x16xf32, #tpu.memory_space<vmem>>, %arg9: memref<26x26xf32, #tpu.memory_space<vmem>>) attributes {dimension_semantics = [#tpu.dimension_semantics<parallel>, #tpu.dimension_semantics<parallel>, #tpu.dimension_semantics<parallel>], iteration_bounds = array<i64: 2, 4, 1>, scalar_prefetch = 0 : i64, scratch_operands = 1 : i64, tpu.core_type = #tpu.core_type<tc>, window_params = [{transform_indices = @transform_0, window_bounds = array<i64: 1, 1, 16, 16>}, {transform_indices = @transform_1, window_bounds = array<i64: 1, 1, 8, 16>}, {transform_indices = @transform_2, window_bounds = array<i64: 1, 1, 8, 16>}, {transform_indices = @transform_3, window_bounds = array<i64: 1, 11, 11>}, {transform_indices = @transform_4, window_bounds = array<i64: 1, 1, 1>}, {transform_indices = @transform_5, window_bounds = array<i64: 1, 1, 16, 16>}]} {
    %cst = arith.constant 0.000000e+00 : f32
    %0 = vector.broadcast %cst : f32 to vector<26x5xf32>
    %c0 = arith.constant 0 : index
    %c0_0 = arith.constant 0 : index
    %1 = vector.load %arg9[%c0, %c0_0] : memref<26x26xf32, #tpu.memory_space<vmem>>, vector<26x5xf32>
    tpu.vector_store %arg9[%c0, %c0_0], %0 {strides = array<i32>} : memref<26x26xf32, #tpu.memory_space<vmem>>, vector<26x5xf32>,
    %cst_1 = arith.constant 0.000000e+00 : f32
    %2 = vector.broadcast %cst_1 : f32 to vector<26x5xf32>
    %c0_2 = arith.constant 0 : index
    %c21 = arith.constant 21 : index
    %3 = vector.load %arg9[%c0_2, %c21] : memref<26x26xf32, #tpu.memory_space<vmem>>, vector<26x5xf32>
    tpu.vector_store %arg9[%c0_2, %c21], %2 {strides = array<i32>} : memref<26x26xf32, #tpu.memory_space<vmem>>, vector<26x5xf32>,
    %c0_i32 = arith.constant 0 : i32
    %4 = arith.cmpi eq, %arg2, %c0_i32 : i32
    %5 = arith.extui %4 : i1 to i32
    %c0_i32_3 = arith.constant 0 : i32
    %6 = arith.cmpi ne, %5, %c0_i32_3 : i32
    scf.if %6 {
      %cst_20 = arith.constant 0.000000e+00 : f32
      %22 = vector.broadcast %cst_20 : f32 to vector<5x16xf32>
      %c0_21 = arith.constant 0 : index
      %c5_22 = arith.constant 5 : index
      %23 = vector.load %arg9[%c0_21, %c5_22] : memref<26x26xf32, #tpu.memory_space<vmem>>, vector<5x16xf32>
      tpu.vector_store %arg9[%c0_21, %c5_22], %22 {strides = array<i32>} : memref<26x26xf32, #tpu.memory_space<vmem>>, vector<5x16xf32>,
    } else {
    }
    %c0_i32_4 = arith.constant 0 : i32
    %7 = arith.cmpi sgt, %arg2, %c0_i32_4 : i32
    %8 = arith.extui %7 : i1 to i32
    %c0_i32_5 = arith.constant 0 : i32
    %9 = arith.cmpi ne, %8, %c0_i32_5 : i32
    scf.if %9 {
      %c0_20 = arith.constant 0 : index
      %c0_21 = arith.constant 0 : index
      %c3 = arith.constant 3 : index
      %c0_22 = arith.constant 0 : index
      %22 = vector.load %arg4[%c0_20, %c0_21, %c3, %c0_22] : memref<1x1x8x16xf32, #tpu.memory_space<vmem>>, vector<1x1x5x16xf32>
      %23 = vector.shape_cast %22 : vector<1x1x5x16xf32> to vector<5x16xf32>
      %c0_23 = arith.constant 0 : index
      %c5_24 = arith.constant 5 : index
      %24 = vector.load %arg9[%c0_23, %c5_24] : memref<26x26xf32, #tpu.memory_space<vmem>>, vector<5x16xf32>
      tpu.vector_store %arg9[%c0_23, %c5_24], %23 {strides = array<i32>} : memref<26x26xf32, #tpu.memory_space<vmem>>, vector<5x16xf32>,
    } else {
    }
    %c0_i32_6 = arith.constant 0 : i32
    %10 = arith.cmpi eq, %arg2, %c0_i32_6 : i32
    %11 = arith.extui %10 : i1 to i32
    %c0_i32_7 = arith.constant 0 : i32
    %12 = arith.cmpi ne, %11, %c0_i32_7 : i32
    scf.if %12 {
      %cst_20 = arith.constant 0.000000e+00 : f32
      %22 = vector.broadcast %cst_20 : f32 to vector<5x16xf32>
      %c21_21 = arith.constant 21 : index
      %c5_22 = arith.constant 5 : index
      %23 = vector.load %arg9[%c21_21, %c5_22] : memref<26x26xf32, #tpu.memory_space<vmem>>, vector<5x16xf32>
      tpu.vector_store %arg9[%c21_21, %c5_22], %22 {strides = array<i32>} : memref<26x26xf32, #tpu.memory_space<vmem>>, vector<5x16xf32>,
    } else {
    }
    %c0_i32_8 = arith.constant 0 : i32
    %13 = arith.cmpi slt, %arg2, %c0_i32_8 : i32
    %14 = arith.extui %13 : i1 to i32
    %c0_i32_9 = arith.constant 0 : i32
    %15 = arith.cmpi ne, %14, %c0_i32_9 : i32
    scf.if %15 {
      %c0_20 = arith.constant 0 : index
      %c0_21 = arith.constant 0 : index
      %c0_22 = arith.constant 0 : index
      %c0_23 = arith.constant 0 : index
      %22 = vector.load %arg5[%c0_20, %c0_21, %c0_22, %c0_23] : memref<1x1x8x16xf32, #tpu.memory_space<vmem>>, vector<1x1x5x16xf32>
      %23 = vector.shape_cast %22 : vector<1x1x5x16xf32> to vector<5x16xf32>
      %c21_24 = arith.constant 21 : index
      %c5_25 = arith.constant 5 : index
      %24 = vector.load %arg9[%c21_24, %c5_25] : memref<26x26xf32, #tpu.memory_space<vmem>>, vector<5x16xf32>
      tpu.vector_store %arg9[%c21_24, %c5_25], %23 {strides = array<i32>} : memref<26x26xf32, #tpu.memory_space<vmem>>, vector<5x16xf32>,
    } else {
    }
    %c0_10 = arith.constant 0 : index
    %c0_11 = arith.constant 0 : index
    %c0_12 = arith.constant 0 : index
    %c0_13 = arith.constant 0 : index
    %16 = vector.load %arg3[%c0_10, %c0_11, %c0_12, %c0_13] : memref<1x1x16x16xf32, #tpu.memory_space<vmem>>, vector<1x1x16x16xf32>
    %17 = vector.shape_cast %16 : vector<1x1x16x16xf32> to vector<16x16xf32>
    %c5 = arith.constant 5 : index
    %c5_14 = arith.constant 5 : index
    %18 = vector.load %arg9[%c5, %c5_14] : memref<26x26xf32, #tpu.memory_space<vmem>>, vector<16x16xf32>
    tpu.vector_store %arg9[%c5, %c5_14], %17 {strides = array<i32>} : memref<26x26xf32, #tpu.memory_space<vmem>>, vector<16x16xf32>,
    %c0_15 = arith.constant 0 : index
    %c0_16 = arith.constant 0 : index
    %c0_17 = arith.constant 0 : index
    %19 = vector.load %arg7[%c0_15, %c0_16, %c0_17] : memref<1x1x1xf32, #tpu.memory_space<vmem>>, vector<1x1x1xf32>
    %20 = vector.shape_cast %19 : vector<1x1x1xf32> to vector<1x1xf32>
    %c0_i32_18 = arith.constant 0 : i32
    %c2_i32 = arith.constant 2 : i32
    %21 = arith.addi %c0_i32_18, %c2_i32 : i32
    %c1_i32 = arith.constant 1 : i32
    scf.for %arg10 = %c0_i32_18 to %21 step %c1_i32  : i32 {
      %c1_i32_20 = arith.constant 1 : i32
      %22 = arith.muli %arg10, %c1_i32_20 : i32
      %c0_i32_21 = arith.constant 0 : i32
      %23 = arith.addi %c0_i32_21, %22 : i32
      %c8_i32 = arith.constant 8 : i32
      %24 = arith.muli %23, %c8_i32 : i32
      %25 = tpu.assume_multiple %24, 8 : i32
      %cst_22 = arith.constant 0.000000e+00 : f32
      %26 = vector.broadcast %cst_22 : f32 to vector<8x16xf32>
      %c0_23 = arith.constant 0 : index
      %c0_24 = arith.constant 0 : index
      %c0_25 = arith.constant 0 : index
      %27 = vector.load %arg6[%c0_23, %c0_24, %c0_25] : memref<1x11x11xf32, #tpu.memory_space<vmem>>, vector<1x1x1xf32>
      %28 = vector.shape_cast %27 : vector<1x1x1xf32> to vector<1x1xf32>
      %c0_i32_26 = arith.constant 0 : i32
      %29 = arith.addi %25, %c0_i32_26 : i32
      %30 = arith.index_cast %29 : i32 to index
      %c0_27 = arith.constant 0 : index
      %31 = vector.load %arg9[%30, %c0_27] : memref<26x26xf32, #tpu.memory_space<vmem>>, vector<8x16xf32>
      %32 = vector.broadcast %28 : vector<1x1xf32> to vector<8x16xf32>
      %33 = arith.mulf %32, %31 : vector<8x16xf32>
      %34 = arith.addf %26, %33 : vector<8x16xf32>
      %c0_28 = arith.constant 0 : index
      %c0_29 = arith.constant 0 : index
      %c1 = arith.constant 1 : index
      %35 = vector.load %arg6[%c0_28, %c0_29, %c1] : memref<1x11x11xf32, #tpu.memory_space<vmem>>, vector<1x1x1xf32>
      %36 = vector.shape_cast %35 : vector<1x1x1xf32> to vector<1x1xf32>
      %c0_i32_30 = arith.constant 0 : i32
      %37 = arith.addi %25, %c0_i32_30 : i32
      %38 = arith.index_cast %37 : i32 to index
      %c1_31 = arith.constant 1 : index
      %39 = vector.load %arg9[%38, %c1_31] : memref<26x26xf32, #tpu.memory_space<vmem>>, vector<8x16xf32>
      %40 = vector.broadcast %36 : vector<1x1xf32> to vector<8x16xf32>
      %41 = arith.mulf %40, %39 : vector<8x16xf32>
      %42 = arith.addf %34, %41 : vector<8x16xf32>
      %c0_32 = arith.constant 0 : index
      %c0_33 = arith.constant 0 : index
      %c2 = arith.constant 2 : index
      %43 = vector.load %arg6[%c0_32, %c0_33, %c2] : memref<1x11x11xf32, #tpu.memory_space<vmem>>, vector<1x1x1xf32>
      %44 = vector.shape_cast %43 : vector<1x1x1xf32> to vector<1x1xf32>
      %c0_i32_34 = arith.constant 0 : i32
      %45 = arith.addi %25, %c0_i32_34 : i32
      %46 = arith.index_cast %45 : i32 to index
      %c2_35 = arith.constant 2 : index
      %47 = vector.load %arg9[%46, %c2_35] : memref<26x26xf32, #tpu.memory_space<vmem>>, vector<8x16xf32>
      %48 = vector.broadcast %44 : vector<1x1xf32> to vector<8x16xf32>
      %49 = arith.mulf %48, %47 : vector<8x16xf32>
      %50 = arith.addf %42, %49 : vector<8x16xf32>
      %c0_36 = arith.constant 0 : index
      %c0_37 = arith.constant 0 : index
      %c3 = arith.constant 3 : index
      %51 = vector.load %arg6[%c0_36, %c0_37, %c3] : memref<1x11x11xf32, #tpu.memory_space<vmem>>, vector<1x1x1xf32>
      %52 = vector.shape_cast %51 : vector<1x1x1xf32> to vector<1x1xf32>
      %c0_i32_38 = arith.constant 0 : i32
      %53 = arith.addi %25, %c0_i32_38 : i32
      %54 = arith.index_cast %53 : i32 to index
      %c3_39 = arith.constant 3 : index
      %55 = vector.load %arg9[%54, %c3_39] : memref<26x26xf32, #tpu.memory_space<vmem>>, vector<8x16xf32>
      %56 = vector.broadcast %52 : vector<1x1xf32> to vector<8x16xf32>
      %57 = arith.mulf %56, %55 : vector<8x16xf32>
      %58 = arith.addf %50, %57 : vector<8x16xf32>
      %c0_40 = arith.constant 0 : index
      %c0_41 = arith.constant 0 : index
      %c4 = arith.constant 4 : index
      %59 = vector.load %arg6[%c0_40, %c0_41, %c4] : memref<1x11x11xf32, #tpu.memory_space<vmem>>, vector<1x1x1xf32>
      %60 = vector.shape_cast %59 : vector<1x1x1xf32> to vector<1x1xf32>
      %c0_i32_42 = arith.constant 0 : i32
      %61 = arith.addi %25, %c0_i32_42 : i32
      %62 = arith.index_cast %61 : i32 to index
      %c4_43 = arith.constant 4 : index
      %63 = vector.load %arg9[%62, %c4_43] : memref<26x26xf32, #tpu.memory_space<vmem>>, vector<8x16xf32>
      %64 = vector.broadcast %60 : vector<1x1xf32> to vector<8x16xf32>
      %65 = arith.mulf %64, %63 : vector<8x16xf32>
      %66 = arith.addf %58, %65 : vector<8x16xf32>
      %c0_44 = arith.constant 0 : index
      %c0_45 = arith.constant 0 : index
      %c5_46 = arith.constant 5 : index
      %67 = vector.load %arg6[%c0_44, %c0_45, %c5_46] : memref<1x11x11xf32, #tpu.memory_space<vmem>>, vector<1x1x1xf32>
      %68 = vector.shape_cast %67 : vector<1x1x1xf32> to vector<1x1xf32>
      %c0_i32_47 = arith.constant 0 : i32
      %69 = arith.addi %25, %c0_i32_47 : i32
      %70 = arith.index_cast %69 : i32 to index
      %c5_48 = arith.constant 5 : index
      %71 = vector.load %arg9[%70, %c5_48] : memref<26x26xf32, #tpu.memory_space<vmem>>, vector<8x16xf32>
      %72 = vector.broadcast %68 : vector<1x1xf32> to vector<8x16xf32>
      %73 = arith.mulf %72, %71 : vector<8x16xf32>
      %74 = arith.addf %66, %73 : vector<8x16xf32>
      %c0_49 = arith.constant 0 : index
      %c0_50 = arith.constant 0 : index
      %c6 = arith.constant 6 : index
      %75 = vector.load %arg6[%c0_49, %c0_50, %c6] : memref<1x11x11xf32, #tpu.memory_space<vmem>>, vector<1x1x1xf32>
      %76 = vector.shape_cast %75 : vector<1x1x1xf32> to vector<1x1xf32>
      %c0_i32_51 = arith.constant 0 : i32
      %77 = arith.addi %25, %c0_i32_51 : i32
      %78 = arith.index_cast %77 : i32 to index
      %c6_52 = arith.constant 6 : index
      %79 = vector.load %arg9[%78, %c6_52] : memref<26x26xf32, #tpu.memory_space<vmem>>, vector<8x16xf32>
      %80 = vector.broadcast %76 : vector<1x1xf32> to vector<8x16xf32>
      %81 = arith.mulf %80, %79 : vector<8x16xf32>
      %82 = arith.addf %74, %81 : vector<8x16xf32>
      %c0_53 = arith.constant 0 : index
      %c0_54 = arith.constant 0 : index
      %c7 = arith.constant 7 : index
      %83 = vector.load %arg6[%c0_53, %c0_54, %c7] : memref<1x11x11xf32, #tpu.memory_space<vmem>>, vector<1x1x1xf32>
      %84 = vector.shape_cast %83 : vector<1x1x1xf32> to vector<1x1xf32>
      %c0_i32_55 = arith.constant 0 : i32
      %85 = arith.addi %25, %c0_i32_55 : i32
      %86 = arith.index_cast %85 : i32 to index
      %c7_56 = arith.constant 7 : index
      %87 = vector.load %arg9[%86, %c7_56] : memref<26x26xf32, #tpu.memory_space<vmem>>, vector<8x16xf32>
      %88 = vector.broadcast %84 : vector<1x1xf32> to vector<8x16xf32>
      %89 = arith.mulf %88, %87 : vector<8x16xf32>
      %90 = arith.addf %82, %89 : vector<8x16xf32>
      %c0_57 = arith.constant 0 : index
      %c0_58 = arith.constant 0 : index
      %c8 = arith.constant 8 : index
      %91 = vector.load %arg6[%c0_57, %c0_58, %c8] : memref<1x11x11xf32, #tpu.memory_space<vmem>>, vector<1x1x1xf32>
      %92 = vector.shape_cast %91 : vector<1x1x1xf32> to vector<1x1xf32>
      %c0_i32_59 = arith.constant 0 : i32
      %93 = arith.addi %25, %c0_i32_59 : i32
      %94 = arith.index_cast %93 : i32 to index
      %c8_60 = arith.constant 8 : index
      %95 = vector.load %arg9[%94, %c8_60] : memref<26x26xf32, #tpu.memory_space<vmem>>, vector<8x16xf32>
      %96 = vector.broadcast %92 : vector<1x1xf32> to vector<8x16xf32>
      %97 = arith.mulf %96, %95 : vector<8x16xf32>
      %98 = arith.addf %90, %97 : vector<8x16xf32>
      %c0_61 = arith.constant 0 : index
      %c0_62 = arith.constant 0 : index
      %c9 = arith.constant 9 : index
      %99 = vector.load %arg6[%c0_61, %c0_62, %c9] : memref<1x11x11xf32, #tpu.memory_space<vmem>>, vector<1x1x1xf32>
      %100 = vector.shape_cast %99 : vector<1x1x1xf32> to vector<1x1xf32>
      %c0_i32_63 = arith.constant 0 : i32
      %101 = arith.addi %25, %c0_i32_63 : i32
      %102 = arith.index_cast %101 : i32 to index
      %c9_64 = arith.constant 9 : index
      %103 = vector.load %arg9[%102, %c9_64] : memref<26x26xf32, #tpu.memory_space<vmem>>, vector<8x16xf32>
      %104 = vector.broadcast %100 : vector<1x1xf32> to vector<8x16xf32>
      %105 = arith.mulf %104, %103 : vector<8x16xf32>
      %106 = arith.addf %98, %105 : vector<8x16xf32>
      %c0_65 = arith.constant 0 : index
      %c0_66 = arith.constant 0 : index
      %c10 = arith.constant 10 : index
      %107 = vector.load %arg6[%c0_65, %c0_66, %c10] : memref<1x11x11xf32, #tpu.memory_space<vmem>>, vector<1x1x1xf32>
      %108 = vector.shape_cast %107 : vector<1x1x1xf32> to vector<1x1xf32>
      %c0_i32_67 = arith.constant 0 : i32
      %109 = arith.addi %25, %c0_i32_67 : i32
      %110 = arith.index_cast %109 : i32 to index
      %c10_68 = arith.constant 10 : index
      %111 = vector.load %arg9[%110, %c10_68] : memref<26x26xf32, #tpu.memory_space<vmem>>, vector<8x16xf32>
      %112 = vector.broadcast %108 : vector<1x1xf32> to vector<8x16xf32>
      %113 = arith.mulf %112, %111 : vector<8x16xf32>
      %114 = arith.addf %106, %113 : vector<8x16xf32>
      %c0_69 = arith.constant 0 : index
      %c1_70 = arith.constant 1 : index
      %c0_71 = arith.constant 0 : index
      %115 = vector.load %arg6[%c0_69, %c1_70, %c0_71] : memref<1x11x11xf32, #tpu.memory_space<vmem>>, vector<1x1x1xf32>
      %116 = vector.shape_cast %115 : vector<1x1x1xf32> to vector<1x1xf32>
      %c1_i32_72 = arith.constant 1 : i32
      %117 = arith.addi %25, %c1_i32_72 : i32
      %118 = arith.index_cast %117 : i32 to index
      %c0_73 = arith.constant 0 : index
      %119 = vector.load %arg9[%118, %c0_73] : memref<26x26xf32, #tpu.memory_space<vmem>>, vector<8x16xf32>
      %120 = vector.broadcast %116 : vector<1x1xf32> to vector<8x16xf32>
      %121 = arith.mulf %120, %119 : vector<8x16xf32>
      %122 = arith.addf %114, %121 : vector<8x16xf32>
      %c0_74 = arith.constant 0 : index
      %c1_75 = arith.constant 1 : index
      %c1_76 = arith.constant 1 : index
      %123 = vector.load %arg6[%c0_74, %c1_75, %c1_76] : memref<1x11x11xf32, #tpu.memory_space<vmem>>, vector<1x1x1xf32>
      %124 = vector.shape_cast %123 : vector<1x1x1xf32> to vector<1x1xf32>
      %c1_i32_77 = arith.constant 1 : i32
      %125 = arith.addi %25, %c1_i32_77 : i32
      %126 = arith.index_cast %125 : i32 to index
      %c1_78 = arith.constant 1 : index
      %127 = vector.load %arg9[%126, %c1_78] : memref<26x26xf32, #tpu.memory_space<vmem>>, vector<8x16xf32>
      %128 = vector.broadcast %124 : vector<1x1xf32> to vector<8x16xf32>
      %129 = arith.mulf %128, %127 : vector<8x16xf32>
      %130 = arith.addf %122, %129 : vector<8x16xf32>
      %c0_79 = arith.constant 0 : index
      %c1_80 = arith.constant 1 : index
      %c2_81 = arith.constant 2 : index
      %131 = vector.load %arg6[%c0_79, %c1_80, %c2_81] : memref<1x11x11xf32, #tpu.memory_space<vmem>>, vector<1x1x1xf32>
      %132 = vector.shape_cast %131 : vector<1x1x1xf32> to vector<1x1xf32>
      %c1_i32_82 = arith.constant 1 : i32
      %133 = arith.addi %25, %c1_i32_82 : i32
      %134 = arith.index_cast %133 : i32 to index
      %c2_83 = arith.constant 2 : index
      %135 = vector.load %arg9[%134, %c2_83] : memref<26x26xf32, #tpu.memory_space<vmem>>, vector<8x16xf32>
      %136 = vector.broadcast %132 : vector<1x1xf32> to vector<8x16xf32>
      %137 = arith.mulf %136, %135 : vector<8x16xf32>
      %138 = arith.addf %130, %137 : vector<8x16xf32>
      %c0_84 = arith.constant 0 : index
      %c1_85 = arith.constant 1 : index
      %c3_86 = arith.constant 3 : index
      %139 = vector.load %arg6[%c0_84, %c1_85, %c3_86] : memref<1x11x11xf32, #tpu.memory_space<vmem>>, vector<1x1x1xf32>
      %140 = vector.shape_cast %139 : vector<1x1x1xf32> to vector<1x1xf32>
      %c1_i32_87 = arith.constant 1 : i32
      %141 = arith.addi %25, %c1_i32_87 : i32
      %142 = arith.index_cast %141 : i32 to index
      %c3_88 = arith.constant 3 : index
      %143 = vector.load %arg9[%142, %c3_88] : memref<26x26xf32, #tpu.memory_space<vmem>>, vector<8x16xf32>
      %144 = vector.broadcast %140 : vector<1x1xf32> to vector<8x16xf32>
      %145 = arith.mulf %144, %143 : vector<8x16xf32>
      %146 = arith.addf %138, %145 : vector<8x16xf32>
      %c0_89 = arith.constant 0 : index
      %c1_90 = arith.constant 1 : index
      %c4_91 = arith.constant 4 : index
      %147 = vector.load %arg6[%c0_89, %c1_90, %c4_91] : memref<1x11x11xf32, #tpu.memory_space<vmem>>, vector<1x1x1xf32>
      %148 = vector.shape_cast %147 : vector<1x1x1xf32> to vector<1x1xf32>
      %c1_i32_92 = arith.constant 1 : i32
      %149 = arith.addi %25, %c1_i32_92 : i32
      %150 = arith.index_cast %149 : i32 to index
      %c4_93 = arith.constant 4 : index
      %151 = vector.load %arg9[%150, %c4_93] : memref<26x26xf32, #tpu.memory_space<vmem>>, vector<8x16xf32>
      %152 = vector.broadcast %148 : vector<1x1xf32> to vector<8x16xf32>
      %153 = arith.mulf %152, %151 : vector<8x16xf32>
      %154 = arith.addf %146, %153 : vector<8x16xf32>
      %c0_94 = arith.constant 0 : index
      %c1_95 = arith.constant 1 : index
      %c5_96 = arith.constant 5 : index
      %155 = vector.load %arg6[%c0_94, %c1_95, %c5_96] : memref<1x11x11xf32, #tpu.memory_space<vmem>>, vector<1x1x1xf32>
      %156 = vector.shape_cast %155 : vector<1x1x1xf32> to vector<1x1xf32>
      %c1_i32_97 = arith.constant 1 : i32
      %157 = arith.addi %25, %c1_i32_97 : i32
      %158 = arith.index_cast %157 : i32 to index
      %c5_98 = arith.constant 5 : index
      %159 = vector.load %arg9[%158, %c5_98] : memref<26x26xf32, #tpu.memory_space<vmem>>, vector<8x16xf32>
      %160 = vector.broadcast %156 : vector<1x1xf32> to vector<8x16xf32>
      %161 = arith.mulf %160, %159 : vector<8x16xf32>
      %162 = arith.addf %154, %161 : vector<8x16xf32>
      %c0_99 = arith.constant 0 : index
      %c1_100 = arith.constant 1 : index
      %c6_101 = arith.constant 6 : index
      %163 = vector.load %arg6[%c0_99, %c1_100, %c6_101] : memref<1x11x11xf32, #tpu.memory_space<vmem>>, vector<1x1x1xf32>
      %164 = vector.shape_cast %163 : vector<1x1x1xf32> to vector<1x1xf32>
      %c1_i32_102 = arith.constant 1 : i32
      %165 = arith.addi %25, %c1_i32_102 : i32
      %166 = arith.index_cast %165 : i32 to index
      %c6_103 = arith.constant 6 : index
      %167 = vector.load %arg9[%166, %c6_103] : memref<26x26xf32, #tpu.memory_space<vmem>>, vector<8x16xf32>
      %168 = vector.broadcast %164 : vector<1x1xf32> to vector<8x16xf32>
      %169 = arith.mulf %168, %167 : vector<8x16xf32>
      %170 = arith.addf %162, %169 : vector<8x16xf32>
      %c0_104 = arith.constant 0 : index
      %c1_105 = arith.constant 1 : index
      %c7_106 = arith.constant 7 : index
      %171 = vector.load %arg6[%c0_104, %c1_105, %c7_106] : memref<1x11x11xf32, #tpu.memory_space<vmem>>, vector<1x1x1xf32>
      %172 = vector.shape_cast %171 : vector<1x1x1xf32> to vector<1x1xf32>
      %c1_i32_107 = arith.constant 1 : i32
      %173 = arith.addi %25, %c1_i32_107 : i32
      %174 = arith.index_cast %173 : i32 to index
      %c7_108 = arith.constant 7 : index
      %175 = vector.load %arg9[%174, %c7_108] : memref<26x26xf32, #tpu.memory_space<vmem>>, vector<8x16xf32>
      %176 = vector.broadcast %172 : vector<1x1xf32> to vector<8x16xf32>
      %177 = arith.mulf %176, %175 : vector<8x16xf32>
      %178 = arith.addf %170, %177 : vector<8x16xf32>
      %c0_109 = arith.constant 0 : index
      %c1_110 = arith.constant 1 : index
      %c8_111 = arith.constant 8 : index
      %179 = vector.load %arg6[%c0_109, %c1_110, %c8_111] : memref<1x11x11xf32, #tpu.memory_space<vmem>>, vector<1x1x1xf32>
      %180 = vector.shape_cast %179 : vector<1x1x1xf32> to vector<1x1xf32>
      %c1_i32_112 = arith.constant 1 : i32
      %181 = arith.addi %25, %c1_i32_112 : i32
      %182 = arith.index_cast %181 : i32 to index
      %c8_113 = arith.constant 8 : index
      %183 = vector.load %arg9[%182, %c8_113] : memref<26x26xf32, #tpu.memory_space<vmem>>, vector<8x16xf32>
      %184 = vector.broadcast %180 : vector<1x1xf32> to vector<8x16xf32>
      %185 = arith.mulf %184, %183 : vector<8x16xf32>
      %186 = arith.addf %178, %185 : vector<8x16xf32>
      %c0_114 = arith.constant 0 : index
      %c1_115 = arith.constant 1 : index
      %c9_116 = arith.constant 9 : index
      %187 = vector.load %arg6[%c0_114, %c1_115, %c9_116] : memref<1x11x11xf32, #tpu.memory_space<vmem>>, vector<1x1x1xf32>
      %188 = vector.shape_cast %187 : vector<1x1x1xf32> to vector<1x1xf32>
      %c1_i32_117 = arith.constant 1 : i32
      %189 = arith.addi %25, %c1_i32_117 : i32
      %190 = arith.index_cast %189 : i32 to index
      %c9_118 = arith.constant 9 : index
      %191 = vector.load %arg9[%190, %c9_118] : memref<26x26xf32, #tpu.memory_space<vmem>>, vector<8x16xf32>
      %192 = vector.broadcast %188 : vector<1x1xf32> to vector<8x16xf32>
      %193 = arith.mulf %192, %191 : vector<8x16xf32>
      %194 = arith.addf %186, %193 : vector<8x16xf32>
      %c0_119 = arith.constant 0 : index
      %c1_120 = arith.constant 1 : index
      %c10_121 = arith.constant 10 : index
      %195 = vector.load %arg6[%c0_119, %c1_120, %c10_121] : memref<1x11x11xf32, #tpu.memory_space<vmem>>, vector<1x1x1xf32>
      %196 = vector.shape_cast %195 : vector<1x1x1xf32> to vector<1x1xf32>
      %c1_i32_122 = arith.constant 1 : i32
      %197 = arith.addi %25, %c1_i32_122 : i32
      %198 = arith.index_cast %197 : i32 to index
      %c10_123 = arith.constant 10 : index
      %199 = vector.load %arg9[%198, %c10_123] : memref<26x26xf32, #tpu.memory_space<vmem>>, vector<8x16xf32>
      %200 = vector.broadcast %196 : vector<1x1xf32> to vector<8x16xf32>
      %201 = arith.mulf %200, %199 : vector<8x16xf32>
      %202 = arith.addf %194, %201 : vector<8x16xf32>
      %c0_124 = arith.constant 0 : index
      %c2_125 = arith.constant 2 : index
      %c0_126 = arith.constant 0 : index
      %203 = vector.load %arg6[%c0_124, %c2_125, %c0_126] : memref<1x11x11xf32, #tpu.memory_space<vmem>>, vector<1x1x1xf32>
      %204 = vector.shape_cast %203 : vector<1x1x1xf32> to vector<1x1xf32>
      %c2_i32_127 = arith.constant 2 : i32
      %205 = arith.addi %25, %c2_i32_127 : i32
      %206 = arith.index_cast %205 : i32 to index
      %c0_128 = arith.constant 0 : index
      %207 = vector.load %arg9[%206, %c0_128] : memref<26x26xf32, #tpu.memory_space<vmem>>, vector<8x16xf32>
      %208 = vector.broadcast %204 : vector<1x1xf32> to vector<8x16xf32>
      %209 = arith.mulf %208, %207 : vector<8x16xf32>
      %210 = arith.addf %202, %209 : vector<8x16xf32>
      %c0_129 = arith.constant 0 : index
      %c2_130 = arith.constant 2 : index
      %c1_131 = arith.constant 1 : index
      %211 = vector.load %arg6[%c0_129, %c2_130, %c1_131] : memref<1x11x11xf32, #tpu.memory_space<vmem>>, vector<1x1x1xf32>
      %212 = vector.shape_cast %211 : vector<1x1x1xf32> to vector<1x1xf32>
      %c2_i32_132 = arith.constant 2 : i32
      %213 = arith.addi %25, %c2_i32_132 : i32
      %214 = arith.index_cast %213 : i32 to index
      %c1_133 = arith.constant 1 : index
      %215 = vector.load %arg9[%214, %c1_133] : memref<26x26xf32, #tpu.memory_space<vmem>>, vector<8x16xf32>
      %216 = vector.broadcast %212 : vector<1x1xf32> to vector<8x16xf32>
      %217 = arith.mulf %216, %215 : vector<8x16xf32>
      %218 = arith.addf %210, %217 : vector<8x16xf32>
      %c0_134 = arith.constant 0 : index
      %c2_135 = arith.constant 2 : index
      %c2_136 = arith.constant 2 : index
      %219 = vector.load %arg6[%c0_134, %c2_135, %c2_136] : memref<1x11x11xf32, #tpu.memory_space<vmem>>, vector<1x1x1xf32>
      %220 = vector.shape_cast %219 : vector<1x1x1xf32> to vector<1x1xf32>
      %c2_i32_137 = arith.constant 2 : i32
      %221 = arith.addi %25, %c2_i32_137 : i32
      %222 = arith.index_cast %221 : i32 to index
      %c2_138 = arith.constant 2 : index
      %223 = vector.load %arg9[%222, %c2_138] : memref<26x26xf32, #tpu.memory_space<vmem>>, vector<8x16xf32>
      %224 = vector.broadcast %220 : vector<1x1xf32> to vector<8x16xf32>
      %225 = arith.mulf %224, %223 : vector<8x16xf32>
      %226 = arith.addf %218, %225 : vector<8x16xf32>
      %c0_139 = arith.constant 0 : index
      %c2_140 = arith.constant 2 : index
      %c3_141 = arith.constant 3 : index
      %227 = vector.load %arg6[%c0_139, %c2_140, %c3_141] : memref<1x11x11xf32, #tpu.memory_space<vmem>>, vector<1x1x1xf32>
      %228 = vector.shape_cast %227 : vector<1x1x1xf32> to vector<1x1xf32>
      %c2_i32_142 = arith.constant 2 : i32
      %229 = arith.addi %25, %c2_i32_142 : i32
      %230 = arith.index_cast %229 : i32 to index
      %c3_143 = arith.constant 3 : index
      %231 = vector.load %arg9[%230, %c3_143] : memref<26x26xf32, #tpu.memory_space<vmem>>, vector<8x16xf32>
      %232 = vector.broadcast %228 : vector<1x1xf32> to vector<8x16xf32>
      %233 = arith.mulf %232, %231 : vector<8x16xf32>
      %234 = arith.addf %226, %233 : vector<8x16xf32>
      %c0_144 = arith.constant 0 : index
      %c2_145 = arith.constant 2 : index
      %c4_146 = arith.constant 4 : index
      %235 = vector.load %arg6[%c0_144, %c2_145, %c4_146] : memref<1x11x11xf32, #tpu.memory_space<vmem>>, vector<1x1x1xf32>
      %236 = vector.shape_cast %235 : vector<1x1x1xf32> to vector<1x1xf32>
      %c2_i32_147 = arith.constant 2 : i32
      %237 = arith.addi %25, %c2_i32_147 : i32
      %238 = arith.index_cast %237 : i32 to index
      %c4_148 = arith.constant 4 : index
      %239 = vector.load %arg9[%238, %c4_148] : memref<26x26xf32, #tpu.memory_space<vmem>>, vector<8x16xf32>
      %240 = vector.broadcast %236 : vector<1x1xf32> to vector<8x16xf32>
      %241 = arith.mulf %240, %239 : vector<8x16xf32>
      %242 = arith.addf %234, %241 : vector<8x16xf32>
      %c0_149 = arith.constant 0 : index
      %c2_150 = arith.constant 2 : index
      %c5_151 = arith.constant 5 : index
      %243 = vector.load %arg6[%c0_149, %c2_150, %c5_151] : memref<1x11x11xf32, #tpu.memory_space<vmem>>, vector<1x1x1xf32>
      %244 = vector.shape_cast %243 : vector<1x1x1xf32> to vector<1x1xf32>
      %c2_i32_152 = arith.constant 2 : i32
      %245 = arith.addi %25, %c2_i32_152 : i32
      %246 = arith.index_cast %245 : i32 to index
      %c5_153 = arith.constant 5 : index
      %247 = vector.load %arg9[%246, %c5_153] : memref<26x26xf32, #tpu.memory_space<vmem>>, vector<8x16xf32>
      %248 = vector.broadcast %244 : vector<1x1xf32> to vector<8x16xf32>
      %249 = arith.mulf %248, %247 : vector<8x16xf32>
      %250 = arith.addf %242, %249 : vector<8x16xf32>
      %c0_154 = arith.constant 0 : index
      %c2_155 = arith.constant 2 : index
      %c6_156 = arith.constant 6 : index
      %251 = vector.load %arg6[%c0_154, %c2_155, %c6_156] : memref<1x11x11xf32, #tpu.memory_space<vmem>>, vector<1x1x1xf32>
      %252 = vector.shape_cast %251 : vector<1x1x1xf32> to vector<1x1xf32>
      %c2_i32_157 = arith.constant 2 : i32
      %253 = arith.addi %25, %c2_i32_157 : i32
      %254 = arith.index_cast %253 : i32 to index
      %c6_158 = arith.constant 6 : index
      %255 = vector.load %arg9[%254, %c6_158] : memref<26x26xf32, #tpu.memory_space<vmem>>, vector<8x16xf32>
      %256 = vector.broadcast %252 : vector<1x1xf32> to vector<8x16xf32>
      %257 = arith.mulf %256, %255 : vector<8x16xf32>
      %258 = arith.addf %250, %257 : vector<8x16xf32>
      %c0_159 = arith.constant 0 : index
      %c2_160 = arith.constant 2 : index
      %c7_161 = arith.constant 7 : index
      %259 = vector.load %arg6[%c0_159, %c2_160, %c7_161] : memref<1x11x11xf32, #tpu.memory_space<vmem>>, vector<1x1x1xf32>
      %260 = vector.shape_cast %259 : vector<1x1x1xf32> to vector<1x1xf32>
      %c2_i32_162 = arith.constant 2 : i32
      %261 = arith.addi %25, %c2_i32_162 : i32
      %262 = arith.index_cast %261 : i32 to index
      %c7_163 = arith.constant 7 : index
      %263 = vector.load %arg9[%262, %c7_163] : memref<26x26xf32, #tpu.memory_space<vmem>>, vector<8x16xf32>
      %264 = vector.broadcast %260 : vector<1x1xf32> to vector<8x16xf32>
      %265 = arith.mulf %264, %263 : vector<8x16xf32>
      %266 = arith.addf %258, %265 : vector<8x16xf32>
      %c0_164 = arith.constant 0 : index
      %c2_165 = arith.constant 2 : index
      %c8_166 = arith.constant 8 : index
      %267 = vector.load %arg6[%c0_164, %c2_165, %c8_166] : memref<1x11x11xf32, #tpu.memory_space<vmem>>, vector<1x1x1xf32>
      %268 = vector.shape_cast %267 : vector<1x1x1xf32> to vector<1x1xf32>
      %c2_i32_167 = arith.constant 2 : i32
      %269 = arith.addi %25, %c2_i32_167 : i32
      %270 = arith.index_cast %269 : i32 to index
      %c8_168 = arith.constant 8 : index
      %271 = vector.load %arg9[%270, %c8_168] : memref<26x26xf32, #tpu.memory_space<vmem>>, vector<8x16xf32>
      %272 = vector.broadcast %268 : vector<1x1xf32> to vector<8x16xf32>
      %273 = arith.mulf %272, %271 : vector<8x16xf32>
      %274 = arith.addf %266, %273 : vector<8x16xf32>
      %c0_169 = arith.constant 0 : index
      %c2_170 = arith.constant 2 : index
      %c9_171 = arith.constant 9 : index
      %275 = vector.load %arg6[%c0_169, %c2_170, %c9_171] : memref<1x11x11xf32, #tpu.memory_space<vmem>>, vector<1x1x1xf32>
      %276 = vector.shape_cast %275 : vector<1x1x1xf32> to vector<1x1xf32>
      %c2_i32_172 = arith.constant 2 : i32
      %277 = arith.addi %25, %c2_i32_172 : i32
      %278 = arith.index_cast %277 : i32 to index
      %c9_173 = arith.constant 9 : index
      %279 = vector.load %arg9[%278, %c9_173] : memref<26x26xf32, #tpu.memory_space<vmem>>, vector<8x16xf32>
      %280 = vector.broadcast %276 : vector<1x1xf32> to vector<8x16xf32>
      %281 = arith.mulf %280, %279 : vector<8x16xf32>
      %282 = arith.addf %274, %281 : vector<8x16xf32>
      %c0_174 = arith.constant 0 : index
      %c2_175 = arith.constant 2 : index
      %c10_176 = arith.constant 10 : index
      %283 = vector.load %arg6[%c0_174, %c2_175, %c10_176] : memref<1x11x11xf32, #tpu.memory_space<vmem>>, vector<1x1x1xf32>
      %284 = vector.shape_cast %283 : vector<1x1x1xf32> to vector<1x1xf32>
      %c2_i32_177 = arith.constant 2 : i32
      %285 = arith.addi %25, %c2_i32_177 : i32
      %286 = arith.index_cast %285 : i32 to index
      %c10_178 = arith.constant 10 : index
      %287 = vector.load %arg9[%286, %c10_178] : memref<26x26xf32, #tpu.memory_space<vmem>>, vector<8x16xf32>
      %288 = vector.broadcast %284 : vector<1x1xf32> to vector<8x16xf32>
      %289 = arith.mulf %288, %287 : vector<8x16xf32>
      %290 = arith.addf %282, %289 : vector<8x16xf32>
      %c0_179 = arith.constant 0 : index
      %c3_180 = arith.constant 3 : index
      %c0_181 = arith.constant 0 : index
      %291 = vector.load %arg6[%c0_179, %c3_180, %c0_181] : memref<1x11x11xf32, #tpu.memory_space<vmem>>, vector<1x1x1xf32>
      %292 = vector.shape_cast %291 : vector<1x1x1xf32> to vector<1x1xf32>
      %c3_i32 = arith.constant 3 : i32
      %293 = arith.addi %25, %c3_i32 : i32
      %294 = arith.index_cast %293 : i32 to index
      %c0_182 = arith.constant 0 : index
      %295 = vector.load %arg9[%294, %c0_182] : memref<26x26xf32, #tpu.memory_space<vmem>>, vector<8x16xf32>
      %296 = vector.broadcast %292 : vector<1x1xf32> to vector<8x16xf32>
      %297 = arith.mulf %296, %295 : vector<8x16xf32>
      %298 = arith.addf %290, %297 : vector<8x16xf32>
      %c0_183 = arith.constant 0 : index
      %c3_184 = arith.constant 3 : index
      %c1_185 = arith.constant 1 : index
      %299 = vector.load %arg6[%c0_183, %c3_184, %c1_185] : memref<1x11x11xf32, #tpu.memory_space<vmem>>, vector<1x1x1xf32>
      %300 = vector.shape_cast %299 : vector<1x1x1xf32> to vector<1x1xf32>
      %c3_i32_186 = arith.constant 3 : i32
      %301 = arith.addi %25, %c3_i32_186 : i32
      %302 = arith.index_cast %301 : i32 to index
      %c1_187 = arith.constant 1 : index
      %303 = vector.load %arg9[%302, %c1_187] : memref<26x26xf32, #tpu.memory_space<vmem>>, vector<8x16xf32>
      %304 = vector.broadcast %300 : vector<1x1xf32> to vector<8x16xf32>
      %305 = arith.mulf %304, %303 : vector<8x16xf32>
      %306 = arith.addf %298, %305 : vector<8x16xf32>
      %c0_188 = arith.constant 0 : index
      %c3_189 = arith.constant 3 : index
      %c2_190 = arith.constant 2 : index
      %307 = vector.load %arg6[%c0_188, %c3_189, %c2_190] : memref<1x11x11xf32, #tpu.memory_space<vmem>>, vector<1x1x1xf32>
      %308 = vector.shape_cast %307 : vector<1x1x1xf32> to vector<1x1xf32>
      %c3_i32_191 = arith.constant 3 : i32
      %309 = arith.addi %25, %c3_i32_191 : i32
      %310 = arith.index_cast %309 : i32 to index
      %c2_192 = arith.constant 2 : index
      %311 = vector.load %arg9[%310, %c2_192] : memref<26x26xf32, #tpu.memory_space<vmem>>, vector<8x16xf32>
      %312 = vector.broadcast %308 : vector<1x1xf32> to vector<8x16xf32>
      %313 = arith.mulf %312, %311 : vector<8x16xf32>
      %314 = arith.addf %306, %313 : vector<8x16xf32>
      %c0_193 = arith.constant 0 : index
      %c3_194 = arith.constant 3 : index
      %c3_195 = arith.constant 3 : index
      %315 = vector.load %arg6[%c0_193, %c3_194, %c3_195] : memref<1x11x11xf32, #tpu.memory_space<vmem>>, vector<1x1x1xf32>
      %316 = vector.shape_cast %315 : vector<1x1x1xf32> to vector<1x1xf32>
      %c3_i32_196 = arith.constant 3 : i32
      %317 = arith.addi %25, %c3_i32_196 : i32
      %318 = arith.index_cast %317 : i32 to index
      %c3_197 = arith.constant 3 : index
      %319 = vector.load %arg9[%318, %c3_197] : memref<26x26xf32, #tpu.memory_space<vmem>>, vector<8x16xf32>
      %320 = vector.broadcast %316 : vector<1x1xf32> to vector<8x16xf32>
      %321 = arith.mulf %320, %319 : vector<8x16xf32>
      %322 = arith.addf %314, %321 : vector<8x16xf32>
      %c0_198 = arith.constant 0 : index
      %c3_199 = arith.constant 3 : index
      %c4_200 = arith.constant 4 : index
      %323 = vector.load %arg6[%c0_198, %c3_199, %c4_200] : memref<1x11x11xf32, #tpu.memory_space<vmem>>, vector<1x1x1xf32>
      %324 = vector.shape_cast %323 : vector<1x1x1xf32> to vector<1x1xf32>
      %c3_i32_201 = arith.constant 3 : i32
      %325 = arith.addi %25, %c3_i32_201 : i32
      %326 = arith.index_cast %325 : i32 to index
      %c4_202 = arith.constant 4 : index
      %327 = vector.load %arg9[%326, %c4_202] : memref<26x26xf32, #tpu.memory_space<vmem>>, vector<8x16xf32>
      %328 = vector.broadcast %324 : vector<1x1xf32> to vector<8x16xf32>
      %329 = arith.mulf %328, %327 : vector<8x16xf32>
      %330 = arith.addf %322, %329 : vector<8x16xf32>
      %c0_203 = arith.constant 0 : index
      %c3_204 = arith.constant 3 : index
      %c5_205 = arith.constant 5 : index
      %331 = vector.load %arg6[%c0_203, %c3_204, %c5_205] : memref<1x11x11xf32, #tpu.memory_space<vmem>>, vector<1x1x1xf32>
      %332 = vector.shape_cast %331 : vector<1x1x1xf32> to vector<1x1xf32>
      %c3_i32_206 = arith.constant 3 : i32
      %333 = arith.addi %25, %c3_i32_206 : i32
      %334 = arith.index_cast %333 : i32 to index
      %c5_207 = arith.constant 5 : index
      %335 = vector.load %arg9[%334, %c5_207] : memref<26x26xf32, #tpu.memory_space<vmem>>, vector<8x16xf32>
      %336 = vector.broadcast %332 : vector<1x1xf32> to vector<8x16xf32>
      %337 = arith.mulf %336, %335 : vector<8x16xf32>
      %338 = arith.addf %330, %337 : vector<8x16xf32>
      %c0_208 = arith.constant 0 : index
      %c3_209 = arith.constant 3 : index
      %c6_210 = arith.constant 6 : index
      %339 = vector.load %arg6[%c0_208, %c3_209, %c6_210] : memref<1x11x11xf32, #tpu.memory_space<vmem>>, vector<1x1x1xf32>
      %340 = vector.shape_cast %339 : vector<1x1x1xf32> to vector<1x1xf32>
      %c3_i32_211 = arith.constant 3 : i32
      %341 = arith.addi %25, %c3_i32_211 : i32
      %342 = arith.index_cast %341 : i32 to index
      %c6_212 = arith.constant 6 : index
      %343 = vector.load %arg9[%342, %c6_212] : memref<26x26xf32, #tpu.memory_space<vmem>>, vector<8x16xf32>
      %344 = vector.broadcast %340 : vector<1x1xf32> to vector<8x16xf32>
      %345 = arith.mulf %344, %343 : vector<8x16xf32>
      %346 = arith.addf %338, %345 : vector<8x16xf32>
      %c0_213 = arith.constant 0 : index
      %c3_214 = arith.constant 3 : index
      %c7_215 = arith.constant 7 : index
      %347 = vector.load %arg6[%c0_213, %c3_214, %c7_215] : memref<1x11x11xf32, #tpu.memory_space<vmem>>, vector<1x1x1xf32>
      %348 = vector.shape_cast %347 : vector<1x1x1xf32> to vector<1x1xf32>
      %c3_i32_216 = arith.constant 3 : i32
      %349 = arith.addi %25, %c3_i32_216 : i32
      %350 = arith.index_cast %349 : i32 to index
      %c7_217 = arith.constant 7 : index
      %351 = vector.load %arg9[%350, %c7_217] : memref<26x26xf32, #tpu.memory_space<vmem>>, vector<8x16xf32>
      %352 = vector.broadcast %348 : vector<1x1xf32> to vector<8x16xf32>
      %353 = arith.mulf %352, %351 : vector<8x16xf32>
      %354 = arith.addf %346, %353 : vector<8x16xf32>
      %c0_218 = arith.constant 0 : index
      %c3_219 = arith.constant 3 : index
      %c8_220 = arith.constant 8 : index
      %355 = vector.load %arg6[%c0_218, %c3_219, %c8_220] : memref<1x11x11xf32, #tpu.memory_space<vmem>>, vector<1x1x1xf32>
      %356 = vector.shape_cast %355 : vector<1x1x1xf32> to vector<1x1xf32>
      %c3_i32_221 = arith.constant 3 : i32
      %357 = arith.addi %25, %c3_i32_221 : i32
      %358 = arith.index_cast %357 : i32 to index
      %c8_222 = arith.constant 8 : index
      %359 = vector.load %arg9[%358, %c8_222] : memref<26x26xf32, #tpu.memory_space<vmem>>, vector<8x16xf32>
      %360 = vector.broadcast %356 : vector<1x1xf32> to vector<8x16xf32>
      %361 = arith.mulf %360, %359 : vector<8x16xf32>
      %362 = arith.addf %354, %361 : vector<8x16xf32>
      %c0_223 = arith.constant 0 : index
      %c3_224 = arith.constant 3 : index
      %c9_225 = arith.constant 9 : index
      %363 = vector.load %arg6[%c0_223, %c3_224, %c9_225] : memref<1x11x11xf32, #tpu.memory_space<vmem>>, vector<1x1x1xf32>
      %364 = vector.shape_cast %363 : vector<1x1x1xf32> to vector<1x1xf32>
      %c3_i32_226 = arith.constant 3 : i32
      %365 = arith.addi %25, %c3_i32_226 : i32
      %366 = arith.index_cast %365 : i32 to index
      %c9_227 = arith.constant 9 : index
      %367 = vector.load %arg9[%366, %c9_227] : memref<26x26xf32, #tpu.memory_space<vmem>>, vector<8x16xf32>
      %368 = vector.broadcast %364 : vector<1x1xf32> to vector<8x16xf32>
      %369 = arith.mulf %368, %367 : vector<8x16xf32>
      %370 = arith.addf %362, %369 : vector<8x16xf32>
      %c0_228 = arith.constant 0 : index
      %c3_229 = arith.constant 3 : index
      %c10_230 = arith.constant 10 : index
      %371 = vector.load %arg6[%c0_228, %c3_229, %c10_230] : memref<1x11x11xf32, #tpu.memory_space<vmem>>, vector<1x1x1xf32>
      %372 = vector.shape_cast %371 : vector<1x1x1xf32> to vector<1x1xf32>
      %c3_i32_231 = arith.constant 3 : i32
      %373 = arith.addi %25, %c3_i32_231 : i32
      %374 = arith.index_cast %373 : i32 to index
      %c10_232 = arith.constant 10 : index
      %375 = vector.load %arg9[%374, %c10_232] : memref<26x26xf32, #tpu.memory_space<vmem>>, vector<8x16xf32>
      %376 = vector.broadcast %372 : vector<1x1xf32> to vector<8x16xf32>
      %377 = arith.mulf %376, %375 : vector<8x16xf32>
      %378 = arith.addf %370, %377 : vector<8x16xf32>
      %c0_233 = arith.constant 0 : index
      %c4_234 = arith.constant 4 : index
      %c0_235 = arith.constant 0 : index
      %379 = vector.load %arg6[%c0_233, %c4_234, %c0_235] : memref<1x11x11xf32, #tpu.memory_space<vmem>>, vector<1x1x1xf32>
      %380 = vector.shape_cast %379 : vector<1x1x1xf32> to vector<1x1xf32>
      %c4_i32 = arith.constant 4 : i32
      %381 = arith.addi %25, %c4_i32 : i32
      %382 = arith.index_cast %381 : i32 to index
      %c0_236 = arith.constant 0 : index
      %383 = vector.load %arg9[%382, %c0_236] : memref<26x26xf32, #tpu.memory_space<vmem>>, vector<8x16xf32>
      %384 = vector.broadcast %380 : vector<1x1xf32> to vector<8x16xf32>
      %385 = arith.mulf %384, %383 : vector<8x16xf32>
      %386 = arith.addf %378, %385 : vector<8x16xf32>
      %c0_237 = arith.constant 0 : index
      %c4_238 = arith.constant 4 : index
      %c1_239 = arith.constant 1 : index
      %387 = vector.load %arg6[%c0_237, %c4_238, %c1_239] : memref<1x11x11xf32, #tpu.memory_space<vmem>>, vector<1x1x1xf32>
      %388 = vector.shape_cast %387 : vector<1x1x1xf32> to vector<1x1xf32>
      %c4_i32_240 = arith.constant 4 : i32
      %389 = arith.addi %25, %c4_i32_240 : i32
      %390 = arith.index_cast %389 : i32 to index
      %c1_241 = arith.constant 1 : index
      %391 = vector.load %arg9[%390, %c1_241] : memref<26x26xf32, #tpu.memory_space<vmem>>, vector<8x16xf32>
      %392 = vector.broadcast %388 : vector<1x1xf32> to vector<8x16xf32>
      %393 = arith.mulf %392, %391 : vector<8x16xf32>
      %394 = arith.addf %386, %393 : vector<8x16xf32>
      %c0_242 = arith.constant 0 : index
      %c4_243 = arith.constant 4 : index
      %c2_244 = arith.constant 2 : index
      %395 = vector.load %arg6[%c0_242, %c4_243, %c2_244] : memref<1x11x11xf32, #tpu.memory_space<vmem>>, vector<1x1x1xf32>
      %396 = vector.shape_cast %395 : vector<1x1x1xf32> to vector<1x1xf32>
      %c4_i32_245 = arith.constant 4 : i32
      %397 = arith.addi %25, %c4_i32_245 : i32
      %398 = arith.index_cast %397 : i32 to index
      %c2_246 = arith.constant 2 : index
      %399 = vector.load %arg9[%398, %c2_246] : memref<26x26xf32, #tpu.memory_space<vmem>>, vector<8x16xf32>
      %400 = vector.broadcast %396 : vector<1x1xf32> to vector<8x16xf32>
      %401 = arith.mulf %400, %399 : vector<8x16xf32>
      %402 = arith.addf %394, %401 : vector<8x16xf32>
      %c0_247 = arith.constant 0 : index
      %c4_248 = arith.constant 4 : index
      %c3_249 = arith.constant 3 : index
      %403 = vector.load %arg6[%c0_247, %c4_248, %c3_249] : memref<1x11x11xf32, #tpu.memory_space<vmem>>, vector<1x1x1xf32>
      %404 = vector.shape_cast %403 : vector<1x1x1xf32> to vector<1x1xf32>
      %c4_i32_250 = arith.constant 4 : i32
      %405 = arith.addi %25, %c4_i32_250 : i32
      %406 = arith.index_cast %405 : i32 to index
      %c3_251 = arith.constant 3 : index
      %407 = vector.load %arg9[%406, %c3_251] : memref<26x26xf32, #tpu.memory_space<vmem>>, vector<8x16xf32>
      %408 = vector.broadcast %404 : vector<1x1xf32> to vector<8x16xf32>
      %409 = arith.mulf %408, %407 : vector<8x16xf32>
      %410 = arith.addf %402, %409 : vector<8x16xf32>
      %c0_252 = arith.constant 0 : index
      %c4_253 = arith.constant 4 : index
      %c4_254 = arith.constant 4 : index
      %411 = vector.load %arg6[%c0_252, %c4_253, %c4_254] : memref<1x11x11xf32, #tpu.memory_space<vmem>>, vector<1x1x1xf32>
      %412 = vector.shape_cast %411 : vector<1x1x1xf32> to vector<1x1xf32>
      %c4_i32_255 = arith.constant 4 : i32
      %413 = arith.addi %25, %c4_i32_255 : i32
      %414 = arith.index_cast %413 : i32 to index
      %c4_256 = arith.constant 4 : index
      %415 = vector.load %arg9[%414, %c4_256] : memref<26x26xf32, #tpu.memory_space<vmem>>, vector<8x16xf32>
      %416 = vector.broadcast %412 : vector<1x1xf32> to vector<8x16xf32>
      %417 = arith.mulf %416, %415 : vector<8x16xf32>
      %418 = arith.addf %410, %417 : vector<8x16xf32>
      %c0_257 = arith.constant 0 : index
      %c4_258 = arith.constant 4 : index
      %c5_259 = arith.constant 5 : index
      %419 = vector.load %arg6[%c0_257, %c4_258, %c5_259] : memref<1x11x11xf32, #tpu.memory_space<vmem>>, vector<1x1x1xf32>
      %420 = vector.shape_cast %419 : vector<1x1x1xf32> to vector<1x1xf32>
      %c4_i32_260 = arith.constant 4 : i32
      %421 = arith.addi %25, %c4_i32_260 : i32
      %422 = arith.index_cast %421 : i32 to index
      %c5_261 = arith.constant 5 : index
      %423 = vector.load %arg9[%422, %c5_261] : memref<26x26xf32, #tpu.memory_space<vmem>>, vector<8x16xf32>
      %424 = vector.broadcast %420 : vector<1x1xf32> to vector<8x16xf32>
      %425 = arith.mulf %424, %423 : vector<8x16xf32>
      %426 = arith.addf %418, %425 : vector<8x16xf32>
      %c0_262 = arith.constant 0 : index
      %c4_263 = arith.constant 4 : index
      %c6_264 = arith.constant 6 : index
      %427 = vector.load %arg6[%c0_262, %c4_263, %c6_264] : memref<1x11x11xf32, #tpu.memory_space<vmem>>, vector<1x1x1xf32>
      %428 = vector.shape_cast %427 : vector<1x1x1xf32> to vector<1x1xf32>
      %c4_i32_265 = arith.constant 4 : i32
      %429 = arith.addi %25, %c4_i32_265 : i32
      %430 = arith.index_cast %429 : i32 to index
      %c6_266 = arith.constant 6 : index
      %431 = vector.load %arg9[%430, %c6_266] : memref<26x26xf32, #tpu.memory_space<vmem>>, vector<8x16xf32>
      %432 = vector.broadcast %428 : vector<1x1xf32> to vector<8x16xf32>
      %433 = arith.mulf %432, %431 : vector<8x16xf32>
      %434 = arith.addf %426, %433 : vector<8x16xf32>
      %c0_267 = arith.constant 0 : index
      %c4_268 = arith.constant 4 : index
      %c7_269 = arith.constant 7 : index
      %435 = vector.load %arg6[%c0_267, %c4_268, %c7_269] : memref<1x11x11xf32, #tpu.memory_space<vmem>>, vector<1x1x1xf32>
      %436 = vector.shape_cast %435 : vector<1x1x1xf32> to vector<1x1xf32>
      %c4_i32_270 = arith.constant 4 : i32
      %437 = arith.addi %25, %c4_i32_270 : i32
      %438 = arith.index_cast %437 : i32 to index
      %c7_271 = arith.constant 7 : index
      %439 = vector.load %arg9[%438, %c7_271] : memref<26x26xf32, #tpu.memory_space<vmem>>, vector<8x16xf32>
      %440 = vector.broadcast %436 : vector<1x1xf32> to vector<8x16xf32>
      %441 = arith.mulf %440, %439 : vector<8x16xf32>
      %442 = arith.addf %434, %441 : vector<8x16xf32>
      %c0_272 = arith.constant 0 : index
      %c4_273 = arith.constant 4 : index
      %c8_274 = arith.constant 8 : index
      %443 = vector.load %arg6[%c0_272, %c4_273, %c8_274] : memref<1x11x11xf32, #tpu.memory_space<vmem>>, vector<1x1x1xf32>
      %444 = vector.shape_cast %443 : vector<1x1x1xf32> to vector<1x1xf32>
      %c4_i32_275 = arith.constant 4 : i32
      %445 = arith.addi %25, %c4_i32_275 : i32
      %446 = arith.index_cast %445 : i32 to index
      %c8_276 = arith.constant 8 : index
      %447 = vector.load %arg9[%446, %c8_276] : memref<26x26xf32, #tpu.memory_space<vmem>>, vector<8x16xf32>
      %448 = vector.broadcast %444 : vector<1x1xf32> to vector<8x16xf32>
      %449 = arith.mulf %448, %447 : vector<8x16xf32>
      %450 = arith.addf %442, %449 : vector<8x16xf32>
      %c0_277 = arith.constant 0 : index
      %c4_278 = arith.constant 4 : index
      %c9_279 = arith.constant 9 : index
      %451 = vector.load %arg6[%c0_277, %c4_278, %c9_279] : memref<1x11x11xf32, #tpu.memory_space<vmem>>, vector<1x1x1xf32>
      %452 = vector.shape_cast %451 : vector<1x1x1xf32> to vector<1x1xf32>
      %c4_i32_280 = arith.constant 4 : i32
      %453 = arith.addi %25, %c4_i32_280 : i32
      %454 = arith.index_cast %453 : i32 to index
      %c9_281 = arith.constant 9 : index
      %455 = vector.load %arg9[%454, %c9_281] : memref<26x26xf32, #tpu.memory_space<vmem>>, vector<8x16xf32>
      %456 = vector.broadcast %452 : vector<1x1xf32> to vector<8x16xf32>
      %457 = arith.mulf %456, %455 : vector<8x16xf32>
      %458 = arith.addf %450, %457 : vector<8x16xf32>
      %c0_282 = arith.constant 0 : index
      %c4_283 = arith.constant 4 : index
      %c10_284 = arith.constant 10 : index
      %459 = vector.load %arg6[%c0_282, %c4_283, %c10_284] : memref<1x11x11xf32, #tpu.memory_space<vmem>>, vector<1x1x1xf32>
      %460 = vector.shape_cast %459 : vector<1x1x1xf32> to vector<1x1xf32>
      %c4_i32_285 = arith.constant 4 : i32
      %461 = arith.addi %25, %c4_i32_285 : i32
      %462 = arith.index_cast %461 : i32 to index
      %c10_286 = arith.constant 10 : index
      %463 = vector.load %arg9[%462, %c10_286] : memref<26x26xf32, #tpu.memory_space<vmem>>, vector<8x16xf32>
      %464 = vector.broadcast %460 : vector<1x1xf32> to vector<8x16xf32>
      %465 = arith.mulf %464, %463 : vector<8x16xf32>
      %466 = arith.addf %458, %465 : vector<8x16xf32>
      %c0_287 = arith.constant 0 : index
      %c5_288 = arith.constant 5 : index
      %c0_289 = arith.constant 0 : index
      %467 = vector.load %arg6[%c0_287, %c5_288, %c0_289] : memref<1x11x11xf32, #tpu.memory_space<vmem>>, vector<1x1x1xf32>
      %468 = vector.shape_cast %467 : vector<1x1x1xf32> to vector<1x1xf32>
      %c5_i32 = arith.constant 5 : i32
      %469 = arith.addi %25, %c5_i32 : i32
      %470 = arith.index_cast %469 : i32 to index
      %c0_290 = arith.constant 0 : index
      %471 = vector.load %arg9[%470, %c0_290] : memref<26x26xf32, #tpu.memory_space<vmem>>, vector<8x16xf32>
      %472 = vector.broadcast %468 : vector<1x1xf32> to vector<8x16xf32>
      %473 = arith.mulf %472, %471 : vector<8x16xf32>
      %474 = arith.addf %466, %473 : vector<8x16xf32>
      %c0_291 = arith.constant 0 : index
      %c5_292 = arith.constant 5 : index
      %c1_293 = arith.constant 1 : index
      %475 = vector.load %arg6[%c0_291, %c5_292, %c1_293] : memref<1x11x11xf32, #tpu.memory_space<vmem>>, vector<1x1x1xf32>
      %476 = vector.shape_cast %475 : vector<1x1x1xf32> to vector<1x1xf32>
      %c5_i32_294 = arith.constant 5 : i32
      %477 = arith.addi %25, %c5_i32_294 : i32
      %478 = arith.index_cast %477 : i32 to index
      %c1_295 = arith.constant 1 : index
      %479 = vector.load %arg9[%478, %c1_295] : memref<26x26xf32, #tpu.memory_space<vmem>>, vector<8x16xf32>
      %480 = vector.broadcast %476 : vector<1x1xf32> to vector<8x16xf32>
      %481 = arith.mulf %480, %479 : vector<8x16xf32>
      %482 = arith.addf %474, %481 : vector<8x16xf32>
      %c0_296 = arith.constant 0 : index
      %c5_297 = arith.constant 5 : index
      %c2_298 = arith.constant 2 : index
      %483 = vector.load %arg6[%c0_296, %c5_297, %c2_298] : memref<1x11x11xf32, #tpu.memory_space<vmem>>, vector<1x1x1xf32>
      %484 = vector.shape_cast %483 : vector<1x1x1xf32> to vector<1x1xf32>
      %c5_i32_299 = arith.constant 5 : i32
      %485 = arith.addi %25, %c5_i32_299 : i32
      %486 = arith.index_cast %485 : i32 to index
      %c2_300 = arith.constant 2 : index
      %487 = vector.load %arg9[%486, %c2_300] : memref<26x26xf32, #tpu.memory_space<vmem>>, vector<8x16xf32>
      %488 = vector.broadcast %484 : vector<1x1xf32> to vector<8x16xf32>
      %489 = arith.mulf %488, %487 : vector<8x16xf32>
      %490 = arith.addf %482, %489 : vector<8x16xf32>
      %c0_301 = arith.constant 0 : index
      %c5_302 = arith.constant 5 : index
      %c3_303 = arith.constant 3 : index
      %491 = vector.load %arg6[%c0_301, %c5_302, %c3_303] : memref<1x11x11xf32, #tpu.memory_space<vmem>>, vector<1x1x1xf32>
      %492 = vector.shape_cast %491 : vector<1x1x1xf32> to vector<1x1xf32>
      %c5_i32_304 = arith.constant 5 : i32
      %493 = arith.addi %25, %c5_i32_304 : i32
      %494 = arith.index_cast %493 : i32 to index
      %c3_305 = arith.constant 3 : index
      %495 = vector.load %arg9[%494, %c3_305] : memref<26x26xf32, #tpu.memory_space<vmem>>, vector<8x16xf32>
      %496 = vector.broadcast %492 : vector<1x1xf32> to vector<8x16xf32>
      %497 = arith.mulf %496, %495 : vector<8x16xf32>
      %498 = arith.addf %490, %497 : vector<8x16xf32>
      %c0_306 = arith.constant 0 : index
      %c5_307 = arith.constant 5 : index
      %c4_308 = arith.constant 4 : index
      %499 = vector.load %arg6[%c0_306, %c5_307, %c4_308] : memref<1x11x11xf32, #tpu.memory_space<vmem>>, vector<1x1x1xf32>
      %500 = vector.shape_cast %499 : vector<1x1x1xf32> to vector<1x1xf32>
      %c5_i32_309 = arith.constant 5 : i32
      %501 = arith.addi %25, %c5_i32_309 : i32
      %502 = arith.index_cast %501 : i32 to index
      %c4_310 = arith.constant 4 : index
      %503 = vector.load %arg9[%502, %c4_310] : memref<26x26xf32, #tpu.memory_space<vmem>>, vector<8x16xf32>
      %504 = vector.broadcast %500 : vector<1x1xf32> to vector<8x16xf32>
      %505 = arith.mulf %504, %503 : vector<8x16xf32>
      %506 = arith.addf %498, %505 : vector<8x16xf32>
      %c0_311 = arith.constant 0 : index
      %c5_312 = arith.constant 5 : index
      %c5_313 = arith.constant 5 : index
      %507 = vector.load %arg6[%c0_311, %c5_312, %c5_313] : memref<1x11x11xf32, #tpu.memory_space<vmem>>, vector<1x1x1xf32>
      %508 = vector.shape_cast %507 : vector<1x1x1xf32> to vector<1x1xf32>
      %c5_i32_314 = arith.constant 5 : i32
      %509 = arith.addi %25, %c5_i32_314 : i32
      %510 = arith.index_cast %509 : i32 to index
      %c5_315 = arith.constant 5 : index
      %511 = vector.load %arg9[%510, %c5_315] : memref<26x26xf32, #tpu.memory_space<vmem>>, vector<8x16xf32>
      %512 = vector.broadcast %508 : vector<1x1xf32> to vector<8x16xf32>
      %513 = arith.mulf %512, %511 : vector<8x16xf32>
      %514 = arith.addf %506, %513 : vector<8x16xf32>
      %c0_316 = arith.constant 0 : index
      %c5_317 = arith.constant 5 : index
      %c6_318 = arith.constant 6 : index
      %515 = vector.load %arg6[%c0_316, %c5_317, %c6_318] : memref<1x11x11xf32, #tpu.memory_space<vmem>>, vector<1x1x1xf32>
      %516 = vector.shape_cast %515 : vector<1x1x1xf32> to vector<1x1xf32>
      %c5_i32_319 = arith.constant 5 : i32
      %517 = arith.addi %25, %c5_i32_319 : i32
      %518 = arith.index_cast %517 : i32 to index
      %c6_320 = arith.constant 6 : index
      %519 = vector.load %arg9[%518, %c6_320] : memref<26x26xf32, #tpu.memory_space<vmem>>, vector<8x16xf32>
      %520 = vector.broadcast %516 : vector<1x1xf32> to vector<8x16xf32>
      %521 = arith.mulf %520, %519 : vector<8x16xf32>
      %522 = arith.addf %514, %521 : vector<8x16xf32>
      %c0_321 = arith.constant 0 : index
      %c5_322 = arith.constant 5 : index
      %c7_323 = arith.constant 7 : index
      %523 = vector.load %arg6[%c0_321, %c5_322, %c7_323] : memref<1x11x11xf32, #tpu.memory_space<vmem>>, vector<1x1x1xf32>
      %524 = vector.shape_cast %523 : vector<1x1x1xf32> to vector<1x1xf32>
      %c5_i32_324 = arith.constant 5 : i32
      %525 = arith.addi %25, %c5_i32_324 : i32
      %526 = arith.index_cast %525 : i32 to index
      %c7_325 = arith.constant 7 : index
      %527 = vector.load %arg9[%526, %c7_325] : memref<26x26xf32, #tpu.memory_space<vmem>>, vector<8x16xf32>
      %528 = vector.broadcast %524 : vector<1x1xf32> to vector<8x16xf32>
      %529 = arith.mulf %528, %527 : vector<8x16xf32>
      %530 = arith.addf %522, %529 : vector<8x16xf32>
      %c0_326 = arith.constant 0 : index
      %c5_327 = arith.constant 5 : index
      %c8_328 = arith.constant 8 : index
      %531 = vector.load %arg6[%c0_326, %c5_327, %c8_328] : memref<1x11x11xf32, #tpu.memory_space<vmem>>, vector<1x1x1xf32>
      %532 = vector.shape_cast %531 : vector<1x1x1xf32> to vector<1x1xf32>
      %c5_i32_329 = arith.constant 5 : i32
      %533 = arith.addi %25, %c5_i32_329 : i32
      %534 = arith.index_cast %533 : i32 to index
      %c8_330 = arith.constant 8 : index
      %535 = vector.load %arg9[%534, %c8_330] : memref<26x26xf32, #tpu.memory_space<vmem>>, vector<8x16xf32>
      %536 = vector.broadcast %532 : vector<1x1xf32> to vector<8x16xf32>
      %537 = arith.mulf %536, %535 : vector<8x16xf32>
      %538 = arith.addf %530, %537 : vector<8x16xf32>
      %c0_331 = arith.constant 0 : index
      %c5_332 = arith.constant 5 : index
      %c9_333 = arith.constant 9 : index
      %539 = vector.load %arg6[%c0_331, %c5_332, %c9_333] : memref<1x11x11xf32, #tpu.memory_space<vmem>>, vector<1x1x1xf32>
      %540 = vector.shape_cast %539 : vector<1x1x1xf32> to vector<1x1xf32>
      %c5_i32_334 = arith.constant 5 : i32
      %541 = arith.addi %25, %c5_i32_334 : i32
      %542 = arith.index_cast %541 : i32 to index
      %c9_335 = arith.constant 9 : index
      %543 = vector.load %arg9[%542, %c9_335] : memref<26x26xf32, #tpu.memory_space<vmem>>, vector<8x16xf32>
      %544 = vector.broadcast %540 : vector<1x1xf32> to vector<8x16xf32>
      %545 = arith.mulf %544, %543 : vector<8x16xf32>
      %546 = arith.addf %538, %545 : vector<8x16xf32>
      %c0_336 = arith.constant 0 : index
      %c5_337 = arith.constant 5 : index
      %c10_338 = arith.constant 10 : index
      %547 = vector.load %arg6[%c0_336, %c5_337, %c10_338] : memref<1x11x11xf32, #tpu.memory_space<vmem>>, vector<1x1x1xf32>
      %548 = vector.shape_cast %547 : vector<1x1x1xf32> to vector<1x1xf32>
      %c5_i32_339 = arith.constant 5 : i32
      %549 = arith.addi %25, %c5_i32_339 : i32
      %550 = arith.index_cast %549 : i32 to index
      %c10_340 = arith.constant 10 : index
      %551 = vector.load %arg9[%550, %c10_340] : memref<26x26xf32, #tpu.memory_space<vmem>>, vector<8x16xf32>
      %552 = vector.broadcast %548 : vector<1x1xf32> to vector<8x16xf32>
      %553 = arith.mulf %552, %551 : vector<8x16xf32>
      %554 = arith.addf %546, %553 : vector<8x16xf32>
      %c0_341 = arith.constant 0 : index
      %c6_342 = arith.constant 6 : index
      %c0_343 = arith.constant 0 : index
      %555 = vector.load %arg6[%c0_341, %c6_342, %c0_343] : memref<1x11x11xf32, #tpu.memory_space<vmem>>, vector<1x1x1xf32>
      %556 = vector.shape_cast %555 : vector<1x1x1xf32> to vector<1x1xf32>
      %c6_i32 = arith.constant 6 : i32
      %557 = arith.addi %25, %c6_i32 : i32
      %558 = arith.index_cast %557 : i32 to index
      %c0_344 = arith.constant 0 : index
      %559 = vector.load %arg9[%558, %c0_344] : memref<26x26xf32, #tpu.memory_space<vmem>>, vector<8x16xf32>
      %560 = vector.broadcast %556 : vector<1x1xf32> to vector<8x16xf32>
      %561 = arith.mulf %560, %559 : vector<8x16xf32>
      %562 = arith.addf %554, %561 : vector<8x16xf32>
      %c0_345 = arith.constant 0 : index
      %c6_346 = arith.constant 6 : index
      %c1_347 = arith.constant 1 : index
      %563 = vector.load %arg6[%c0_345, %c6_346, %c1_347] : memref<1x11x11xf32, #tpu.memory_space<vmem>>, vector<1x1x1xf32>
      %564 = vector.shape_cast %563 : vector<1x1x1xf32> to vector<1x1xf32>
      %c6_i32_348 = arith.constant 6 : i32
      %565 = arith.addi %25, %c6_i32_348 : i32
      %566 = arith.index_cast %565 : i32 to index
      %c1_349 = arith.constant 1 : index
      %567 = vector.load %arg9[%566, %c1_349] : memref<26x26xf32, #tpu.memory_space<vmem>>, vector<8x16xf32>
      %568 = vector.broadcast %564 : vector<1x1xf32> to vector<8x16xf32>
      %569 = arith.mulf %568, %567 : vector<8x16xf32>
      %570 = arith.addf %562, %569 : vector<8x16xf32>
      %c0_350 = arith.constant 0 : index
      %c6_351 = arith.constant 6 : index
      %c2_352 = arith.constant 2 : index
      %571 = vector.load %arg6[%c0_350, %c6_351, %c2_352] : memref<1x11x11xf32, #tpu.memory_space<vmem>>, vector<1x1x1xf32>
      %572 = vector.shape_cast %571 : vector<1x1x1xf32> to vector<1x1xf32>
      %c6_i32_353 = arith.constant 6 : i32
      %573 = arith.addi %25, %c6_i32_353 : i32
      %574 = arith.index_cast %573 : i32 to index
      %c2_354 = arith.constant 2 : index
      %575 = vector.load %arg9[%574, %c2_354] : memref<26x26xf32, #tpu.memory_space<vmem>>, vector<8x16xf32>
      %576 = vector.broadcast %572 : vector<1x1xf32> to vector<8x16xf32>
      %577 = arith.mulf %576, %575 : vector<8x16xf32>
      %578 = arith.addf %570, %577 : vector<8x16xf32>
      %c0_355 = arith.constant 0 : index
      %c6_356 = arith.constant 6 : index
      %c3_357 = arith.constant 3 : index
      %579 = vector.load %arg6[%c0_355, %c6_356, %c3_357] : memref<1x11x11xf32, #tpu.memory_space<vmem>>, vector<1x1x1xf32>
      %580 = vector.shape_cast %579 : vector<1x1x1xf32> to vector<1x1xf32>
      %c6_i32_358 = arith.constant 6 : i32
      %581 = arith.addi %25, %c6_i32_358 : i32
      %582 = arith.index_cast %581 : i32 to index
      %c3_359 = arith.constant 3 : index
      %583 = vector.load %arg9[%582, %c3_359] : memref<26x26xf32, #tpu.memory_space<vmem>>, vector<8x16xf32>
      %584 = vector.broadcast %580 : vector<1x1xf32> to vector<8x16xf32>
      %585 = arith.mulf %584, %583 : vector<8x16xf32>
      %586 = arith.addf %578, %585 : vector<8x16xf32>
      %c0_360 = arith.constant 0 : index
      %c6_361 = arith.constant 6 : index
      %c4_362 = arith.constant 4 : index
      %587 = vector.load %arg6[%c0_360, %c6_361, %c4_362] : memref<1x11x11xf32, #tpu.memory_space<vmem>>, vector<1x1x1xf32>
      %588 = vector.shape_cast %587 : vector<1x1x1xf32> to vector<1x1xf32>
      %c6_i32_363 = arith.constant 6 : i32
      %589 = arith.addi %25, %c6_i32_363 : i32
      %590 = arith.index_cast %589 : i32 to index
      %c4_364 = arith.constant 4 : index
      %591 = vector.load %arg9[%590, %c4_364] : memref<26x26xf32, #tpu.memory_space<vmem>>, vector<8x16xf32>
      %592 = vector.broadcast %588 : vector<1x1xf32> to vector<8x16xf32>
      %593 = arith.mulf %592, %591 : vector<8x16xf32>
      %594 = arith.addf %586, %593 : vector<8x16xf32>
      %c0_365 = arith.constant 0 : index
      %c6_366 = arith.constant 6 : index
      %c5_367 = arith.constant 5 : index
      %595 = vector.load %arg6[%c0_365, %c6_366, %c5_367] : memref<1x11x11xf32, #tpu.memory_space<vmem>>, vector<1x1x1xf32>
      %596 = vector.shape_cast %595 : vector<1x1x1xf32> to vector<1x1xf32>
      %c6_i32_368 = arith.constant 6 : i32
      %597 = arith.addi %25, %c6_i32_368 : i32
      %598 = arith.index_cast %597 : i32 to index
      %c5_369 = arith.constant 5 : index
      %599 = vector.load %arg9[%598, %c5_369] : memref<26x26xf32, #tpu.memory_space<vmem>>, vector<8x16xf32>
      %600 = vector.broadcast %596 : vector<1x1xf32> to vector<8x16xf32>
      %601 = arith.mulf %600, %599 : vector<8x16xf32>
      %602 = arith.addf %594, %601 : vector<8x16xf32>
      %c0_370 = arith.constant 0 : index
      %c6_371 = arith.constant 6 : index
      %c6_372 = arith.constant 6 : index
      %603 = vector.load %arg6[%c0_370, %c6_371, %c6_372] : memref<1x11x11xf32, #tpu.memory_space<vmem>>, vector<1x1x1xf32>
      %604 = vector.shape_cast %603 : vector<1x1x1xf32> to vector<1x1xf32>
      %c6_i32_373 = arith.constant 6 : i32
      %605 = arith.addi %25, %c6_i32_373 : i32
      %606 = arith.index_cast %605 : i32 to index
      %c6_374 = arith.constant 6 : index
      %607 = vector.load %arg9[%606, %c6_374] : memref<26x26xf32, #tpu.memory_space<vmem>>, vector<8x16xf32>
      %608 = vector.broadcast %604 : vector<1x1xf32> to vector<8x16xf32>
      %609 = arith.mulf %608, %607 : vector<8x16xf32>
      %610 = arith.addf %602, %609 : vector<8x16xf32>
      %c0_375 = arith.constant 0 : index
      %c6_376 = arith.constant 6 : index
      %c7_377 = arith.constant 7 : index
      %611 = vector.load %arg6[%c0_375, %c6_376, %c7_377] : memref<1x11x11xf32, #tpu.memory_space<vmem>>, vector<1x1x1xf32>
      %612 = vector.shape_cast %611 : vector<1x1x1xf32> to vector<1x1xf32>
      %c6_i32_378 = arith.constant 6 : i32
      %613 = arith.addi %25, %c6_i32_378 : i32
      %614 = arith.index_cast %613 : i32 to index
      %c7_379 = arith.constant 7 : index
      %615 = vector.load %arg9[%614, %c7_379] : memref<26x26xf32, #tpu.memory_space<vmem>>, vector<8x16xf32>
      %616 = vector.broadcast %612 : vector<1x1xf32> to vector<8x16xf32>
      %617 = arith.mulf %616, %615 : vector<8x16xf32>
      %618 = arith.addf %610, %617 : vector<8x16xf32>
      %c0_380 = arith.constant 0 : index
      %c6_381 = arith.constant 6 : index
      %c8_382 = arith.constant 8 : index
      %619 = vector.load %arg6[%c0_380, %c6_381, %c8_382] : memref<1x11x11xf32, #tpu.memory_space<vmem>>, vector<1x1x1xf32>
      %620 = vector.shape_cast %619 : vector<1x1x1xf32> to vector<1x1xf32>
      %c6_i32_383 = arith.constant 6 : i32
      %621 = arith.addi %25, %c6_i32_383 : i32
      %622 = arith.index_cast %621 : i32 to index
      %c8_384 = arith.constant 8 : index
      %623 = vector.load %arg9[%622, %c8_384] : memref<26x26xf32, #tpu.memory_space<vmem>>, vector<8x16xf32>
      %624 = vector.broadcast %620 : vector<1x1xf32> to vector<8x16xf32>
      %625 = arith.mulf %624, %623 : vector<8x16xf32>
      %626 = arith.addf %618, %625 : vector<8x16xf32>
      %c0_385 = arith.constant 0 : index
      %c6_386 = arith.constant 6 : index
      %c9_387 = arith.constant 9 : index
      %627 = vector.load %arg6[%c0_385, %c6_386, %c9_387] : memref<1x11x11xf32, #tpu.memory_space<vmem>>, vector<1x1x1xf32>
      %628 = vector.shape_cast %627 : vector<1x1x1xf32> to vector<1x1xf32>
      %c6_i32_388 = arith.constant 6 : i32
      %629 = arith.addi %25, %c6_i32_388 : i32
      %630 = arith.index_cast %629 : i32 to index
      %c9_389 = arith.constant 9 : index
      %631 = vector.load %arg9[%630, %c9_389] : memref<26x26xf32, #tpu.memory_space<vmem>>, vector<8x16xf32>
      %632 = vector.broadcast %628 : vector<1x1xf32> to vector<8x16xf32>
      %633 = arith.mulf %632, %631 : vector<8x16xf32>
      %634 = arith.addf %626, %633 : vector<8x16xf32>
      %c0_390 = arith.constant 0 : index
      %c6_391 = arith.constant 6 : index
      %c10_392 = arith.constant 10 : index
      %635 = vector.load %arg6[%c0_390, %c6_391, %c10_392] : memref<1x11x11xf32, #tpu.memory_space<vmem>>, vector<1x1x1xf32>
      %636 = vector.shape_cast %635 : vector<1x1x1xf32> to vector<1x1xf32>
      %c6_i32_393 = arith.constant 6 : i32
      %637 = arith.addi %25, %c6_i32_393 : i32
      %638 = arith.index_cast %637 : i32 to index
      %c10_394 = arith.constant 10 : index
      %639 = vector.load %arg9[%638, %c10_394] : memref<26x26xf32, #tpu.memory_space<vmem>>, vector<8x16xf32>
      %640 = vector.broadcast %636 : vector<1x1xf32> to vector<8x16xf32>
      %641 = arith.mulf %640, %639 : vector<8x16xf32>
      %642 = arith.addf %634, %641 : vector<8x16xf32>
      %c0_395 = arith.constant 0 : index
      %c7_396 = arith.constant 7 : index
      %c0_397 = arith.constant 0 : index
      %643 = vector.load %arg6[%c0_395, %c7_396, %c0_397] : memref<1x11x11xf32, #tpu.memory_space<vmem>>, vector<1x1x1xf32>
      %644 = vector.shape_cast %643 : vector<1x1x1xf32> to vector<1x1xf32>
      %c7_i32 = arith.constant 7 : i32
      %645 = arith.addi %25, %c7_i32 : i32
      %646 = arith.index_cast %645 : i32 to index
      %c0_398 = arith.constant 0 : index
      %647 = vector.load %arg9[%646, %c0_398] : memref<26x26xf32, #tpu.memory_space<vmem>>, vector<8x16xf32>
      %648 = vector.broadcast %644 : vector<1x1xf32> to vector<8x16xf32>
      %649 = arith.mulf %648, %647 : vector<8x16xf32>
      %650 = arith.addf %642, %649 : vector<8x16xf32>
      %c0_399 = arith.constant 0 : index
      %c7_400 = arith.constant 7 : index
      %c1_401 = arith.constant 1 : index
      %651 = vector.load %arg6[%c0_399, %c7_400, %c1_401] : memref<1x11x11xf32, #tpu.memory_space<vmem>>, vector<1x1x1xf32>
      %652 = vector.shape_cast %651 : vector<1x1x1xf32> to vector<1x1xf32>
      %c7_i32_402 = arith.constant 7 : i32
      %653 = arith.addi %25, %c7_i32_402 : i32
      %654 = arith.index_cast %653 : i32 to index
      %c1_403 = arith.constant 1 : index
      %655 = vector.load %arg9[%654, %c1_403] : memref<26x26xf32, #tpu.memory_space<vmem>>, vector<8x16xf32>
      %656 = vector.broadcast %652 : vector<1x1xf32> to vector<8x16xf32>
      %657 = arith.mulf %656, %655 : vector<8x16xf32>
      %658 = arith.addf %650, %657 : vector<8x16xf32>
      %c0_404 = arith.constant 0 : index
      %c7_405 = arith.constant 7 : index
      %c2_406 = arith.constant 2 : index
      %659 = vector.load %arg6[%c0_404, %c7_405, %c2_406] : memref<1x11x11xf32, #tpu.memory_space<vmem>>, vector<1x1x1xf32>
      %660 = vector.shape_cast %659 : vector<1x1x1xf32> to vector<1x1xf32>
      %c7_i32_407 = arith.constant 7 : i32
      %661 = arith.addi %25, %c7_i32_407 : i32
      %662 = arith.index_cast %661 : i32 to index
      %c2_408 = arith.constant 2 : index
      %663 = vector.load %arg9[%662, %c2_408] : memref<26x26xf32, #tpu.memory_space<vmem>>, vector<8x16xf32>
      %664 = vector.broadcast %660 : vector<1x1xf32> to vector<8x16xf32>
      %665 = arith.mulf %664, %663 : vector<8x16xf32>
      %666 = arith.addf %658, %665 : vector<8x16xf32>
      %c0_409 = arith.constant 0 : index
      %c7_410 = arith.constant 7 : index
      %c3_411 = arith.constant 3 : index
      %667 = vector.load %arg6[%c0_409, %c7_410, %c3_411] : memref<1x11x11xf32, #tpu.memory_space<vmem>>, vector<1x1x1xf32>
      %668 = vector.shape_cast %667 : vector<1x1x1xf32> to vector<1x1xf32>
      %c7_i32_412 = arith.constant 7 : i32
      %669 = arith.addi %25, %c7_i32_412 : i32
      %670 = arith.index_cast %669 : i32 to index
      %c3_413 = arith.constant 3 : index
      %671 = vector.load %arg9[%670, %c3_413] : memref<26x26xf32, #tpu.memory_space<vmem>>, vector<8x16xf32>
      %672 = vector.broadcast %668 : vector<1x1xf32> to vector<8x16xf32>
      %673 = arith.mulf %672, %671 : vector<8x16xf32>
      %674 = arith.addf %666, %673 : vector<8x16xf32>
      %c0_414 = arith.constant 0 : index
      %c7_415 = arith.constant 7 : index
      %c4_416 = arith.constant 4 : index
      %675 = vector.load %arg6[%c0_414, %c7_415, %c4_416] : memref<1x11x11xf32, #tpu.memory_space<vmem>>, vector<1x1x1xf32>
      %676 = vector.shape_cast %675 : vector<1x1x1xf32> to vector<1x1xf32>
      %c7_i32_417 = arith.constant 7 : i32
      %677 = arith.addi %25, %c7_i32_417 : i32
      %678 = arith.index_cast %677 : i32 to index
      %c4_418 = arith.constant 4 : index
      %679 = vector.load %arg9[%678, %c4_418] : memref<26x26xf32, #tpu.memory_space<vmem>>, vector<8x16xf32>
      %680 = vector.broadcast %676 : vector<1x1xf32> to vector<8x16xf32>
      %681 = arith.mulf %680, %679 : vector<8x16xf32>
      %682 = arith.addf %674, %681 : vector<8x16xf32>
      %c0_419 = arith.constant 0 : index
      %c7_420 = arith.constant 7 : index
      %c5_421 = arith.constant 5 : index
      %683 = vector.load %arg6[%c0_419, %c7_420, %c5_421] : memref<1x11x11xf32, #tpu.memory_space<vmem>>, vector<1x1x1xf32>
      %684 = vector.shape_cast %683 : vector<1x1x1xf32> to vector<1x1xf32>
      %c7_i32_422 = arith.constant 7 : i32
      %685 = arith.addi %25, %c7_i32_422 : i32
      %686 = arith.index_cast %685 : i32 to index
      %c5_423 = arith.constant 5 : index
      %687 = vector.load %arg9[%686, %c5_423] : memref<26x26xf32, #tpu.memory_space<vmem>>, vector<8x16xf32>
      %688 = vector.broadcast %684 : vector<1x1xf32> to vector<8x16xf32>
      %689 = arith.mulf %688, %687 : vector<8x16xf32>
      %690 = arith.addf %682, %689 : vector<8x16xf32>
      %c0_424 = arith.constant 0 : index
      %c7_425 = arith.constant 7 : index
      %c6_426 = arith.constant 6 : index
      %691 = vector.load %arg6[%c0_424, %c7_425, %c6_426] : memref<1x11x11xf32, #tpu.memory_space<vmem>>, vector<1x1x1xf32>
      %692 = vector.shape_cast %691 : vector<1x1x1xf32> to vector<1x1xf32>
      %c7_i32_427 = arith.constant 7 : i32
      %693 = arith.addi %25, %c7_i32_427 : i32
      %694 = arith.index_cast %693 : i32 to index
      %c6_428 = arith.constant 6 : index
      %695 = vector.load %arg9[%694, %c6_428] : memref<26x26xf32, #tpu.memory_space<vmem>>, vector<8x16xf32>
      %696 = vector.broadcast %692 : vector<1x1xf32> to vector<8x16xf32>
      %697 = arith.mulf %696, %695 : vector<8x16xf32>
      %698 = arith.addf %690, %697 : vector<8x16xf32>
      %c0_429 = arith.constant 0 : index
      %c7_430 = arith.constant 7 : index
      %c7_431 = arith.constant 7 : index
      %699 = vector.load %arg6[%c0_429, %c7_430, %c7_431] : memref<1x11x11xf32, #tpu.memory_space<vmem>>, vector<1x1x1xf32>
      %700 = vector.shape_cast %699 : vector<1x1x1xf32> to vector<1x1xf32>
      %c7_i32_432 = arith.constant 7 : i32
      %701 = arith.addi %25, %c7_i32_432 : i32
      %702 = arith.index_cast %701 : i32 to index
      %c7_433 = arith.constant 7 : index
      %703 = vector.load %arg9[%702, %c7_433] : memref<26x26xf32, #tpu.memory_space<vmem>>, vector<8x16xf32>
      %704 = vector.broadcast %700 : vector<1x1xf32> to vector<8x16xf32>
      %705 = arith.mulf %704, %703 : vector<8x16xf32>
      %706 = arith.addf %698, %705 : vector<8x16xf32>
      %c0_434 = arith.constant 0 : index
      %c7_435 = arith.constant 7 : index
      %c8_436 = arith.constant 8 : index
      %707 = vector.load %arg6[%c0_434, %c7_435, %c8_436] : memref<1x11x11xf32, #tpu.memory_space<vmem>>, vector<1x1x1xf32>
      %708 = vector.shape_cast %707 : vector<1x1x1xf32> to vector<1x1xf32>
      %c7_i32_437 = arith.constant 7 : i32
      %709 = arith.addi %25, %c7_i32_437 : i32
      %710 = arith.index_cast %709 : i32 to index
      %c8_438 = arith.constant 8 : index
      %711 = vector.load %arg9[%710, %c8_438] : memref<26x26xf32, #tpu.memory_space<vmem>>, vector<8x16xf32>
      %712 = vector.broadcast %708 : vector<1x1xf32> to vector<8x16xf32>
      %713 = arith.mulf %712, %711 : vector<8x16xf32>
      %714 = arith.addf %706, %713 : vector<8x16xf32>
      %c0_439 = arith.constant 0 : index
      %c7_440 = arith.constant 7 : index
      %c9_441 = arith.constant 9 : index
      %715 = vector.load %arg6[%c0_439, %c7_440, %c9_441] : memref<1x11x11xf32, #tpu.memory_space<vmem>>, vector<1x1x1xf32>
      %716 = vector.shape_cast %715 : vector<1x1x1xf32> to vector<1x1xf32>
      %c7_i32_442 = arith.constant 7 : i32
      %717 = arith.addi %25, %c7_i32_442 : i32
      %718 = arith.index_cast %717 : i32 to index
      %c9_443 = arith.constant 9 : index
      %719 = vector.load %arg9[%718, %c9_443] : memref<26x26xf32, #tpu.memory_space<vmem>>, vector<8x16xf32>
      %720 = vector.broadcast %716 : vector<1x1xf32> to vector<8x16xf32>
      %721 = arith.mulf %720, %719 : vector<8x16xf32>
      %722 = arith.addf %714, %721 : vector<8x16xf32>
      %c0_444 = arith.constant 0 : index
      %c7_445 = arith.constant 7 : index
      %c10_446 = arith.constant 10 : index
      %723 = vector.load %arg6[%c0_444, %c7_445, %c10_446] : memref<1x11x11xf32, #tpu.memory_space<vmem>>, vector<1x1x1xf32>
      %724 = vector.shape_cast %723 : vector<1x1x1xf32> to vector<1x1xf32>
      %c7_i32_447 = arith.constant 7 : i32
      %725 = arith.addi %25, %c7_i32_447 : i32
      %726 = arith.index_cast %725 : i32 to index
      %c10_448 = arith.constant 10 : index
      %727 = vector.load %arg9[%726, %c10_448] : memref<26x26xf32, #tpu.memory_space<vmem>>, vector<8x16xf32>
      %728 = vector.broadcast %724 : vector<1x1xf32> to vector<8x16xf32>
      %729 = arith.mulf %728, %727 : vector<8x16xf32>
      %730 = arith.addf %722, %729 : vector<8x16xf32>
      %c0_449 = arith.constant 0 : index
      %c8_450 = arith.constant 8 : index
      %c0_451 = arith.constant 0 : index
      %731 = vector.load %arg6[%c0_449, %c8_450, %c0_451] : memref<1x11x11xf32, #tpu.memory_space<vmem>>, vector<1x1x1xf32>
      %732 = vector.shape_cast %731 : vector<1x1x1xf32> to vector<1x1xf32>
      %c8_i32_452 = arith.constant 8 : i32
      %733 = arith.addi %25, %c8_i32_452 : i32
      %734 = arith.index_cast %733 : i32 to index
      %c0_453 = arith.constant 0 : index
      %735 = vector.load %arg9[%734, %c0_453] : memref<26x26xf32, #tpu.memory_space<vmem>>, vector<8x16xf32>
      %736 = vector.broadcast %732 : vector<1x1xf32> to vector<8x16xf32>
      %737 = arith.mulf %736, %735 : vector<8x16xf32>
      %738 = arith.addf %730, %737 : vector<8x16xf32>
      %c0_454 = arith.constant 0 : index
      %c8_455 = arith.constant 8 : index
      %c1_456 = arith.constant 1 : index
      %739 = vector.load %arg6[%c0_454, %c8_455, %c1_456] : memref<1x11x11xf32, #tpu.memory_space<vmem>>, vector<1x1x1xf32>
      %740 = vector.shape_cast %739 : vector<1x1x1xf32> to vector<1x1xf32>
      %c8_i32_457 = arith.constant 8 : i32
      %741 = arith.addi %25, %c8_i32_457 : i32
      %742 = arith.index_cast %741 : i32 to index
      %c1_458 = arith.constant 1 : index
      %743 = vector.load %arg9[%742, %c1_458] : memref<26x26xf32, #tpu.memory_space<vmem>>, vector<8x16xf32>
      %744 = vector.broadcast %740 : vector<1x1xf32> to vector<8x16xf32>
      %745 = arith.mulf %744, %743 : vector<8x16xf32>
      %746 = arith.addf %738, %745 : vector<8x16xf32>
      %c0_459 = arith.constant 0 : index
      %c8_460 = arith.constant 8 : index
      %c2_461 = arith.constant 2 : index
      %747 = vector.load %arg6[%c0_459, %c8_460, %c2_461] : memref<1x11x11xf32, #tpu.memory_space<vmem>>, vector<1x1x1xf32>
      %748 = vector.shape_cast %747 : vector<1x1x1xf32> to vector<1x1xf32>
      %c8_i32_462 = arith.constant 8 : i32
      %749 = arith.addi %25, %c8_i32_462 : i32
      %750 = arith.index_cast %749 : i32 to index
      %c2_463 = arith.constant 2 : index
      %751 = vector.load %arg9[%750, %c2_463] : memref<26x26xf32, #tpu.memory_space<vmem>>, vector<8x16xf32>
      %752 = vector.broadcast %748 : vector<1x1xf32> to vector<8x16xf32>
      %753 = arith.mulf %752, %751 : vector<8x16xf32>
      %754 = arith.addf %746, %753 : vector<8x16xf32>
      %c0_464 = arith.constant 0 : index
      %c8_465 = arith.constant 8 : index
      %c3_466 = arith.constant 3 : index
      %755 = vector.load %arg6[%c0_464, %c8_465, %c3_466] : memref<1x11x11xf32, #tpu.memory_space<vmem>>, vector<1x1x1xf32>
      %756 = vector.shape_cast %755 : vector<1x1x1xf32> to vector<1x1xf32>
      %c8_i32_467 = arith.constant 8 : i32
      %757 = arith.addi %25, %c8_i32_467 : i32
      %758 = arith.index_cast %757 : i32 to index
      %c3_468 = arith.constant 3 : index
      %759 = vector.load %arg9[%758, %c3_468] : memref<26x26xf32, #tpu.memory_space<vmem>>, vector<8x16xf32>
      %760 = vector.broadcast %756 : vector<1x1xf32> to vector<8x16xf32>
      %761 = arith.mulf %760, %759 : vector<8x16xf32>
      %762 = arith.addf %754, %761 : vector<8x16xf32>
      %c0_469 = arith.constant 0 : index
      %c8_470 = arith.constant 8 : index
      %c4_471 = arith.constant 4 : index
      %763 = vector.load %arg6[%c0_469, %c8_470, %c4_471] : memref<1x11x11xf32, #tpu.memory_space<vmem>>, vector<1x1x1xf32>
      %764 = vector.shape_cast %763 : vector<1x1x1xf32> to vector<1x1xf32>
      %c8_i32_472 = arith.constant 8 : i32
      %765 = arith.addi %25, %c8_i32_472 : i32
      %766 = arith.index_cast %765 : i32 to index
      %c4_473 = arith.constant 4 : index
      %767 = vector.load %arg9[%766, %c4_473] : memref<26x26xf32, #tpu.memory_space<vmem>>, vector<8x16xf32>
      %768 = vector.broadcast %764 : vector<1x1xf32> to vector<8x16xf32>
      %769 = arith.mulf %768, %767 : vector<8x16xf32>
      %770 = arith.addf %762, %769 : vector<8x16xf32>
      %c0_474 = arith.constant 0 : index
      %c8_475 = arith.constant 8 : index
      %c5_476 = arith.constant 5 : index
      %771 = vector.load %arg6[%c0_474, %c8_475, %c5_476] : memref<1x11x11xf32, #tpu.memory_space<vmem>>, vector<1x1x1xf32>
      %772 = vector.shape_cast %771 : vector<1x1x1xf32> to vector<1x1xf32>
      %c8_i32_477 = arith.constant 8 : i32
      %773 = arith.addi %25, %c8_i32_477 : i32
      %774 = arith.index_cast %773 : i32 to index
      %c5_478 = arith.constant 5 : index
      %775 = vector.load %arg9[%774, %c5_478] : memref<26x26xf32, #tpu.memory_space<vmem>>, vector<8x16xf32>
      %776 = vector.broadcast %772 : vector<1x1xf32> to vector<8x16xf32>
      %777 = arith.mulf %776, %775 : vector<8x16xf32>
      %778 = arith.addf %770, %777 : vector<8x16xf32>
      %c0_479 = arith.constant 0 : index
      %c8_480 = arith.constant 8 : index
      %c6_481 = arith.constant 6 : index
      %779 = vector.load %arg6[%c0_479, %c8_480, %c6_481] : memref<1x11x11xf32, #tpu.memory_space<vmem>>, vector<1x1x1xf32>
      %780 = vector.shape_cast %779 : vector<1x1x1xf32> to vector<1x1xf32>
      %c8_i32_482 = arith.constant 8 : i32
      %781 = arith.addi %25, %c8_i32_482 : i32
      %782 = arith.index_cast %781 : i32 to index
      %c6_483 = arith.constant 6 : index
      %783 = vector.load %arg9[%782, %c6_483] : memref<26x26xf32, #tpu.memory_space<vmem>>, vector<8x16xf32>
      %784 = vector.broadcast %780 : vector<1x1xf32> to vector<8x16xf32>
      %785 = arith.mulf %784, %783 : vector<8x16xf32>
      %786 = arith.addf %778, %785 : vector<8x16xf32>
      %c0_484 = arith.constant 0 : index
      %c8_485 = arith.constant 8 : index
      %c7_486 = arith.constant 7 : index
      %787 = vector.load %arg6[%c0_484, %c8_485, %c7_486] : memref<1x11x11xf32, #tpu.memory_space<vmem>>, vector<1x1x1xf32>
      %788 = vector.shape_cast %787 : vector<1x1x1xf32> to vector<1x1xf32>
      %c8_i32_487 = arith.constant 8 : i32
      %789 = arith.addi %25, %c8_i32_487 : i32
      %790 = arith.index_cast %789 : i32 to index
      %c7_488 = arith.constant 7 : index
      %791 = vector.load %arg9[%790, %c7_488] : memref<26x26xf32, #tpu.memory_space<vmem>>, vector<8x16xf32>
      %792 = vector.broadcast %788 : vector<1x1xf32> to vector<8x16xf32>
      %793 = arith.mulf %792, %791 : vector<8x16xf32>
      %794 = arith.addf %786, %793 : vector<8x16xf32>
      %c0_489 = arith.constant 0 : index
      %c8_490 = arith.constant 8 : index
      %c8_491 = arith.constant 8 : index
      %795 = vector.load %arg6[%c0_489, %c8_490, %c8_491] : memref<1x11x11xf32, #tpu.memory_space<vmem>>, vector<1x1x1xf32>
      %796 = vector.shape_cast %795 : vector<1x1x1xf32> to vector<1x1xf32>
      %c8_i32_492 = arith.constant 8 : i32
      %797 = arith.addi %25, %c8_i32_492 : i32
      %798 = arith.index_cast %797 : i32 to index
      %c8_493 = arith.constant 8 : index
      %799 = vector.load %arg9[%798, %c8_493] : memref<26x26xf32, #tpu.memory_space<vmem>>, vector<8x16xf32>
      %800 = vector.broadcast %796 : vector<1x1xf32> to vector<8x16xf32>
      %801 = arith.mulf %800, %799 : vector<8x16xf32>
      %802 = arith.addf %794, %801 : vector<8x16xf32>
      %c0_494 = arith.constant 0 : index
      %c8_495 = arith.constant 8 : index
      %c9_496 = arith.constant 9 : index
      %803 = vector.load %arg6[%c0_494, %c8_495, %c9_496] : memref<1x11x11xf32, #tpu.memory_space<vmem>>, vector<1x1x1xf32>
      %804 = vector.shape_cast %803 : vector<1x1x1xf32> to vector<1x1xf32>
      %c8_i32_497 = arith.constant 8 : i32
      %805 = arith.addi %25, %c8_i32_497 : i32
      %806 = arith.index_cast %805 : i32 to index
      %c9_498 = arith.constant 9 : index
      %807 = vector.load %arg9[%806, %c9_498] : memref<26x26xf32, #tpu.memory_space<vmem>>, vector<8x16xf32>
      %808 = vector.broadcast %804 : vector<1x1xf32> to vector<8x16xf32>
      %809 = arith.mulf %808, %807 : vector<8x16xf32>
      %810 = arith.addf %802, %809 : vector<8x16xf32>
      %c0_499 = arith.constant 0 : index
      %c8_500 = arith.constant 8 : index
      %c10_501 = arith.constant 10 : index
      %811 = vector.load %arg6[%c0_499, %c8_500, %c10_501] : memref<1x11x11xf32, #tpu.memory_space<vmem>>, vector<1x1x1xf32>
      %812 = vector.shape_cast %811 : vector<1x1x1xf32> to vector<1x1xf32>
      %c8_i32_502 = arith.constant 8 : i32
      %813 = arith.addi %25, %c8_i32_502 : i32
      %814 = arith.index_cast %813 : i32 to index
      %c10_503 = arith.constant 10 : index
      %815 = vector.load %arg9[%814, %c10_503] : memref<26x26xf32, #tpu.memory_space<vmem>>, vector<8x16xf32>
      %816 = vector.broadcast %812 : vector<1x1xf32> to vector<8x16xf32>
      %817 = arith.mulf %816, %815 : vector<8x16xf32>
      %818 = arith.addf %810, %817 : vector<8x16xf32>
      %c0_504 = arith.constant 0 : index
      %c9_505 = arith.constant 9 : index
      %c0_506 = arith.constant 0 : index
      %819 = vector.load %arg6[%c0_504, %c9_505, %c0_506] : memref<1x11x11xf32, #tpu.memory_space<vmem>>, vector<1x1x1xf32>
      %820 = vector.shape_cast %819 : vector<1x1x1xf32> to vector<1x1xf32>
      %c9_i32 = arith.constant 9 : i32
      %821 = arith.addi %25, %c9_i32 : i32
      %822 = arith.index_cast %821 : i32 to index
      %c0_507 = arith.constant 0 : index
      %823 = vector.load %arg9[%822, %c0_507] : memref<26x26xf32, #tpu.memory_space<vmem>>, vector<8x16xf32>
      %824 = vector.broadcast %820 : vector<1x1xf32> to vector<8x16xf32>
      %825 = arith.mulf %824, %823 : vector<8x16xf32>
      %826 = arith.addf %818, %825 : vector<8x16xf32>
      %c0_508 = arith.constant 0 : index
      %c9_509 = arith.constant 9 : index
      %c1_510 = arith.constant 1 : index
      %827 = vector.load %arg6[%c0_508, %c9_509, %c1_510] : memref<1x11x11xf32, #tpu.memory_space<vmem>>, vector<1x1x1xf32>
      %828 = vector.shape_cast %827 : vector<1x1x1xf32> to vector<1x1xf32>
      %c9_i32_511 = arith.constant 9 : i32
      %829 = arith.addi %25, %c9_i32_511 : i32
      %830 = arith.index_cast %829 : i32 to index
      %c1_512 = arith.constant 1 : index
      %831 = vector.load %arg9[%830, %c1_512] : memref<26x26xf32, #tpu.memory_space<vmem>>, vector<8x16xf32>
      %832 = vector.broadcast %828 : vector<1x1xf32> to vector<8x16xf32>
      %833 = arith.mulf %832, %831 : vector<8x16xf32>
      %834 = arith.addf %826, %833 : vector<8x16xf32>
      %c0_513 = arith.constant 0 : index
      %c9_514 = arith.constant 9 : index
      %c2_515 = arith.constant 2 : index
      %835 = vector.load %arg6[%c0_513, %c9_514, %c2_515] : memref<1x11x11xf32, #tpu.memory_space<vmem>>, vector<1x1x1xf32>
      %836 = vector.shape_cast %835 : vector<1x1x1xf32> to vector<1x1xf32>
      %c9_i32_516 = arith.constant 9 : i32
      %837 = arith.addi %25, %c9_i32_516 : i32
      %838 = arith.index_cast %837 : i32 to index
      %c2_517 = arith.constant 2 : index
      %839 = vector.load %arg9[%838, %c2_517] : memref<26x26xf32, #tpu.memory_space<vmem>>, vector<8x16xf32>
      %840 = vector.broadcast %836 : vector<1x1xf32> to vector<8x16xf32>
      %841 = arith.mulf %840, %839 : vector<8x16xf32>
      %842 = arith.addf %834, %841 : vector<8x16xf32>
      %c0_518 = arith.constant 0 : index
      %c9_519 = arith.constant 9 : index
      %c3_520 = arith.constant 3 : index
      %843 = vector.load %arg6[%c0_518, %c9_519, %c3_520] : memref<1x11x11xf32, #tpu.memory_space<vmem>>, vector<1x1x1xf32>
      %844 = vector.shape_cast %843 : vector<1x1x1xf32> to vector<1x1xf32>
      %c9_i32_521 = arith.constant 9 : i32
      %845 = arith.addi %25, %c9_i32_521 : i32
      %846 = arith.index_cast %845 : i32 to index
      %c3_522 = arith.constant 3 : index
      %847 = vector.load %arg9[%846, %c3_522] : memref<26x26xf32, #tpu.memory_space<vmem>>, vector<8x16xf32>
      %848 = vector.broadcast %844 : vector<1x1xf32> to vector<8x16xf32>
      %849 = arith.mulf %848, %847 : vector<8x16xf32>
      %850 = arith.addf %842, %849 : vector<8x16xf32>
      %c0_523 = arith.constant 0 : index
      %c9_524 = arith.constant 9 : index
      %c4_525 = arith.constant 4 : index
      %851 = vector.load %arg6[%c0_523, %c9_524, %c4_525] : memref<1x11x11xf32, #tpu.memory_space<vmem>>, vector<1x1x1xf32>
      %852 = vector.shape_cast %851 : vector<1x1x1xf32> to vector<1x1xf32>
      %c9_i32_526 = arith.constant 9 : i32
      %853 = arith.addi %25, %c9_i32_526 : i32
      %854 = arith.index_cast %853 : i32 to index
      %c4_527 = arith.constant 4 : index
      %855 = vector.load %arg9[%854, %c4_527] : memref<26x26xf32, #tpu.memory_space<vmem>>, vector<8x16xf32>
      %856 = vector.broadcast %852 : vector<1x1xf32> to vector<8x16xf32>
      %857 = arith.mulf %856, %855 : vector<8x16xf32>
      %858 = arith.addf %850, %857 : vector<8x16xf32>
      %c0_528 = arith.constant 0 : index
      %c9_529 = arith.constant 9 : index
      %c5_530 = arith.constant 5 : index
      %859 = vector.load %arg6[%c0_528, %c9_529, %c5_530] : memref<1x11x11xf32, #tpu.memory_space<vmem>>, vector<1x1x1xf32>
      %860 = vector.shape_cast %859 : vector<1x1x1xf32> to vector<1x1xf32>
      %c9_i32_531 = arith.constant 9 : i32
      %861 = arith.addi %25, %c9_i32_531 : i32
      %862 = arith.index_cast %861 : i32 to index
      %c5_532 = arith.constant 5 : index
      %863 = vector.load %arg9[%862, %c5_532] : memref<26x26xf32, #tpu.memory_space<vmem>>, vector<8x16xf32>
      %864 = vector.broadcast %860 : vector<1x1xf32> to vector<8x16xf32>
      %865 = arith.mulf %864, %863 : vector<8x16xf32>
      %866 = arith.addf %858, %865 : vector<8x16xf32>
      %c0_533 = arith.constant 0 : index
      %c9_534 = arith.constant 9 : index
      %c6_535 = arith.constant 6 : index
      %867 = vector.load %arg6[%c0_533, %c9_534, %c6_535] : memref<1x11x11xf32, #tpu.memory_space<vmem>>, vector<1x1x1xf32>
      %868 = vector.shape_cast %867 : vector<1x1x1xf32> to vector<1x1xf32>
      %c9_i32_536 = arith.constant 9 : i32
      %869 = arith.addi %25, %c9_i32_536 : i32
      %870 = arith.index_cast %869 : i32 to index
      %c6_537 = arith.constant 6 : index
      %871 = vector.load %arg9[%870, %c6_537] : memref<26x26xf32, #tpu.memory_space<vmem>>, vector<8x16xf32>
      %872 = vector.broadcast %868 : vector<1x1xf32> to vector<8x16xf32>
      %873 = arith.mulf %872, %871 : vector<8x16xf32>
      %874 = arith.addf %866, %873 : vector<8x16xf32>
      %c0_538 = arith.constant 0 : index
      %c9_539 = arith.constant 9 : index
      %c7_540 = arith.constant 7 : index
      %875 = vector.load %arg6[%c0_538, %c9_539, %c7_540] : memref<1x11x11xf32, #tpu.memory_space<vmem>>, vector<1x1x1xf32>
      %876 = vector.shape_cast %875 : vector<1x1x1xf32> to vector<1x1xf32>
      %c9_i32_541 = arith.constant 9 : i32
      %877 = arith.addi %25, %c9_i32_541 : i32
      %878 = arith.index_cast %877 : i32 to index
      %c7_542 = arith.constant 7 : index
      %879 = vector.load %arg9[%878, %c7_542] : memref<26x26xf32, #tpu.memory_space<vmem>>, vector<8x16xf32>
      %880 = vector.broadcast %876 : vector<1x1xf32> to vector<8x16xf32>
      %881 = arith.mulf %880, %879 : vector<8x16xf32>
      %882 = arith.addf %874, %881 : vector<8x16xf32>
      %c0_543 = arith.constant 0 : index
      %c9_544 = arith.constant 9 : index
      %c8_545 = arith.constant 8 : index
      %883 = vector.load %arg6[%c0_543, %c9_544, %c8_545] : memref<1x11x11xf32, #tpu.memory_space<vmem>>, vector<1x1x1xf32>
      %884 = vector.shape_cast %883 : vector<1x1x1xf32> to vector<1x1xf32>
      %c9_i32_546 = arith.constant 9 : i32
      %885 = arith.addi %25, %c9_i32_546 : i32
      %886 = arith.index_cast %885 : i32 to index
      %c8_547 = arith.constant 8 : index
      %887 = vector.load %arg9[%886, %c8_547] : memref<26x26xf32, #tpu.memory_space<vmem>>, vector<8x16xf32>
      %888 = vector.broadcast %884 : vector<1x1xf32> to vector<8x16xf32>
      %889 = arith.mulf %888, %887 : vector<8x16xf32>
      %890 = arith.addf %882, %889 : vector<8x16xf32>
      %c0_548 = arith.constant 0 : index
      %c9_549 = arith.constant 9 : index
      %c9_550 = arith.constant 9 : index
      %891 = vector.load %arg6[%c0_548, %c9_549, %c9_550] : memref<1x11x11xf32, #tpu.memory_space<vmem>>, vector<1x1x1xf32>
      %892 = vector.shape_cast %891 : vector<1x1x1xf32> to vector<1x1xf32>
      %c9_i32_551 = arith.constant 9 : i32
      %893 = arith.addi %25, %c9_i32_551 : i32
      %894 = arith.index_cast %893 : i32 to index
      %c9_552 = arith.constant 9 : index
      %895 = vector.load %arg9[%894, %c9_552] : memref<26x26xf32, #tpu.memory_space<vmem>>, vector<8x16xf32>
      %896 = vector.broadcast %892 : vector<1x1xf32> to vector<8x16xf32>
      %897 = arith.mulf %896, %895 : vector<8x16xf32>
      %898 = arith.addf %890, %897 : vector<8x16xf32>
      %c0_553 = arith.constant 0 : index
      %c9_554 = arith.constant 9 : index
      %c10_555 = arith.constant 10 : index
      %899 = vector.load %arg6[%c0_553, %c9_554, %c10_555] : memref<1x11x11xf32, #tpu.memory_space<vmem>>, vector<1x1x1xf32>
      %900 = vector.shape_cast %899 : vector<1x1x1xf32> to vector<1x1xf32>
      %c9_i32_556 = arith.constant 9 : i32
      %901 = arith.addi %25, %c9_i32_556 : i32
      %902 = arith.index_cast %901 : i32 to index
      %c10_557 = arith.constant 10 : index
      %903 = vector.load %arg9[%902, %c10_557] : memref<26x26xf32, #tpu.memory_space<vmem>>, vector<8x16xf32>
      %904 = vector.broadcast %900 : vector<1x1xf32> to vector<8x16xf32>
      %905 = arith.mulf %904, %903 : vector<8x16xf32>
      %906 = arith.addf %898, %905 : vector<8x16xf32>
      %c0_558 = arith.constant 0 : index
      %c10_559 = arith.constant 10 : index
      %c0_560 = arith.constant 0 : index
      %907 = vector.load %arg6[%c0_558, %c10_559, %c0_560] : memref<1x11x11xf32, #tpu.memory_space<vmem>>, vector<1x1x1xf32>
      %908 = vector.shape_cast %907 : vector<1x1x1xf32> to vector<1x1xf32>
      %c10_i32 = arith.constant 10 : i32
      %909 = arith.addi %25, %c10_i32 : i32
      %910 = arith.index_cast %909 : i32 to index
      %c0_561 = arith.constant 0 : index
      %911 = vector.load %arg9[%910, %c0_561] : memref<26x26xf32, #tpu.memory_space<vmem>>, vector<8x16xf32>
      %912 = vector.broadcast %908 : vector<1x1xf32> to vector<8x16xf32>
      %913 = arith.mulf %912, %911 : vector<8x16xf32>
      %914 = arith.addf %906, %913 : vector<8x16xf32>
      %c0_562 = arith.constant 0 : index
      %c10_563 = arith.constant 10 : index
      %c1_564 = arith.constant 1 : index
      %915 = vector.load %arg6[%c0_562, %c10_563, %c1_564] : memref<1x11x11xf32, #tpu.memory_space<vmem>>, vector<1x1x1xf32>
      %916 = vector.shape_cast %915 : vector<1x1x1xf32> to vector<1x1xf32>
      %c10_i32_565 = arith.constant 10 : i32
      %917 = arith.addi %25, %c10_i32_565 : i32
      %918 = arith.index_cast %917 : i32 to index
      %c1_566 = arith.constant 1 : index
      %919 = vector.load %arg9[%918, %c1_566] : memref<26x26xf32, #tpu.memory_space<vmem>>, vector<8x16xf32>
      %920 = vector.broadcast %916 : vector<1x1xf32> to vector<8x16xf32>
      %921 = arith.mulf %920, %919 : vector<8x16xf32>
      %922 = arith.addf %914, %921 : vector<8x16xf32>
      %c0_567 = arith.constant 0 : index
      %c10_568 = arith.constant 10 : index
      %c2_569 = arith.constant 2 : index
      %923 = vector.load %arg6[%c0_567, %c10_568, %c2_569] : memref<1x11x11xf32, #tpu.memory_space<vmem>>, vector<1x1x1xf32>
      %924 = vector.shape_cast %923 : vector<1x1x1xf32> to vector<1x1xf32>
      %c10_i32_570 = arith.constant 10 : i32
      %925 = arith.addi %25, %c10_i32_570 : i32
      %926 = arith.index_cast %925 : i32 to index
      %c2_571 = arith.constant 2 : index
      %927 = vector.load %arg9[%926, %c2_571] : memref<26x26xf32, #tpu.memory_space<vmem>>, vector<8x16xf32>
      %928 = vector.broadcast %924 : vector<1x1xf32> to vector<8x16xf32>
      %929 = arith.mulf %928, %927 : vector<8x16xf32>
      %930 = arith.addf %922, %929 : vector<8x16xf32>
      %c0_572 = arith.constant 0 : index
      %c10_573 = arith.constant 10 : index
      %c3_574 = arith.constant 3 : index
      %931 = vector.load %arg6[%c0_572, %c10_573, %c3_574] : memref<1x11x11xf32, #tpu.memory_space<vmem>>, vector<1x1x1xf32>
      %932 = vector.shape_cast %931 : vector<1x1x1xf32> to vector<1x1xf32>
      %c10_i32_575 = arith.constant 10 : i32
      %933 = arith.addi %25, %c10_i32_575 : i32
      %934 = arith.index_cast %933 : i32 to index
      %c3_576 = arith.constant 3 : index
      %935 = vector.load %arg9[%934, %c3_576] : memref<26x26xf32, #tpu.memory_space<vmem>>, vector<8x16xf32>
      %936 = vector.broadcast %932 : vector<1x1xf32> to vector<8x16xf32>
      %937 = arith.mulf %936, %935 : vector<8x16xf32>
      %938 = arith.addf %930, %937 : vector<8x16xf32>
      %c0_577 = arith.constant 0 : index
      %c10_578 = arith.constant 10 : index
      %c4_579 = arith.constant 4 : index
      %939 = vector.load %arg6[%c0_577, %c10_578, %c4_579] : memref<1x11x11xf32, #tpu.memory_space<vmem>>, vector<1x1x1xf32>
      %940 = vector.shape_cast %939 : vector<1x1x1xf32> to vector<1x1xf32>
      %c10_i32_580 = arith.constant 10 : i32
      %941 = arith.addi %25, %c10_i32_580 : i32
      %942 = arith.index_cast %941 : i32 to index
      %c4_581 = arith.constant 4 : index
      %943 = vector.load %arg9[%942, %c4_581] : memref<26x26xf32, #tpu.memory_space<vmem>>, vector<8x16xf32>
      %944 = vector.broadcast %940 : vector<1x1xf32> to vector<8x16xf32>
      %945 = arith.mulf %944, %943 : vector<8x16xf32>
      %946 = arith.addf %938, %945 : vector<8x16xf32>
      %c0_582 = arith.constant 0 : index
      %c10_583 = arith.constant 10 : index
      %c5_584 = arith.constant 5 : index
      %947 = vector.load %arg6[%c0_582, %c10_583, %c5_584] : memref<1x11x11xf32, #tpu.memory_space<vmem>>, vector<1x1x1xf32>
      %948 = vector.shape_cast %947 : vector<1x1x1xf32> to vector<1x1xf32>
      %c10_i32_585 = arith.constant 10 : i32
      %949 = arith.addi %25, %c10_i32_585 : i32
      %950 = arith.index_cast %949 : i32 to index
      %c5_586 = arith.constant 5 : index
      %951 = vector.load %arg9[%950, %c5_586] : memref<26x26xf32, #tpu.memory_space<vmem>>, vector<8x16xf32>
      %952 = vector.broadcast %948 : vector<1x1xf32> to vector<8x16xf32>
      %953 = arith.mulf %952, %951 : vector<8x16xf32>
      %954 = arith.addf %946, %953 : vector<8x16xf32>
      %c0_587 = arith.constant 0 : index
      %c10_588 = arith.constant 10 : index
      %c6_589 = arith.constant 6 : index
      %955 = vector.load %arg6[%c0_587, %c10_588, %c6_589] : memref<1x11x11xf32, #tpu.memory_space<vmem>>, vector<1x1x1xf32>
      %956 = vector.shape_cast %955 : vector<1x1x1xf32> to vector<1x1xf32>
      %c10_i32_590 = arith.constant 10 : i32
      %957 = arith.addi %25, %c10_i32_590 : i32
      %958 = arith.index_cast %957 : i32 to index
      %c6_591 = arith.constant 6 : index
      %959 = vector.load %arg9[%958, %c6_591] : memref<26x26xf32, #tpu.memory_space<vmem>>, vector<8x16xf32>
      %960 = vector.broadcast %956 : vector<1x1xf32> to vector<8x16xf32>
      %961 = arith.mulf %960, %959 : vector<8x16xf32>
      %962 = arith.addf %954, %961 : vector<8x16xf32>
      %c0_592 = arith.constant 0 : index
      %c10_593 = arith.constant 10 : index
      %c7_594 = arith.constant 7 : index
      %963 = vector.load %arg6[%c0_592, %c10_593, %c7_594] : memref<1x11x11xf32, #tpu.memory_space<vmem>>, vector<1x1x1xf32>
      %964 = vector.shape_cast %963 : vector<1x1x1xf32> to vector<1x1xf32>
      %c10_i32_595 = arith.constant 10 : i32
      %965 = arith.addi %25, %c10_i32_595 : i32
      %966 = arith.index_cast %965 : i32 to index
      %c7_596 = arith.constant 7 : index
      %967 = vector.load %arg9[%966, %c7_596] : memref<26x26xf32, #tpu.memory_space<vmem>>, vector<8x16xf32>
      %968 = vector.broadcast %964 : vector<1x1xf32> to vector<8x16xf32>
      %969 = arith.mulf %968, %967 : vector<8x16xf32>
      %970 = arith.addf %962, %969 : vector<8x16xf32>
      %c0_597 = arith.constant 0 : index
      %c10_598 = arith.constant 10 : index
      %c8_599 = arith.constant 8 : index
      %971 = vector.load %arg6[%c0_597, %c10_598, %c8_599] : memref<1x11x11xf32, #tpu.memory_space<vmem>>, vector<1x1x1xf32>
      %972 = vector.shape_cast %971 : vector<1x1x1xf32> to vector<1x1xf32>
      %c10_i32_600 = arith.constant 10 : i32
      %973 = arith.addi %25, %c10_i32_600 : i32
      %974 = arith.index_cast %973 : i32 to index
      %c8_601 = arith.constant 8 : index
      %975 = vector.load %arg9[%974, %c8_601] : memref<26x26xf32, #tpu.memory_space<vmem>>, vector<8x16xf32>
      %976 = vector.broadcast %972 : vector<1x1xf32> to vector<8x16xf32>
      %977 = arith.mulf %976, %975 : vector<8x16xf32>
      %978 = arith.addf %970, %977 : vector<8x16xf32>
      %c0_602 = arith.constant 0 : index
      %c10_603 = arith.constant 10 : index
      %c9_604 = arith.constant 9 : index
      %979 = vector.load %arg6[%c0_602, %c10_603, %c9_604] : memref<1x11x11xf32, #tpu.memory_space<vmem>>, vector<1x1x1xf32>
      %980 = vector.shape_cast %979 : vector<1x1x1xf32> to vector<1x1xf32>
      %c10_i32_605 = arith.constant 10 : i32
      %981 = arith.addi %25, %c10_i32_605 : i32
      %982 = arith.index_cast %981 : i32 to index
      %c9_606 = arith.constant 9 : index
      %983 = vector.load %arg9[%982, %c9_606] : memref<26x26xf32, #tpu.memory_space<vmem>>, vector<8x16xf32>
      %984 = vector.broadcast %980 : vector<1x1xf32> to vector<8x16xf32>
      %985 = arith.mulf %984, %983 : vector<8x16xf32>
      %986 = arith.addf %978, %985 : vector<8x16xf32>
      %c0_607 = arith.constant 0 : index
      %c10_608 = arith.constant 10 : index
      %c10_609 = arith.constant 10 : index
      %987 = vector.load %arg6[%c0_607, %c10_608, %c10_609] : memref<1x11x11xf32, #tpu.memory_space<vmem>>, vector<1x1x1xf32>
      %988 = vector.shape_cast %987 : vector<1x1x1xf32> to vector<1x1xf32>
      %c10_i32_610 = arith.constant 10 : i32
      %989 = arith.addi %25, %c10_i32_610 : i32
      %990 = arith.index_cast %989 : i32 to index
      %c10_611 = arith.constant 10 : index
      %991 = vector.load %arg9[%990, %c10_611] : memref<26x26xf32, #tpu.memory_space<vmem>>, vector<8x16xf32>
      %992 = vector.broadcast %988 : vector<1x1xf32> to vector<8x16xf32>
      %993 = arith.mulf %992, %991 : vector<8x16xf32>
      %994 = arith.addf %986, %993 : vector<8x16xf32>
      %c0_612 = arith.constant 0 : index
      %c0_613 = arith.constant 0 : index
      %995 = arith.index_cast %25 : i32 to index
      %c0_614 = arith.constant 0 : index
      %996 = vector.load %arg3[%c0_612, %c0_613, %995, %c0_614] : memref<1x1x16x16xf32, #tpu.memory_space<vmem>>, vector<1x1x8x16xf32>
      %997 = vector.shape_cast %996 : vector<1x1x8x16xf32> to vector<8x16xf32>
      %998 = vector.broadcast %20 : vector<1x1xf32> to vector<8x16xf32>
      %999 = arith.addf %994, %998 : vector<8x16xf32>
      %cst_615 = arith.constant 0.000000e+00 : f32
      %1000 = vector.broadcast %cst_615 : f32 to vector<8x16xf32>
      %1001 = arith.subf %1000, %999 : vector<8x16xf32>
      %1002 = math.exp %1001 : vector<8x16xf32>
      %cst_616 = arith.constant 1.000000e+00 : f32
      %1003 = vector.broadcast %cst_616 : f32 to vector<8x16xf32>
      %1004 = arith.addf %1003, %1002 : vector<8x16xf32>
      %cst_617 = arith.constant 1.000000e+00 : f32
      %1005 = vector.broadcast %cst_617 : f32 to vector<8x16xf32>
      %1006 = arith.divf %1005, %1004 : vector<8x16xf32>
      %1007 = arith.mulf %1006, %997 : vector<8x16xf32>
      %c0_618 = arith.constant 0 : index
      %c0_619 = arith.constant 0 : index
      %1008 = arith.index_cast %25 : i32 to index
      %c0_620 = arith.constant 0 : index
      %1009 = vector.load %arg8[%c0_618, %c0_619, %1008, %c0_620] : memref<1x1x16x16xf32, #tpu.memory_space<vmem>>, vector<1x1x8x16xf32>
      %1010 = vector.shape_cast %1009 : vector<1x1x8x16xf32> to vector<8x16xf32>
      %1011 = vector.shape_cast %1007 : vector<8x16xf32> to vector<1x1x8x16xf32>
      tpu.vector_store %arg8[%c0_618, %c0_619, %1008, %c0_620], %1011 {strides = array<i32>} : memref<1x1x16x16xf32, #tpu.memory_space<vmem>>, vector<1x1x8x16xf32>,
    }
    %c2_i32_19 = arith.constant 2 : i32
    return
  }
  func.func @transform_0(%arg0: i32, %arg1: i32, %arg2: i32) -> (i32, i32, i32, i32) {
    %c0_i32 = arith.constant 0 : i32
    %c0_i32_0 = arith.constant 0 : i32
    return %arg0, %arg1, %arg2, %c0_i32 : i32, i32, i32, i32
  }
  func.func @transform_1(%arg0: i32, %arg1: i32, %arg2: i32) -> (i32, i32, i32, i32) {
    %c2_i32 = arith.constant 2 : i32
    %0 = arith.muli %arg2, %c2_i32 : i32
    %c1_i32 = arith.constant 1 : i32
    %1 = arith.subi %0, %c1_i32 : i32
    %c0_i32 = arith.constant 0 : i32
    %2 = arith.maxsi %1, %c0_i32 : i32
    %c0_i32_0 = arith.constant 0 : i32
    %c0_i32_1 = arith.constant 0 : i32
    return %arg0, %arg1, %2, %c0_i32_0 : i32, i32, i32, i32
  }
  func.func @transform_2(%arg0: i32, %arg1: i32, %arg2: i32) -> (i32, i32, i32, i32) {
    %c1_i32 = arith.constant 1 : i32
    %0 = arith.addi %arg2, %c1_i32 : i32
    %c2_i32 = arith.constant 2 : i32
    %1 = arith.muli %0, %c2_i32 : i32
    %c1_i32_0 = arith.constant 1 : i32
    %2 = arith.minsi %1, %c1_i32_0 : i32
    %c0_i32 = arith.constant 0 : i32
    %c0_i32_1 = arith.constant 0 : i32
    return %arg0, %arg1, %2, %c0_i32 : i32, i32, i32, i32
  }
  func.func @transform_3(%arg0: i32, %arg1: i32, %arg2: i32) -> (i32, i32, i32) {
    %c0_i32 = arith.constant 0 : i32
    %c0_i32_0 = arith.constant 0 : i32
    %c0_i32_1 = arith.constant 0 : i32
    return %arg1, %c0_i32, %c0_i32_0 : i32, i32, i32
  }
  func.func @transform_4(%arg0: i32, %arg1: i32, %arg2: i32) -> (i32, i32, i32) {
    %c0_i32 = arith.constant 0 : i32
    %c0_i32_0 = arith.constant 0 : i32
    %c0_i32_1 = arith.constant 0 : i32
    return %arg1, %c0_i32, %c0_i32_0 : i32, i32, i32
  }
  func.func @transform_5(%arg0: i32, %arg1: i32, %arg2: i32) -> (i32, i32, i32, i32) {
    %c0_i32 = arith.constant 0 : i32
    %c0_i32_0 = arith.constant 0 : i32
    return %arg0, %arg1, %arg2, %c0_i32 : i32, i32, i32, i32
  }
}

</mosaic_0001>

<llo_original>
// kernel: pixel_attention.1
$region0: #{pixel_attention.1}
  #allocation0 [shape = 'u32[]', space=smem, size = 0x4, offset = 0x4, fixed_abs, tag = 'smem constant byte address 0x4 - core index']
  #allocation1 [shape = 'u32[144,128]{1,0:T(1,128)}', space=vmem, size = 0x12000, scoped, tag = 'internal scratch']
  #allocation2 [shape = 'f32[26,26]{1,0:T(8,128)}', space=vmem, size = 0x4000, scoped, tag = 'scratch operand']
  %s0 = inlined_call_operand.hbm [shape: f32[2,4,16,16], index: 0, kind: input, shape index: {}, may-alias: {0,1,2}]
  %s1 = inlined_call_operand.hbm [shape: f32[2,4,16,16], index: 1, kind: input, shape index: {}, may-alias: {0,1,2}]
  %s2 = inlined_call_operand.hbm [shape: f32[2,4,16,16], index: 2, kind: input, shape index: {}, may-alias: {0,1,2}]
  %s3 = inlined_call_operand.vmem [shape: f32[4,11,11], index: 3, kind: input, shape index: {}]
  %s4 = inlined_call_operand.vmem [shape: f32[4,1,1], index: 4, kind: input, shape index: {}]
  %s5 = inlined_call_operand.hbm [shape: f32[2,4,16,16], index: 5, kind: output, shape index: {}]
  %s6 = sld [smem:[#allocation0]]
  $region88: #{pixel_attention.1} parent=0
    _
  %s8 = ssub.s32 1, %s6
  %s9 = scalar_select 0, %s8, %s6
  $region1: #{pixel_attention.1} parent=0
    #allocation3 [shape = 'u8[16384]{0}', space=vmem, size = 0x4000, scoped, tag = 'input window, operand 0']
    #allocation4 [shape = 's32[2]{0}', space=sflag, size = 0x8, scoped, tag = 'scoped memory for pixel_attention.1']
    #allocation5 [shape = 's32[2]{0}', space=sflag, size = 0x8, scoped, tag = 'scoped memory for pixel_attention.1']
    #allocation6 [shape = 'u8[8192]{0}', space=vmem, size = 0x2000, scoped, tag = 'input window, operand 1']
    #allocation7 [shape = 's32[2]{0}', space=sflag, size = 0x8, scoped, tag = 'scoped memory for pixel_attention.1']
    #allocation8 [shape = 'u8[8192]{0}', space=vmem, size = 0x2000, scoped, tag = 'input window, operand 2']
    #allocation9 [shape = 'u8[16384]{0}', space=vmem, size = 0x4000, scoped, tag = 'output window, operand 0']
    %10 = vsyncpa [#allocation4], 0
    %s11 = scalar_lea.sflag [#allocation4], 1
    %12 = vsyncpa %s11, 0
    %13 = vsyncpa [#allocation7], 0
    %s14 = scalar_lea.sflag [#allocation7], 1
    %15 = vsyncpa %s14, 0
    %16 = vsyncpa [#allocation5], 0
    %s17 = scalar_lea.sflag [#allocation5], 1
    %18 = vsyncpa %s17, 0
    loop: start=0, step=1, limit=10
    $region2: #{pixel_attention.1} parent=1 // loop_pre_header
      _
    $region3: #{pixel_attention.1} parent=1 // loop_header
      %s20 = sphi 0, %s24
      %p21 = scmp.ge.s32.totalorder %s20, 10
      %s27 = sphi 0, %s46
      %s28 = sphi 0, %s42
      %s29 = sphi 0, %s38
      %s30 = sphi 0, %s27
      %s31 = sphi 0, %s28
      %s32 = sphi 0, %s29
      %s33 = sphi 0, %s30
      %s34 = sphi 0, %s31
      %s35 = sphi 0, %s32
      %s53 = sphi 0, %s55
      %s56 = sphi 0, %s53
      %s57 = sphi 0, %s56
      %s73 = sphi 0, %s57
      %s91 = sphi 0, %s93
      %s94 = sphi 0, %s91
      %s95 = sphi 0, %s94
      %s111 = sphi 0, %s95
      %s129 = sphi 0, %s131
      %s132 = sphi 0, %s129
      %s133 = sphi 0, %s132
      %s149 = sphi 0, %s133
      %s155 = sphi 0, %s157
      %s158 = sphi 0, %s155
      %s159 = sphi 0, %s158
      %s175 = sphi 0, %s159
      %s181 = sphi 0, %s183
      %s184 = sphi 0, %s181
      %s185 = sphi 0, %s184
      %s201 = sphi 0, %s185
      %s211 = sphi 0, %s213
      %s214 = sphi 0, %s211
      %s215 = sphi 0, %s214
      %s231 = sphi 0, %s215
    $region4: #{pixel_attention.1} parent=1 // loop_header_branch
      %23 = sbr.rel (%p21) target = $region8
    $region5: #{pixel_attention.1} parent=1 // loop_body
      %s25 = ssub.s32 %s20, 1
      %s26 = ssub.s32 %s20, 2
      %s36 = sadd.s32 1, %s29
      %p37 = scmp.ge.s32.totalorder %s36, 1
      %s38 = scalar_select %p37, 0, %s36
      %s39 = sadd.s32 1, %s28
      %s40 = scalar_select %p37, %s39, %s28
      %p41 = scmp.ge.s32.totalorder %s40, 4
      %s42 = scalar_select %p41, 0, %s40
      %s43 = sadd.s32 1, %s27
      %s44 = scalar_select %p41, %s43, %s27
      %p45 = scmp.ge.s32.totalorder %s44, 2
      %s46 = scalar_select %p45, 0, %s44
      %s47 = ssub.s32 %s27, %s46
      %s48 = ssub.s32 %s28, %s42
      %s49 = sor.u32 %s47, %s48
      %s50 = ssub.s32 %s29, %s38
      %s51 = sor.u32 %s49, %s50
      %p52 = scmp.eq.s32.totalorder %s51, 0
      %s54 = sadd.s32 %s53, 1
      %s55 = scalar_select %p52, %s53, %s54
      %p58 = pneg %p52
      %p59 = scmp.eq.s32.totalorder %s20, 7
      %p60 = por %p58, %p59
      %p61 = scmp.ne.s32.totalorder %s53, %s56
      %p62 = scmp.eq.s32.totalorder %s20, 0
      %p63 = por %p61, %p62
      %p64 = scmp.ne.s32.totalorder %s53, %s56
      %p65 = scmp.eq.s32.totalorder %s25, 7
      %p66 = por %p64, %p65
      %p67 = scmp.ne.s32.totalorder %s56, %s57
      %p68 = scmp.eq.s32.totalorder %s25, 0
      %p69 = por %p67, %p68
      %p70 = scmp.ne.s32.totalorder %s56, %s57
      %p71 = scmp.eq.s32.totalorder %s26, 7
      %p72 = por %p70, %p71
      %p74 = scmp.ne.s32.totalorder %s57, %s73
      %p75 = scmp.eq.s32.totalorder %s26, 0
      %p76 = por %p74, %p75
      %s77 = smul.u32 %s29, 2
      %s78 = ssub.s32 %s77, 1
      %p79 = scmp.gt.s32.totalorder %s78, 0
      %s80 = scalar_select %p79, %s78, 0
      %s81 = smul.u32 %s38, 2
      %s82 = ssub.s32 %s81, 1
      %p83 = scmp.gt.s32.totalorder %s82, 0
      %s84 = scalar_select %p83, %s82, 0
      %s85 = ssub.s32 %s27, %s46
      %s86 = ssub.s32 %s28, %s42
      %s87 = sor.u32 %s85, %s86
      %s88 = ssub.s32 %s80, %s84
      %s89 = sor.u32 %s87, %s88
      %p90 = scmp.eq.s32.totalorder %s89, 0
      %s92 = sadd.s32 %s91, 1
      %s93 = scalar_select %p90, %s91, %s92
      %p96 = pneg %p90
      %p97 = scmp.eq.s32.totalorder %s20, 7
      %p98 = por %p96, %p97
      %p99 = scmp.ne.s32.totalorder %s91, %s94
      %p100 = scmp.eq.s32.totalorder %s20, 0
      %p101 = por %p99, %p100
      %p102 = scmp.ne.s32.totalorder %s91, %s94
      %p103 = scmp.eq.s32.totalorder %s25, 7
      %p104 = por %p102, %p103
      %p105 = scmp.ne.s32.totalorder %s94, %s95
      %p106 = scmp.eq.s32.totalorder %s25, 0
      %p107 = por %p105, %p106
      %p108 = scmp.ne.s32.totalorder %s94, %s95
      %p109 = scmp.eq.s32.totalorder %s26, 7
      %p110 = por %p108, %p109
      %p112 = scmp.ne.s32.totalorder %s95, %s111
      %p113 = scmp.eq.s32.totalorder %s26, 0
      %p114 = por %p112, %p113
      %s115 = sadd.s32 %s29, 1
      %s116 = smul.u32 %s115, 2
      %p117 = scmp.lt.s32.totalorder %s116, 1
      %s118 = scalar_select %p117, %s116, 1
      %s119 = sadd.s32 %s38, 1
      %s120 = smul.u32 %s119, 2
      %p121 = scmp.lt.s32.totalorder %s120, 1
      %s122 = scalar_select %p121, %s120, 1
      %s123 = ssub.s32 %s27, %s46
      %s124 = ssub.s32 %s28, %s42
      %s125 = sor.u32 %s123, %s124
      %s126 = ssub.s32 %s118, %s122
      %s127 = sor.u32 %s125, %s126
      %p128 = scmp.eq.s32.totalorder %s127, 0
      %s130 = sadd.s32 %s129, 1
      %s131 = scalar_select %p128, %s129, %s130
      %p134 = pneg %p128
      %p135 = scmp.eq.s32.totalorder %s20, 7
      %p136 = por %p134, %p135
      %p137 = scmp.ne.s32.totalorder %s129, %s132
      %p138 = scmp.eq.s32.totalorder %s20, 0
      %p139 = por %p137, %p138
      %p140 = scmp.ne.s32.totalorder %s129, %s132
      %p141 = scmp.eq.s32.totalorder %s25, 7
      %p142 = por %p140, %p141
      %p143 = scmp.ne.s32.totalorder %s132, %s133
      %p144 = scmp.eq.s32.totalorder %s25, 0
      %p145 = por %p143, %p144
      %p146 = scmp.ne.s32.totalorder %s132, %s133
      %p147 = scmp.eq.s32.totalorder %s26, 7
      %p148 = por %p146, %p147
      %p150 = scmp.ne.s32.totalorder %s133, %s149
      %p151 = scmp.eq.s32.totalorder %s26, 0
      %p152 = por %p150, %p151
      %s153 = ssub.s32 %s28, %s42
      %p154 = scmp.eq.s32.totalorder %s153, 0
      %s156 = sadd.s32 %s155, 1
      %s157 = scalar_select %p154, %s155, %s156
      %p160 = pneg %p154
      %p161 = scmp.eq.s32.totalorder %s20, 7
      %p162 = por %p160, %p161
      %p163 = scmp.ne.s32.totalorder %s155, %s158
      %p164 = scmp.eq.s32.totalorder %s20, 0
      %p165 = por %p163, %p164
      %p166 = scmp.ne.s32.totalorder %s155, %s158
      %p167 = scmp.eq.s32.totalorder %s25, 7
      %p168 = por %p166, %p167
      %p169 = scmp.ne.s32.totalorder %s158, %s159
      %p170 = scmp.eq.s32.totalorder %s25, 0
      %p171 = por %p169, %p170
      %p172 = scmp.ne.s32.totalorder %s158, %s159
      %p173 = scmp.eq.s32.totalorder %s26, 7
      %p174 = por %p172, %p173
      %p176 = scmp.ne.s32.totalorder %s159, %s175
      %p177 = scmp.eq.s32.totalorder %s26, 0
      %p178 = por %p176, %p177
      %s179 = ssub.s32 %s28, %s42
      %p180 = scmp.eq.s32.totalorder %s179, 0
      %s182 = sadd.s32 %s181, 1
      %s183 = scalar_select %p180, %s181, %s182
      %p186 = pneg %p180
      %p187 = scmp.eq.s32.totalorder %s20, 7
      %p188 = por %p186, %p187
      %p189 = scmp.ne.s32.totalorder %s181, %s184
      %p190 = scmp.eq.s32.totalorder %s20, 0
      %p191 = por %p189, %p190
      %p192 = scmp.ne.s32.totalorder %s181, %s184
      %p193 = scmp.eq.s32.totalorder %s25, 7
      %p194 = por %p192, %p193
      %p195 = scmp.ne.s32.totalorder %s184, %s185
      %p196 = scmp.eq.s32.totalorder %s25, 0
      %p197 = por %p195, %p196
      %p198 = scmp.ne.s32.totalorder %s184, %s185
      %p199 = scmp.eq.s32.totalorder %s26, 7
      %p200 = por %p198, %p199
      %p202 = scmp.ne.s32.totalorder %s185, %s201
      %p203 = scmp.eq.s32.totalorder %s26, 0
      %p204 = por %p202, %p203
      %s205 = ssub.s32 %s27, %s46
      %s206 = ssub.s32 %s28, %s42
      %s207 = sor.u32 %s205, %s206
      %s208 = ssub.s32 %s29, %s38
      %s209 = sor.u32 %s207, %s208
      %p210 = scmp.eq.s32.totalorder %s209, 0
      %s212 = sadd.s32 %s211, 1
      %s213 = scalar_select %p210, %s211, %s212
      %p216 = pneg %p210
      %p217 = scmp.eq.s32.totalorder %s20, 7
      %p218 = por %p216, %p217
      %p219 = scmp.ne.s32.totalorder %s211, %s214
      %p220 = scmp.eq.s32.totalorder %s20, 0
      %p221 = por %p219, %p220
      %p222 = scmp.ne.s32.totalorder %s211, %s214
      %p223 = scmp.eq.s32.totalorder %s25, 7
      %p224 = por %p222, %p223
      %p225 = scmp.ne.s32.totalorder %s214, %s215
      %p226 = scmp.eq.s32.totalorder %s25, 0
      %p227 = por %p225, %p226
      %p228 = scmp.ne.s32.totalorder %s214, %s215
      %p229 = scmp.eq.s32.totalorder %s26, 7
      %p230 = por %p228, %p229
      %p232 = scmp.ne.s32.totalorder %s215, %s231
      %p233 = scmp.eq.s32.totalorder %s26, 0
      %p234 = por %p232, %p233
      %p235 = scmp.le.s32.totalorder 1, %s20
      %p236 = scmp.lt.s32.totalorder %s20, 9
      %p237 = pnand %p235, %p236
      %p238 = pneg %p237
      // Predicated region
      $region9: #{pixel_attention.1} parent=5 // pred_check
        _
      $region10: #{pixel_attention.1} parent=5 // pred_check_branch
        %240 = sbr.rel (%p237) target = $region12
      $region11: #{pixel_attention.1} parent=5 // pred_region
        %s241 = ssub.s32 %s20, 1
      $region12: #{pixel_attention.1} parent=5 // pred_fallthru
        _
      %p242 = scmp.lt.s32.totalorder %s20, 8
      // Predicated region
      $region13: #{pixel_attention.1} parent=5 // pred_check
        %p243 = pneg %p242
      $region14: #{pixel_attention.1} parent=5 // pred_check_branch
        %245 = sbr.rel (%p243) target = $region16
      $region15: #{pixel_attention.1} parent=5 // pred_region
        // Predicated region
        $region17: #{pixel_attention.1} parent=15 // pred_check
          %p246 = pneg %p63
        $region18: #{pixel_attention.1} parent=15 // pred_check_branch
          %248 = sbr.rel (%p246) target = $region20
        $region19: #{pixel_attention.1} parent=15 // pred_region
          %s249 = sand.u32 %s53, 1
          %s250 = scalar_lea.sflag [#allocation4], %s249
          %s251 = sand.u32 %s53, 1
          %s252 = smul.addr %s251, 16
          %s253 = scalar_lea.vmem [#allocation3], %s252
          %s254 = smul.u32 2, %s29
          %s256 = ssub.s32 256, 256
          %257 = vsyncadd %s250, %s256
          %s258 = smul.addr %s28, 2
          %s259 = sadd.s32 %s254, %s258
          %s260 = smul.addr %s27, 8
          %s261 = sadd.s32 %s259, %s260
          %s262 = smul.addr %s261, 128
          %s263 = scalar_lea.hbm %s0, %s262
          %s264 = sshll.u32 %s253, 4
          %s265 = int_to_ptr.vmem [resolvable:$true] %s264
          %270 = dma.hbm_to_vmem [thread:$0]  %s263, 256, %s265, %s250, 128, 128, 8
        $region20: #{pixel_attention.1} parent=15 // pred_fallthru
          _
        // Predicated region
        $region21: #{pixel_attention.1} parent=15 // pred_check
          %p271 = pneg %p101
        $region22: #{pixel_attention.1} parent=15 // pred_check_branch
          %273 = sbr.rel (%p271) target = $region24
        $region23: #{pixel_attention.1} parent=15 // pred_region
          %s274 = sand.u32 %s20, 1
          %s275 = scalar_lea.sflag [#allocation7], %s274
          %s276 = sand.u32 %s91, 1
          %s277 = smul.addr %s276, 8
          %s278 = scalar_lea.vmem [#allocation6], %s277
          %s279 = smul.u32 %s29, 2
          %s280 = ssub.s32 %s279, 1
          %p281 = scmp.gt.s32.totalorder %s280, 0
          %s282 = scalar_select %p281, %s280, 0
          %s284 = ssub.s32 128, 128
          %285 = vsyncadd %s275, %s284
          %s286 = smul.addr %s28, 2
          %s287 = sadd.s32 %s282, %s286
          %s288 = smul.addr %s27, 8
          %s289 = sadd.s32 %s287, %s288
          %s290 = smul.addr %s289, 128
          %s291 = scalar_lea.hbm %s1, %s290
          %s293 = sshll.u32 %s278, 4
          %s294 = int_to_ptr.vmem [resolvable:$true] %s293
          %296 = dma.hbm_to_vmem [thread:$0]  %s291, 128, %s294, %s275
        $region24: #{pixel_attention.1} parent=15 // pred_fallthru
          _
        // Predicated region
        $region25: #{pixel_attention.1} parent=15 // pred_check
          %p297 = pneg %p139
        $region26: #{pixel_attention.1} parent=15 // pred_check_branch
          %299 = sbr.rel (%p297) target = $region28
        $region27: #{pixel_attention.1} parent=15 // pred_region
          %s300 = sand.u32 %s20, 1
          %s301 = scalar_lea.sflag [#allocation7], %s300
          %s302 = sand.u32 %s129, 1
          %s303 = smul.addr %s302, 8
          %s304 = scalar_lea.vmem [#allocation8], %s303
          %s305 = sadd.s32 %s29, 1
          %s306 = smul.u32 %s305, 2
          %p307 = scmp.lt.s32.totalorder %s306, 1
          %s308 = scalar_select %p307, %s306, 1
          %s310 = ssub.s32 128, 128
          %311 = vsyncadd %s301, %s310
          %s312 = smul.addr %s28, 2
          %s313 = sadd.s32 %s308, %s312
          %s314 = smul.addr %s27, 8
          %s315 = sadd.s32 %s313, %s314
          %s316 = smul.addr %s315, 128
          %s317 = scalar_lea.hbm %s2, %s316
          %s319 = sshll.u32 %s304, 4
          %s320 = int_to_ptr.vmem [resolvable:$true] %s319
          %322 = dma.hbm_to_vmem [thread:$0]  %s317, 128, %s320, %s301
        $region28: #{pixel_attention.1} parent=15 // pred_fallthru
          _
        // Predicated region
        $region29: #{pixel_attention.1} parent=15 // pred_check
          %p323 = pneg %p165
        $region30: #{pixel_attention.1} parent=15 // pred_check_branch
          %325 = sbr.rel (%p323) target = $region32
        $region31: #{pixel_attention.1} parent=15 // pred_region
          %p326 = scmp.lt.s32.totalorder %s28, 3
          %s327 = scalar_select %p326, %s28, 3
          %s328 = smul.addr %s327, 2
          %s329 = smul.addr %s328, 8
          %s330 = scalar_lea.vmem %s3, %s329
        $region32: #{pixel_attention.1} parent=15 // pred_fallthru
          _
        // Predicated region
        $region33: #{pixel_attention.1} parent=15 // pred_check
          %p331 = pneg %p191
        $region34: #{pixel_attention.1} parent=15 // pred_check_branch
          %333 = sbr.rel (%p331) target = $region36
        $region35: #{pixel_attention.1} parent=15 // pred_region
          %p334 = scmp.lt.s32.totalorder %s28, 3
          %s335 = scalar_select %p334, %s28, 3
          %s336 = scalar_lea.vmem %s4, %s335
        $region36: #{pixel_attention.1} parent=15 // pred_fallthru
          _
      $region16: #{pixel_attention.1} parent=5 // pred_fallthru
        _
      %p337 = scmp.le.s32.totalorder 1, %s20
      %p338 = scmp.lt.s32.totalorder %s20, 9
      %p339 = pnand %p337, %p338
      %p340 = pneg %p339
      // Predicated region
      $region37: #{pixel_attention.1} parent=5 // pred_check
        _
      $region38: #{pixel_attention.1} parent=5 // pred_check_branch
        %342 = sbr.rel (%p339) target = $region40
      $region39: #{pixel_attention.1} parent=5 // pred_region
        %s343 = ssub.s32 %s20, 1
        %s344 = sand.u32 %s56, 1
        %s345 = scalar_lea.sflag [#allocation4], %s344
        %s346 = sand.u32 %s56, 1
        %s347 = smul.addr %s346, 16
        %s348 = scalar_lea.vmem [#allocation3], %s347
        // Predicated region
        $region41: #{pixel_attention.1} parent=39 // pred_check
          %p349 = pneg %p69
        $region42: #{pixel_attention.1} parent=39 // pred_check_branch
          %351 = sbr.rel (%p349) target = $region44
        $region43: #{pixel_attention.1} parent=39 // pred_region
          %352 = dma.done %s345, 256
        $region44: #{pixel_attention.1} parent=39 // pred_fallthru
          _
        %s353 = sand.u32 %s25, 1
        %s354 = scalar_lea.sflag [#allocation7], %s353
        %s355 = sand.u32 %s94, 1
        %s356 = smul.addr %s355, 8
        %s357 = scalar_lea.vmem [#allocation6], %s356
        // Predicated region
        $region45: #{pixel_attention.1} parent=39 // pred_check
          %p358 = pneg %p107
        $region46: #{pixel_attention.1} parent=39 // pred_check_branch
          %360 = sbr.rel (%p358) target = $region48
        $region47: #{pixel_attention.1} parent=39 // pred_region
          %361 = dma.done %s354, 128
        $region48: #{pixel_attention.1} parent=39 // pred_fallthru
          _
        %s362 = sand.u32 %s25, 1
        %s363 = scalar_lea.sflag [#allocation7], %s362
        %s364 = sand.u32 %s132, 1
        %s365 = smul.addr %s364, 8
        %s366 = scalar_lea.vmem [#allocation8], %s365
        // Predicated region
        $region49: #{pixel_attention.1} parent=39 // pred_check
          %p367 = pneg %p145
        $region50: #{pixel_attention.1} parent=39 // pred_check_branch
          %369 = sbr.rel (%p367) target = $region52
        $region51: #{pixel_attention.1} parent=39 // pred_region
          %370 = dma.done %s363, 128
        $region52: #{pixel_attention.1} parent=39 // pred_fallthru
          _
        %s371 = sand.u32 %s56, 1
        %s372 = scalar_lea.sflag [#allocation4], %s371
        %s373 = sand.u32 %s56, 1
        %s374 = smul.addr %s373, 16
        %s375 = scalar_lea.vmem [#allocation3], %s374
        %p376 = pneg %p69
        %p377 = pneg %p66
        %s378 = sand.u32 %s25, 1
        %s379 = scalar_lea.sflag [#allocation7], %s378
        %s380 = sand.u32 %s94, 1
        %s381 = smul.addr %s380, 8
        %s382 = scalar_lea.vmem [#allocation6], %s381
        %p383 = pneg %p107
        %p384 = pneg %p104
        %s385 = sand.u32 %s25, 1
        %s386 = scalar_lea.sflag [#allocation7], %s385
        %s387 = sand.u32 %s132, 1
        %s388 = smul.addr %s387, 8
        %s389 = scalar_lea.vmem [#allocation8], %s388
        %p390 = pneg %p145
        %p391 = pneg %p142
        %p392 = scmp.lt.s32.totalorder %s31, 3
        %s393 = scalar_select %p392, %s31, 3
        %s394 = smul.addr %s393, 2
        %s395 = smul.addr %s394, 8
        %s396 = scalar_lea.vmem %s3, %s395
        %p397 = pneg %p171
        %p398 = pneg %p168
        %p399 = scmp.lt.s32.totalorder %s31, 3
        %s400 = scalar_select %p399, %s31, 3
        %s401 = scalar_lea.vmem %s4, %s400
        %p402 = pneg %p197
        %p403 = pneg %p194
        %p404 = pneg %p227
        %p405 = pneg %p224
        %s406 = sand.u32 %s214, 1
        %s407 = scalar_lea.sflag [#allocation5], %s406
        %s408 = sand.u32 %s214, 1
        %s409 = smul.addr %s408, 16
        %s410 = scalar_lea.vmem [#allocation9], %s409
        %s411 = smul.u32 2, %s32
        %s412 = smul.u32 %s32, 2
        %s413 = ssub.s32 %s412, 1
        %p414 = scmp.gt.s32.totalorder %s413, 0
        %s415 = scalar_select %p414, %s413, 0
        %s416 = sadd.s32 %s32, 1
        %s417 = smul.u32 %s416, 2
        %p418 = scmp.lt.s32.totalorder %s417, 1
        %s419 = scalar_select %p418, %s417, 1
        %p420 = scmp.lt.s32.totalorder %s31, 3
        %s421 = scalar_select %p420, %s31, 3
        %s422 = smul.addr %s421, 2
        %s423 = smul.addr %s422, 8
        %s424 = scalar_lea.vmem %s3, %s423
        %p425 = scmp.lt.s32.totalorder %s31, 3
        %s426 = scalar_select %p425, %s31, 3
        %s427 = scalar_lea.vmem %s4, %s426
        %s428 = smul.u32 2, %s32
        %vm429 = vcmask 39936
        %430 = vst.msk [vmem:[#allocation2] sm:$0xff] %vm429, 0.0
        %431 = vst.msk [vmem:[#allocation2 + $0x8] sm:$0xff] %vm429, 0.0
        %432 = vst.msk [vmem:[#allocation2 + $0x10] sm:$0xff] %vm429, 0.0
        %vm433 = vcmask 33792
        %434 = vst.msk [vmem:[#allocation2 + $0x18] sm:$0x3] %vm433, 0.0
        %vm435 = vcmask 212136
        %436 = vst.msk [vmem:[#allocation2] sm:$0xff] %vm435, 0.0
        %437 = vst.msk [vmem:[#allocation2 + $0x8] sm:$0xff] %vm435, 0.0
        %438 = vst.msk [vmem:[#allocation2 + $0x10] sm:$0xff] %vm435, 0.0
        %vm439 = vcmask 205992
        %440 = vst.msk [vmem:[#allocation2 + $0x18] sm:$0x3] %vm439, 0.0
        %p441 = scmp.eq.s32.totalorder %s32, 0
        // Predicated region
        $region53: #{pixel_attention.1} parent=39 // pred_check
          %p442 = pneg %p441
        $region54: #{pixel_attention.1} parent=39 // pred_check_branch
          %444 = sbr.rel (%p442) target = $region56
        $region55: #{pixel_attention.1} parent=39 // pred_region
          %vm445 = vcmask 167976
          %446 = vst.msk [vmem:[#allocation2] sm:$0x1f] %vm445, 0.0
        $region56: #{pixel_attention.1} parent=39 // pred_fallthru
          _
        %p447 = scmp.gt.s32.totalorder %s32, 0
        // Predicated region
        $region57: #{pixel_attention.1} parent=39 // pred_check
          %p448 = pneg %p447
        $region58: #{pixel_attention.1} parent=39 // pred_check_branch
          %450 = sbr.rel (%p448) target = $region60
        $region59: #{pixel_attention.1} parent=39 // pred_region
          %v451 = vld [vmem:[%s357 + $0x3] sm:$0x1f]
          %453 = vrot.lane.b32.xlu0 %v451, 5
          %v454 = vpop.permute.xlu0 %453
          %vm456 = vcmask 167976
          %457 = vst.msk [vmem:[#allocation2] sm:$0x1f] %vm456, %v454
        $region60: #{pixel_attention.1} parent=39 // pred_fallthru
          _
        // Predicated region
        $region61: #{pixel_attention.1} parent=39 // pred_check
          %p458 = pneg %p441
        $region62: #{pixel_attention.1} parent=39 // pred_check_branch
          %460 = sbr.rel (%p458) target = $region64
        $region63: #{pixel_attention.1} parent=39 // pred_region
          %vm461 = vcmask 167976
          %462 = vst.msk [vmem:[#allocation2 + $0x15] sm:$0x1f] %vm461, 0.0
        $region64: #{pixel_attention.1} parent=39 // pred_fallthru
          _
        %p463 = scmp.lt.s32.totalorder %s32, 0
        // Predicated region
        $region65: #{pixel_attention.1} parent=39 // pred_check
          %p464 = pneg %p463
        $region66: #{pixel_attention.1} parent=39 // pred_check_branch
          %466 = sbr.rel (%p464) target = $region68
        $region67: #{pixel_attention.1} parent=39 // pred_region
          %v467 = vld [vmem:[%s366] sm:$0x1f]
          %469 = vrot.lane.b32.xlu0 %v467, 5
          %v470 = vpop.permute.xlu0 %469
          %vm472 = vcmask 167976
          %473 = vst.msk [vmem:[#allocation2 + $0x15] sm:$0x1f] %vm472, %v470
        $region68: #{pixel_attention.1} parent=39 // pred_fallthru
          _
        %v474 = vld [vmem:[%s348] sm:$0xff]
        %v475 = vld [vmem:[%s348 + $0x8] sm:$0xff]
        %478 = vrot.lane.b32.xlu0 %v474, 5
        %v479 = vpop.permute.xlu0 %478
        %480 = vrot.lane.b32.xlu0 %v475, 5
        %v481 = vpop.permute.xlu0 %480
        %vm484 = vcmask 171048
        %485 = vst.msk [vmem:[#allocation2 + $0x5] sm:$0xff] %vm484, %v479
        %486 = vst.msk [vmem:[#allocation2 + $0xd] sm:$0xff] %vm484, %v481
        %v487 = vld [vmem:[%s427] sm:$0x1]
        loop: start=0, step=1, limit=2
        $region69: #{pixel_attention.1} parent=39 // loop_pre_header
          _
        $region70: #{pixel_attention.1} parent=39 // loop_header
          %s489 = sphi 0, %s493
          %p490 = scmp.ge.s32.totalorder %s489, 2
        $region71: #{pixel_attention.1} parent=39 // loop_header_branch
          %492 = sbr.rel (%p490) target = $region75
        $region72: #{pixel_attention.1} parent=39 // loop_body
          %s494 = smul.u32 %s489, 8
          %v495 = vld [vmem:[%s424] sm:$0x1]
          %s496 = scalar_lea.vmem [#allocation2], %s494
          %v497 = vld [vmem:[%s496] sm:$0xff]
          %s499 = vtos %v495
          %v500 = vstv %s499
          %v502 = vmul.f32 %v500, %v497
          %v503 = vadd.f32 %v502, 0.0
          %504 = vrot.lane.b32.xlu0 %v495, 127
          %v505 = vpop.permute.xlu0 %504
          %s506 = vtos %v505
          %v507 = vstv %s506
          %v509 = vmul.f32 %v507, %v497
          %511 = vrot.lane.b32.xlu0 %v509, 127
          %v512 = vpop.permute.xlu0 %511
          %v514 = vadd.f32 %v503, %v512
          %515 = vrot.lane.b32.xlu0 %v495, 126
          %v516 = vpop.permute.xlu0 %515
          %s517 = vtos %v516
          %v518 = vstv %s517
          %v520 = vmul.f32 %v518, %v497
          %522 = vrot.lane.b32.xlu0 %v520, 126
          %v523 = vpop.permute.xlu0 %522
          %v525 = vadd.f32 %v514, %v523
          %526 = vrot.lane.b32.xlu0 %v495, 125
          %v527 = vpop.permute.xlu0 %526
          %s528 = vtos %v527
          %v529 = vstv %s528
          %v531 = vmul.f32 %v529, %v497
          %533 = vrot.lane.b32.xlu0 %v531, 125
          %v534 = vpop.permute.xlu0 %533
          %v536 = vadd.f32 %v525, %v534
          %537 = vrot.lane.b32.xlu0 %v495, 124
          %v538 = vpop.permute.xlu0 %537
          %s539 = vtos %v538
          %v540 = vstv %s539
          %v542 = vmul.f32 %v540, %v497
          %544 = vrot.lane.b32.xlu0 %v542, 124
          %v545 = vpop.permute.xlu0 %544
          %v547 = vadd.f32 %v536, %v545
          %548 = vrot.lane.b32.xlu0 %v495, 123
          %v549 = vpop.permute.xlu0 %548
          %s550 = vtos %v549
          %v551 = vstv %s550
          %v553 = vmul.f32 %v551, %v497
          %555 = vrot.lane.b32.xlu0 %v553, 123
          %v556 = vpop.permute.xlu0 %555
          %v558 = vadd.f32 %v547, %v556
          %559 = vrot.lane.b32.xlu0 %v495, 122
          %v560 = vpop.permute.xlu0 %559
          %s561 = vtos %v560
          %v562 = vstv %s561
          %v564 = vmul.f32 %v562, %v497
          %566 = vrot.lane.b32.xlu0 %v564, 122
          %v567 = vpop.permute.xlu0 %566
          %v569 = vadd.f32 %v558, %v567
          %570 = vrot.lane.b32.xlu0 %v495, 121
          %v571 = vpop.permute.xlu0 %570
          %s572 = vtos %v571
          %v573 = vstv %s572
          %v575 = vmul.f32 %v573, %v497
          %577 = vrot.lane.b32.xlu0 %v575, 121
          %v578 = vpop.permute.xlu0 %577
          %v580 = vadd.f32 %v569, %v578
          %581 = vrot.lane.b32.xlu0 %v495, 120
          %v582 = vpop.permute.xlu0 %581
          %s583 = vtos %v582
          %v584 = vstv %s583
          %v586 = vmul.f32 %v584, %v497
          %588 = vrot.lane.b32.xlu0 %v586, 120
          %v589 = vpop.permute.xlu0 %588
          %v591 = vadd.f32 %v580, %v589
          %592 = vrot.lane.b32.xlu0 %v495, 119
          %v593 = vpop.permute.xlu0 %592
          %s594 = vtos %v593
          %v595 = vstv %s594
          %v597 = vmul.f32 %v595, %v497
          %599 = vrot.lane.b32.xlu0 %v597, 119
          %v600 = vpop.permute.xlu0 %599
          %v602 = vadd.f32 %v591, %v600
          %603 = vrot.lane.b32.xlu0 %v495, 118
          %v604 = vpop.permute.xlu0 %603
          %s605 = vtos %v604
          %v606 = vstv %s605
          %v608 = vmul.f32 %v606, %v497
          %610 = vrot.lane.b32.xlu0 %v608, 118
          %v611 = vpop.permute.xlu0 %610
          %v613 = vadd.f32 %v602, %v611
          %v614 = vld [vmem:[%s424 + $0x1] sm:$0x1]
          %s615 = sadd.s32 %s494, 1
          %s616 = scalar_lea.vmem [#allocation2], %s615
          %v617 = vld [vmem:[%s616] sm:$0xff]
          %s619 = vtos %v614
          %v620 = vstv %s619
          %v622 = vmul.f32 %v620, %v617
          %v623 = vadd.f32 %v613, %v622
          %624 = vrot.lane.b32.xlu0 %v614, 127
          %v625 = vpop.permute.xlu0 %624
          %s626 = vtos %v625
          %v627 = vstv %s626
          %v629 = vmul.f32 %v627, %v617
          %631 = vrot.lane.b32.xlu0 %v629, 127
          %v632 = vpop.permute.xlu0 %631
          %v634 = vadd.f32 %v623, %v632
          %635 = vrot.lane.b32.xlu0 %v614, 126
          %v636 = vpop.permute.xlu0 %635
          %s637 = vtos %v636
          %v638 = vstv %s637
          %v640 = vmul.f32 %v638, %v617
          %642 = vrot.lane.b32.xlu0 %v640, 126
          %v643 = vpop.permute.xlu0 %642
          %v645 = vadd.f32 %v634, %v643
          %646 = vrot.lane.b32.xlu0 %v614, 125
          %v647 = vpop.permute.xlu0 %646
          %s648 = vtos %v647
          %v649 = vstv %s648
          %v651 = vmul.f32 %v649, %v617
          %653 = vrot.lane.b32.xlu0 %v651, 125
          %v654 = vpop.permute.xlu0 %653
          %v656 = vadd.f32 %v645, %v654
          %657 = vrot.lane.b32.xlu0 %v614, 124
          %v658 = vpop.permute.xlu0 %657
          %s659 = vtos %v658
          %v660 = vstv %s659
          %v662 = vmul.f32 %v660, %v617
          %664 = vrot.lane.b32.xlu0 %v662, 124
          %v665 = vpop.permute.xlu0 %664
          %v667 = vadd.f32 %v656, %v665
          %668 = vrot.lane.b32.xlu0 %v614, 123
          %v669 = vpop.permute.xlu0 %668
          %s670 = vtos %v669
          %v671 = vstv %s670
          %v673 = vmul.f32 %v671, %v617
          %675 = vrot.lane.b32.xlu0 %v673, 123
          %v676 = vpop.permute.xlu0 %675
          %v678 = vadd.f32 %v667, %v676
          %679 = vrot.lane.b32.xlu0 %v614, 122
          %v680 = vpop.permute.xlu0 %679
          %s681 = vtos %v680
          %v682 = vstv %s681
          %v684 = vmul.f32 %v682, %v617
          %686 = vrot.lane.b32.xlu0 %v684, 122
          %v687 = vpop.permute.xlu0 %686
          %v689 = vadd.f32 %v678, %v687
          %690 = vrot.lane.b32.xlu0 %v614, 121
          %v691 = vpop.permute.xlu0 %690
          %s692 = vtos %v691
          %v693 = vstv %s692
          %v695 = vmul.f32 %v693, %v617
          %697 = vrot.lane.b32.xlu0 %v695, 121
          %v698 = vpop.permute.xlu0 %697
          %v700 = vadd.f32 %v689, %v698
          %701 = vrot.lane.b32.xlu0 %v614, 120
          %v702 = vpop.permute.xlu0 %701
          %s703 = vtos %v702
          %v704 = vstv %s703
          %v706 = vmul.f32 %v704, %v617
          %708 = vrot.lane.b32.xlu0 %v706, 120
          %v709 = vpop.permute.xlu0 %708
          %v711 = vadd.f32 %v700, %v709
          %712 = vrot.lane.b32.xlu0 %v614, 119
          %v713 = vpop.permute.xlu0 %712
          %s714 = vtos %v713
          %v715 = vstv %s714
          %v717 = vmul.f32 %v715, %v617
          %719 = vrot.lane.b32.xlu0 %v717, 119
          %v720 = vpop.permute.xlu0 %719
          %v722 = vadd.f32 %v711, %v720
          %723 = vrot.lane.b32.xlu0 %v614, 118
          %v724 = vpop.permute.xlu0 %723
          %s725 = vtos %v724
          %v726 = vstv %s725
          %v728 = vmul.f32 %v726, %v617
          %730 = vrot.lane.b32.xlu0 %v728, 118
          %v731 = vpop.permute.xlu0 %730
          %v733 = vadd.f32 %v722, %v731
          %v734 = vld [vmem:[%s424 + $0x2] sm:$0x1]
          %s735 = sadd.s32 %s494, 2
          %s736 = scalar_lea.vmem [#allocation2], %s735
          %v737 = vld [vmem:[%s736] sm:$0xff]
          %s739 = vtos %v734
          %v740 = vstv %s739
          %v742 = vmul.f32 %v740, %v737
          %v743 = vadd.f32 %v733, %v742
          %744 = vrot.lane.b32.xlu0 %v734, 127
          %v745 = vpop.permute.xlu0 %744
          %s746 = vtos %v745
          %v747 = vstv %s746
          %v749 = vmul.f32 %v747, %v737
          %751 = vrot.lane.b32.xlu0 %v749, 127
          %v752 = vpop.permute.xlu0 %751
          %v754 = vadd.f32 %v743, %v752
          %755 = vrot.lane.b32.xlu0 %v734, 126
          %v756 = vpop.permute.xlu0 %755
          %s757 = vtos %v756
          %v758 = vstv %s757
          %v760 = vmul.f32 %v758, %v737
          %762 = vrot.lane.b32.xlu0 %v760, 126
          %v763 = vpop.permute.xlu0 %762
          %v765 = vadd.f32 %v754, %v763
          %766 = vrot.lane.b32.xlu0 %v734, 125
          %v767 = vpop.permute.xlu0 %766
          %s768 = vtos %v767
          %v769 = vstv %s768
          %v771 = vmul.f32 %v769, %v737
          %773 = vrot.lane.b32.xlu0 %v771, 125
          %v774 = vpop.permute.xlu0 %773
          %v776 = vadd.f32 %v765, %v774
          %777 = vrot.lane.b32.xlu0 %v734, 124
          %v778 = vpop.permute.xlu0 %777
          %s779 = vtos %v778
          %v780 = vstv %s779
          %v782 = vmul.f32 %v780, %v737
          %784 = vrot.lane.b32.xlu0 %v782, 124
          %v785 = vpop.permute.xlu0 %784
          %v787 = vadd.f32 %v776, %v785
          %788 = vrot.lane.b32.xlu0 %v734, 123
          %v789 = vpop.permute.xlu0 %788
          %s790 = vtos %v789
          %v791 = vstv %s790
          %v793 = vmul.f32 %v791, %v737
          %795 = vrot.lane.b32.xlu0 %v793, 123
          %v796 = vpop.permute.xlu0 %795
          %v798 = vadd.f32 %v787, %v796
          %799 = vrot.lane.b32.xlu0 %v734, 122
          %v800 = vpop.permute.xlu0 %799
          %s801 = vtos %v800
          %v802 = vstv %s801
          %v804 = vmul.f32 %v802, %v737
          %806 = vrot.lane.b32.xlu0 %v804, 122
          %v807 = vpop.permute.xlu0 %806
          %v809 = vadd.f32 %v798, %v807
          %810 = vrot.lane.b32.xlu0 %v734, 121
          %v811 = vpop.permute.xlu0 %810
          %s812 = vtos %v811
          %v813 = vstv %s812
          %v815 = vmul.f32 %v813, %v737
          %817 = vrot.lane.b32.xlu0 %v815, 121
          %v818 = vpop.permute.xlu0 %817
          %v820 = vadd.f32 %v809, %v818
          %821 = vrot.lane.b32.xlu0 %v734, 120
          %v822 = vpop.permute.xlu0 %821
          %s823 = vtos %v822
          %v824 = vstv %s823
          %v826 = vmul.f32 %v824, %v737
          %828 = vrot.lane.b32.xlu0 %v826, 120
          %v829 = vpop.permute.xlu0 %828
          %v831 = vadd.f32 %v820, %v829
          %832 = vrot.lane.b32.xlu0 %v734, 119
          %v833 = vpop.permute.xlu0 %832
          %s834 = vtos %v833
          %v835 = vstv %s834
          %v837 = vmul.f32 %v835, %v737
          %839 = vrot.lane.b32.xlu0 %v837, 119
          %v840 = vpop.permute.xlu0 %839
          %v842 = vadd.f32 %v831, %v840
          %843 = vrot.lane.b32.xlu0 %v734, 118
          %v844 = vpop.permute.xlu0 %843
          %s845 = vtos %v844
          %v846 = vstv %s845
          %v848 = vmul.f32 %v846, %v737
          %850 = vrot.lane.b32.xlu0 %v848, 118
          %v851 = vpop.permute.xlu0 %850
          %v853 = vadd.f32 %v842, %v851
          %v854 = vld [vmem:[%s424 + $0x3] sm:$0x1]
          %s855 = sadd.s32 %s494, 3
          %s856 = scalar_lea.vmem [#allocation2], %s855
          %v857 = vld [vmem:[%s856] sm:$0xff]
          %s859 = vtos %v854
          %v860 = vstv %s859
          %v862 = vmul.f32 %v860, %v857
          %v863 = vadd.f32 %v853, %v862
          %864 = vrot.lane.b32.xlu0 %v854, 127
          %v865 = vpop.permute.xlu0 %864
          %s866 = vtos %v865
          %v867 = vstv %s866
          %v869 = vmul.f32 %v867, %v857
          %871 = vrot.lane.b32.xlu0 %v869, 127
          %v872 = vpop.permute.xlu0 %871
          %v874 = vadd.f32 %v863, %v872
          %875 = vrot.lane.b32.xlu0 %v854, 126
          %v876 = vpop.permute.xlu0 %875
          %s877 = vtos %v876
          %v878 = vstv %s877
          %v880 = vmul.f32 %v878, %v857
          %882 = vrot.lane.b32.xlu0 %v880, 126
          %v883 = vpop.permute.xlu0 %882
          %v885 = vadd.f32 %v874, %v883
          %886 = vrot.lane.b32.xlu0 %v854, 125
          %v887 = vpop.permute.xlu0 %886
          %s888 = vtos %v887
          %v889 = vstv %s888
          %v891 = vmul.f32 %v889, %v857
          %893 = vrot.lane.b32.xlu0 %v891, 125
          %v894 = vpop.permute.xlu0 %893
          %v896 = vadd.f32 %v885, %v894
          %897 = vrot.lane.b32.xlu0 %v854, 124
          %v898 = vpop.permute.xlu0 %897
          %s899 = vtos %v898
          %v900 = vstv %s899
          %v902 = vmul.f32 %v900, %v857
          %904 = vrot.lane.b32.xlu0 %v902, 124
          %v905 = vpop.permute.xlu0 %904
          %v907 = vadd.f32 %v896, %v905
          %908 = vrot.lane.b32.xlu0 %v854, 123
          %v909 = vpop.permute.xlu0 %908
          %s910 = vtos %v909
          %v911 = vstv %s910
          %v913 = vmul.f32 %v911, %v857
          %915 = vrot.lane.b32.xlu0 %v913, 123
          %v916 = vpop.permute.xlu0 %915
          %v918 = vadd.f32 %v907, %v916
          %919 = vrot.lane.b32.xlu0 %v854, 122
          %v920 = vpop.permute.xlu0 %919
          %s921 = vtos %v920
          %v922 = vstv %s921
          %v924 = vmul.f32 %v922, %v857
          %926 = vrot.lane.b32.xlu0 %v924, 122
          %v927 = vpop.permute.xlu0 %926
          %v929 = vadd.f32 %v918, %v927
          %930 = vrot.lane.b32.xlu0 %v854, 121
          %v931 = vpop.permute.xlu0 %930
          %s932 = vtos %v931
          %v933 = vstv %s932
          %v935 = vmul.f32 %v933, %v857
          %937 = vrot.lane.b32.xlu0 %v935, 121
          %v938 = vpop.permute.xlu0 %937
          %v940 = vadd.f32 %v929, %v938
          %941 = vrot.lane.b32.xlu0 %v854, 120
          %v942 = vpop.permute.xlu0 %941
          %s943 = vtos %v942
          %v944 = vstv %s943
          %v946 = vmul.f32 %v944, %v857
          %948 = vrot.lane.b32.xlu0 %v946, 120
          %v949 = vpop.permute.xlu0 %948
          %v951 = vadd.f32 %v940, %v949
          %952 = vrot.lane.b32.xlu0 %v854, 119
          %v953 = vpop.permute.xlu0 %952
          %s954 = vtos %v953
          %v955 = vstv %s954
          %v957 = vmul.f32 %v955, %v857
          %959 = vrot.lane.b32.xlu0 %v957, 119
          %v960 = vpop.permute.xlu0 %959
          %v962 = vadd.f32 %v951, %v960
          %963 = vrot.lane.b32.xlu0 %v854, 118
          %v964 = vpop.permute.xlu0 %963
          %s965 = vtos %v964
          %v966 = vstv %s965
          %v968 = vmul.f32 %v966, %v857
          %970 = vrot.lane.b32.xlu0 %v968, 118
          %v971 = vpop.permute.xlu0 %970
          %v973 = vadd.f32 %v962, %v971
          %v974 = vld [vmem:[%s424 + $0x4] sm:$0x1]
          %s975 = sadd.s32 %s494, 4
          %s976 = scalar_lea.vmem [#allocation2], %s975
          %v977 = vld [vmem:[%s976] sm:$0xff]
          %s979 = vtos %v974
          %v980 = vstv %s979
          %v982 = vmul.f32 %v980, %v977
          %v983 = vadd.f32 %v973, %v982
          %984 = vrot.lane.b32.xlu0 %v974, 127
          %v985 = vpop.permute.xlu0 %984
          %s986 = vtos %v985
          %v987 = vstv %s986
          %v989 = vmul.f32 %v987, %v977
          %991 = vrot.lane.b32.xlu0 %v989, 127
          %v992 = vpop.permute.xlu0 %991
          %v994 = vadd.f32 %v983, %v992
          %995 = vrot.lane.b32.xlu0 %v974, 126
          %v996 = vpop.permute.xlu0 %995
          %s997 = vtos %v996
          %v998 = vstv %s997
          %v1000 = vmul.f32 %v998, %v977
          %1002 = vrot.lane.b32.xlu0 %v1000, 126
          %v1003 = vpop.permute.xlu0 %1002
          %v1005 = vadd.f32 %v994, %v1003
          %1006 = vrot.lane.b32.xlu0 %v974, 125
          %v1007 = vpop.permute.xlu0 %1006
          %s1008 = vtos %v1007
          %v1009 = vstv %s1008
          %v1011 = vmul.f32 %v1009, %v977
          %1013 = vrot.lane.b32.xlu0 %v1011, 125
          %v1014 = vpop.permute.xlu0 %1013
          %v1016 = vadd.f32 %v1005, %v1014
          %1017 = vrot.lane.b32.xlu0 %v974, 124
          %v1018 = vpop.permute.xlu0 %1017
          %s1019 = vtos %v1018
          %v1020 = vstv %s1019
          %v1022 = vmul.f32 %v1020, %v977
          %1024 = vrot.lane.b32.xlu0 %v1022, 124
          %v1025 = vpop.permute.xlu0 %1024
          %v1027 = vadd.f32 %v1016, %v1025
          %1028 = vrot.lane.b32.xlu0 %v974, 123
          %v1029 = vpop.permute.xlu0 %1028
          %s1030 = vtos %v1029
          %v1031 = vstv %s1030
          %v1033 = vmul.f32 %v1031, %v977
          %1035 = vrot.lane.b32.xlu0 %v1033, 123
          %v1036 = vpop.permute.xlu0 %1035
          %v1038 = vadd.f32 %v1027, %v1036
          %1039 = vrot.lane.b32.xlu0 %v974, 122
          %v1040 = vpop.permute.xlu0 %1039
          %s1041 = vtos %v1040
          %v1042 = vstv %s1041
          %v1044 = vmul.f32 %v1042, %v977
          %1046 = vrot.lane.b32.xlu0 %v1044, 122
          %v1047 = vpop.permute.xlu0 %1046
          %v1049 = vadd.f32 %v1038, %v1047
          %1050 = vrot.lane.b32.xlu0 %v974, 121
          %v1051 = vpop.permute.xlu0 %1050
          %s1052 = vtos %v1051
          %v1053 = vstv %s1052
          %v1055 = vmul.f32 %v1053, %v977
          %1057 = vrot.lane.b32.xlu0 %v1055, 121
          %v1058 = vpop.permute.xlu0 %1057
          %v1060 = vadd.f32 %v1049, %v1058
          %1061 = vrot.lane.b32.xlu0 %v974, 120
          %v1062 = vpop.permute.xlu0 %1061
          %s1063 = vtos %v1062
          %v1064 = vstv %s1063
          %v1066 = vmul.f32 %v1064, %v977
          %1068 = vrot.lane.b32.xlu0 %v1066, 120
          %v1069 = vpop.permute.xlu0 %1068
          %v1071 = vadd.f32 %v1060, %v1069
          %1072 = vrot.lane.b32.xlu0 %v974, 119
          %v1073 = vpop.permute.xlu0 %1072
          %s1074 = vtos %v1073
          %v1075 = vstv %s1074
          %v1077 = vmul.f32 %v1075, %v977
          %1079 = vrot.lane.b32.xlu0 %v1077, 119
          %v1080 = vpop.permute.xlu0 %1079
          %v1082 = vadd.f32 %v1071, %v1080
          %1083 = vrot.lane.b32.xlu0 %v974, 118
          %v1084 = vpop.permute.xlu0 %1083
          %s1085 = vtos %v1084
          %v1086 = vstv %s1085
          %v1088 = vmul.f32 %v1086, %v977
          %1090 = vrot.lane.b32.xlu0 %v1088, 118
          %v1091 = vpop.permute.xlu0 %1090
          %v1093 = vadd.f32 %v1082, %v1091
          %v1094 = vld [vmem:[%s424 + $0x5] sm:$0x1]
          %s1095 = sadd.s32 %s494, 5
          %s1096 = scalar_lea.vmem [#allocation2], %s1095
          %v1097 = vld [vmem:[%s1096] sm:$0xff]
          %s1099 = vtos %v1094
          %v1100 = vstv %s1099
          %v1102 = vmul.f32 %v1100, %v1097
          %v1103 = vadd.f32 %v1093, %v1102
          %1104 = vrot.lane.b32.xlu0 %v1094, 127
          %v1105 = vpop.permute.xlu0 %1104
          %s1106 = vtos %v1105
          %v1107 = vstv %s1106
          %v1109 = vmul.f32 %v1107, %v1097
          %1111 = vrot.lane.b32.xlu0 %v1109, 127
          %v1112 = vpop.permute.xlu0 %1111
          %v1114 = vadd.f32 %v1103, %v1112
          %1115 = vrot.lane.b32.xlu0 %v1094, 126
          %v1116 = vpop.permute.xlu0 %1115
          %s1117 = vtos %v1116
          %v1118 = vstv %s1117
          %v1120 = vmul.f32 %v1118, %v1097
          %1122 = vrot.lane.b32.xlu0 %v1120, 126
          %v1123 = vpop.permute.xlu0 %1122
          %v1125 = vadd.f32 %v1114, %v1123
          %1126 = vrot.lane.b32.xlu0 %v1094, 125
          %v1127 = vpop.permute.xlu0 %1126
          %s1128 = vtos %v1127
          %v1129 = vstv %s1128
          %v1131 = vmul.f32 %v1129, %v1097
          %1133 = vrot.lane.b32.xlu0 %v1131, 125
          %v1134 = vpop.permute.xlu0 %1133
          %v1136 = vadd.f32 %v1125, %v1134
          %1137 = vrot.lane.b32.xlu0 %v1094, 124
          %v1138 = vpop.permute.xlu0 %1137
          %s1139 = vtos %v1138
          %v1140 = vstv %s1139
          %v1142 = vmul.f32 %v1140, %v1097
          %1144 = vrot.lane.b32.xlu0 %v1142, 124
          %v1145 = vpop.permute.xlu0 %1144
          %v1147 = vadd.f32 %v1136, %v1145
          %1148 = vrot.lane.b32.xlu0 %v1094, 123
          %v1149 = vpop.permute.xlu0 %1148
          %s1150 = vtos %v1149
          %v1151 = vstv %s1150
          %v1153 = vmul.f32 %v1151, %v1097
          %1155 = vrot.lane.b32.xlu0 %v1153, 123
          %v1156 = vpop.permute.xlu0 %1155
          %v1158 = vadd.f32 %v1147, %v1156
          %1159 = vrot.lane.b32.xlu0 %v1094, 122
          %v1160 = vpop.permute.xlu0 %1159
          %s1161 = vtos %v1160
          %v1162 = vstv %s1161
          %v1164 = vmul.f32 %v1162, %v1097
          %1166 = vrot.lane.b32.xlu0 %v1164, 122
          %v1167 = vpop.permute.xlu0 %1166
          %v1169 = vadd.f32 %v1158, %v1167
          %1170 = vrot.lane.b32.xlu0 %v1094, 121
          %v1171 = vpop.permute.xlu0 %1170
          %s1172 = vtos %v1171
          %v1173 = vstv %s1172
          %v1175 = vmul.f32 %v1173, %v1097
          %1177 = vrot.lane.b32.xlu0 %v1175, 121
          %v1178 = vpop.permute.xlu0 %1177
          %v1180 = vadd.f32 %v1169, %v1178
          %1181 = vrot.lane.b32.xlu0 %v1094, 120
          %v1182 = vpop.permute.xlu0 %1181
          %s1183 = vtos %v1182
          %v1184 = vstv %s1183
          %v1186 = vmul.f32 %v1184, %v1097
          %1188 = vrot.lane.b32.xlu0 %v1186, 120
          %v1189 = vpop.permute.xlu0 %1188
          %v1191 = vadd.f32 %v1180, %v1189
          %1192 = vrot.lane.b32.xlu0 %v1094, 119
          %v1193 = vpop.permute.xlu0 %1192
          %s1194 = vtos %v1193
          %v1195 = vstv %s1194
          %v1197 = vmul.f32 %v1195, %v1097
          %1199 = vrot.lane.b32.xlu0 %v1197, 119
          %v1200 = vpop.permute.xlu0 %1199
          %v1202 = vadd.f32 %v1191, %v1200
          %1203 = vrot.lane.b32.xlu0 %v1094, 118
          %v1204 = vpop.permute.xlu0 %1203
          %s1205 = vtos %v1204
          %v1206 = vstv %s1205
          %v1208 = vmul.f32 %v1206, %v1097
          %1210 = vrot.lane.b32.xlu0 %v1208, 118
          %v1211 = vpop.permute.xlu0 %1210
          %v1213 = vadd.f32 %v1202, %v1211
          %v1214 = vld [vmem:[%s424 + $0x6] sm:$0x1]
          %s1215 = sadd.s32 %s494, 6
          %s1216 = scalar_lea.vmem [#allocation2], %s1215
          %v1217 = vld [vmem:[%s1216] sm:$0xff]
          %s1219 = vtos %v1214
          %v1220 = vstv %s1219
          %v1222 = vmul.f32 %v1220, %v1217
          %v1223 = vadd.f32 %v1213, %v1222
          %1224 = vrot.lane.b32.xlu0 %v1214, 127
          %v1225 = vpop.permute.xlu0 %1224
          %s1226 = vtos %v1225
          %v1227 = vstv %s1226
          %v1229 = vmul.f32 %v1227, %v1217
          %1231 = vrot.lane.b32.xlu0 %v1229, 127
          %v1232 = vpop.permute.xlu0 %1231
          %v1234 = vadd.f32 %v1223, %v1232
          %1235 = vrot.lane.b32.xlu0 %v1214, 126
          %v1236 = vpop.permute.xlu0 %1235
          %s1237 = vtos %v1236
          %v1238 = vstv %s1237
          %v1240 = vmul.f32 %v1238, %v1217
          %1242 = vrot.lane.b32.xlu0 %v1240, 126
          %v1243 = vpop.permute.xlu0 %1242
          %v1245 = vadd.f32 %v1234, %v1243
          %1246 = vrot.lane.b32.xlu0 %v1214, 125
          %v1247 = vpop.permute.xlu0 %1246
          %s1248 = vtos %v1247
          %v1249 = vstv %s1248
          %v1251 = vmul.f32 %v1249, %v1217
          %1253 = vrot.lane.b32.xlu0 %v1251, 125
          %v1254 = vpop.permute.xlu0 %1253
          %v1256 = vadd.f32 %v1245, %v1254
          %1257 = vrot.lane.b32.xlu0 %v1214, 124
          %v1258 = vpop.permute.xlu0 %1257
          %s1259 = vtos %v1258
          %v1260 = vstv %s1259
          %v1262 = vmul.f32 %v1260, %v1217
          %1264 = vrot.lane.b32.xlu0 %v1262, 124
          %v1265 = vpop.permute.xlu0 %1264
          %v1267 = vadd.f32 %v1256, %v1265
          %1268 = vrot.lane.b32.xlu0 %v1214, 123
          %v1269 = vpop.permute.xlu0 %1268
          %s1270 = vtos %v1269
          %v1271 = vstv %s1270
          %v1273 = vmul.f32 %v1271, %v1217
          %1275 = vrot.lane.b32.xlu0 %v1273, 123
          %v1276 = vpop.permute.xlu0 %1275
          %v1278 = vadd.f32 %v1267, %v1276
          %1279 = vrot.lane.b32.xlu0 %v1214, 122
          %v1280 = vpop.permute.xlu0 %1279
          %s1281 = vtos %v1280
          %v1282 = vstv %s1281
          %v1284 = vmul.f32 %v1282, %v1217
          %1286 = vrot.lane.b32.xlu0 %v1284, 122
          %v1287 = vpop.permute.xlu0 %1286
          %v1289 = vadd.f32 %v1278, %v1287
          %1290 = vrot.lane.b32.xlu0 %v1214, 121
          %v1291 = vpop.permute.xlu0 %1290
          %s1292 = vtos %v1291
          %v1293 = vstv %s1292
          %v1295 = vmul.f32 %v1293, %v1217
          %1297 = vrot.lane.b32.xlu0 %v1295, 121
          %v1298 = vpop.permute.xlu0 %1297
          %v1300 = vadd.f32 %v1289, %v1298
          %1301 = vrot.lane.b32.xlu0 %v1214, 120
          %v1302 = vpop.permute.xlu0 %1301
          %s1303 = vtos %v1302
          %v1304 = vstv %s1303
          %v1306 = vmul.f32 %v1304, %v1217
          %1308 = vrot.lane.b32.xlu0 %v1306, 120
          %v1309 = vpop.permute.xlu0 %1308
          %v1311 = vadd.f32 %v1300, %v1309
          %1312 = vrot.lane.b32.xlu0 %v1214, 119
          %v1313 = vpop.permute.xlu0 %1312
          %s1314 = vtos %v1313
          %v1315 = vstv %s1314
          %v1317 = vmul.f32 %v1315, %v1217
          %1319 = vrot.lane.b32.xlu0 %v1317, 119
          %v1320 = vpop.permute.xlu0 %1319
          %v1322 = vadd.f32 %v1311, %v1320
          %1323 = vrot.lane.b32.xlu0 %v1214, 118
          %v1324 = vpop.permute.xlu0 %1323
          %s1325 = vtos %v1324
          %v1326 = vstv %s1325
          %v1328 = vmul.f32 %v1326, %v1217
          %1330 = vrot.lane.b32.xlu0 %v1328, 118
          %v1331 = vpop.permute.xlu0 %1330
          %v1333 = vadd.f32 %v1322, %v1331
          %v1334 = vld [vmem:[%s424 + $0x7] sm:$0x1]
          %s1335 = sadd.s32 %s494, 7
          %s1336 = scalar_lea.vmem [#allocation2], %s1335
          %v1337 = vld [vmem:[%s1336] sm:$0xff]
          %s1339 = vtos %v1334
          %v1340 = vstv %s1339
          %v1342 = vmul.f32 %v1340, %v1337
          %v1343 = vadd.f32 %v1333, %v1342
          %1344 = vrot.lane.b32.xlu0 %v1334, 127
          %v1345 = vpop.permute.xlu0 %1344
          %s1346 = vtos %v1345
          %v1347 = vstv %s1346
          %v1349 = vmul.f32 %v1347, %v1337
          %1351 = vrot.lane.b32.xlu0 %v1349, 127
          %v1352 = vpop.permute.xlu0 %1351
          %v1354 = vadd.f32 %v1343, %v1352
          %1355 = vrot.lane.b32.xlu0 %v1334, 126
          %v1356 = vpop.permute.xlu0 %1355
          %s1357 = vtos %v1356
          %v1358 = vstv %s1357
          %v1360 = vmul.f32 %v1358, %v1337
          %1362 = vrot.lane.b32.xlu0 %v1360, 126
          %v1363 = vpop.permute.xlu0 %1362
          %v1365 = vadd.f32 %v1354, %v1363
          %1366 = vrot.lane.b32.xlu0 %v1334, 125
          %v1367 = vpop.permute.xlu0 %1366
          %s1368 = vtos %v1367
          %v1369 = vstv %s1368
          %v1371 = vmul.f32 %v1369, %v1337
          %1373 = vrot.lane.b32.xlu0 %v1371, 125
          %v1374 = vpop.permute.xlu0 %1373
          %v1376 = vadd.f32 %v1365, %v1374
          %1377 = vrot.lane.b32.xlu0 %v1334, 124
          %v1378 = vpop.permute.xlu0 %1377
          %s1379 = vtos %v1378
          %v1380 = vstv %s1379
          %v1382 = vmul.f32 %v1380, %v1337
          %1384 = vrot.lane.b32.xlu0 %v1382, 124
          %v1385 = vpop.permute.xlu0 %1384
          %v1387 = vadd.f32 %v1376, %v1385
          %1388 = vrot.lane.b32.xlu0 %v1334, 123
          %v1389 = vpop.permute.xlu0 %1388
          %s1390 = vtos %v1389
          %v1391 = vstv %s1390
          %v1393 = vmul.f32 %v1391, %v1337
          %1395 = vrot.lane.b32.xlu0 %v1393, 123
          %v1396 = vpop.permute.xlu0 %1395
          %v1398 = vadd.f32 %v1387, %v1396
          %1399 = vrot.lane.b32.xlu0 %v1334, 122
          %v1400 = vpop.permute.xlu0 %1399
          %s1401 = vtos %v1400
          %v1402 = vstv %s1401
          %v1404 = vmul.f32 %v1402, %v1337
          %1406 = vrot.lane.b32.xlu0 %v1404, 122
          %v1407 = vpop.permute.xlu0 %1406
          %v1409 = vadd.f32 %v1398, %v1407
          %1410 = vrot.lane.b32.xlu0 %v1334, 121
          %v1411 = vpop.permute.xlu0 %1410
          %s1412 = vtos %v1411
          %v1413 = vstv %s1412
          %v1415 = vmul.f32 %v1413, %v1337
          %1417 = vrot.lane.b32.xlu0 %v1415, 121
          %v1418 = vpop.permute.xlu0 %1417
          %v1420 = vadd.f32 %v1409, %v1418
          %1421 = vrot.lane.b32.xlu0 %v1334, 120
          %v1422 = vpop.permute.xlu0 %1421
          %s1423 = vtos %v1422
          %v1424 = vstv %s1423
          %v1426 = vmul.f32 %v1424, %v1337
          %1428 = vrot.lane.b32.xlu0 %v1426, 120
          %v1429 = vpop.permute.xlu0 %1428
          %v1431 = vadd.f32 %v1420, %v1429
          %1432 = vrot.lane.b32.xlu0 %v1334, 119
          %v1433 = vpop.permute.xlu0 %1432
          %s1434 = vtos %v1433
          %v1435 = vstv %s1434
          %v1437 = vmul.f32 %v1435, %v1337
          %1439 = vrot.lane.b32.xlu0 %v1437, 119
          %v1440 = vpop.permute.xlu0 %1439
          %v1442 = vadd.f32 %v1431, %v1440
          %1443 = vrot.lane.b32.xlu0 %v1334, 118
          %v1444 = vpop.permute.xlu0 %1443
          %s1445 = vtos %v1444
          %v1446 = vstv %s1445
          %v1448 = vmul.f32 %v1446, %v1337
          %1450 = vrot.lane.b32.xlu0 %v1448, 118
          %v1451 = vpop.permute.xlu0 %1450
          %v1453 = vadd.f32 %v1442, %v1451
          %v1454 = vld [vmem:[%s424 + $0x8] sm:$0x1]
          %s1455 = sadd.s32 %s494, 8
          %s1456 = scalar_lea.vmem [#allocation2], %s1455
          %v1457 = vld [vmem:[%s1456] sm:$0xff]
          %s1459 = vtos %v1454
          %v1460 = vstv %s1459
          %v1462 = vmul.f32 %v1460, %v1457
          %v1463 = vadd.f32 %v1453, %v1462
          %1464 = vrot.lane.b32.xlu0 %v1454, 127
          %v1465 = vpop.permute.xlu0 %1464
          %s1466 = vtos %v1465
          %v1467 = vstv %s1466
          %v1469 = vmul.f32 %v1467, %v1457
          %1471 = vrot.lane.b32.xlu0 %v1469, 127
          %v1472 = vpop.permute.xlu0 %1471
          %v1474 = vadd.f32 %v1463, %v1472
          %1475 = vrot.lane.b32.xlu0 %v1454, 126
          %v1476 = vpop.permute.xlu0 %1475
          %s1477 = vtos %v1476
          %v1478 = vstv %s1477
          %v1480 = vmul.f32 %v1478, %v1457
          %1482 = vrot.lane.b32.xlu0 %v1480, 126
          %v1483 = vpop.permute.xlu0 %1482
          %v1485 = vadd.f32 %v1474, %v1483
          %1486 = vrot.lane.b32.xlu0 %v1454, 125
          %v1487 = vpop.permute.xlu0 %1486
          %s1488 = vtos %v1487
          %v1489 = vstv %s1488
          %v1491 = vmul.f32 %v1489, %v1457
          %1493 = vrot.lane.b32.xlu0 %v1491, 125
          %v1494 = vpop.permute.xlu0 %1493
          %v1496 = vadd.f32 %v1485, %v1494
          %1497 = vrot.lane.b32.xlu0 %v1454, 124
          %v1498 = vpop.permute.xlu0 %1497
          %s1499 = vtos %v1498
          %v1500 = vstv %s1499
          %v1502 = vmul.f32 %v1500, %v1457
          %1504 = vrot.lane.b32.xlu0 %v1502, 124
          %v1505 = vpop.permute.xlu0 %1504
          %v1507 = vadd.f32 %v1496, %v1505
          %1508 = vrot.lane.b32.xlu0 %v1454, 123
          %v1509 = vpop.permute.xlu0 %1508
          %s1510 = vtos %v1509
          %v1511 = vstv %s1510
          %v1513 = vmul.f32 %v1511, %v1457
          %1515 = vrot.lane.b32.xlu0 %v1513, 123
          %v1516 = vpop.permute.xlu0 %1515
          %v1518 = vadd.f32 %v1507, %v1516
          %1519 = vrot.lane.b32.xlu0 %v1454, 122
          %v1520 = vpop.permute.xlu0 %1519
          %s1521 = vtos %v1520
          %v1522 = vstv %s1521
          %v1524 = vmul.f32 %v1522, %v1457
          %1526 = vrot.lane.b32.xlu0 %v1524, 122
          %v1527 = vpop.permute.xlu0 %1526
          %v1529 = vadd.f32 %v1518, %v1527
          %1530 = vrot.lane.b32.xlu0 %v1454, 121
          %v1531 = vpop.permute.xlu0 %1530
          %s1532 = vtos %v1531
          %v1533 = vstv %s1532
          %v1535 = vmul.f32 %v1533, %v1457
          %1537 = vrot.lane.b32.xlu0 %v1535, 121
          %v1538 = vpop.permute.xlu0 %1537
          %v1540 = vadd.f32 %v1529, %v1538
          %1541 = vrot.lane.b32.xlu0 %v1454, 120
          %v1542 = vpop.permute.xlu0 %1541
          %s1543 = vtos %v1542
          %v1544 = vstv %s1543
          %v1546 = vmul.f32 %v1544, %v1457
          %1548 = vrot.lane.b32.xlu0 %v1546, 120
          %v1549 = vpop.permute.xlu0 %1548
          %v1551 = vadd.f32 %v1540, %v1549
          %1552 = vrot.lane.b32.xlu0 %v1454, 119
          %v1553 = vpop.permute.xlu0 %1552
          %s1554 = vtos %v1553
          %v1555 = vstv %s1554
          %v1557 = vmul.f32 %v1555, %v1457
          %1559 = vrot.lane.b32.xlu0 %v1557, 119
          %v1560 = vpop.permute.xlu0 %1559
          %v1562 = vadd.f32 %v1551, %v1560
          %1563 = vrot.lane.b32.xlu0 %v1454, 118
          %v1564 = vpop.permute.xlu0 %1563
          %s1565 = vtos %v1564
          %v1566 = vstv %s1565
          %v1568 = vmul.f32 %v1566, %v1457
          %1570 = vrot.lane.b32.xlu0 %v1568, 118
          %v1571 = vpop.permute.xlu0 %1570
          %v1573 = vadd.f32 %v1562, %v1571
          %v1574 = vld [vmem:[%s424 + $0x9] sm:$0x1]
          %s1575 = sadd.s32 %s494, 9
          %s1576 = scalar_lea.vmem [#allocation2], %s1575
          %v1577 = vld [vmem:[%s1576] sm:$0xff]
          %s1579 = vtos %v1574
          %v1580 = vstv %s1579
          %v1582 = vmul.f32 %v1580, %v1577
          %v1583 = vadd.f32 %v1573, %v1582
          %1584 = vrot.lane.b32.xlu0 %v1574, 127
          %v1585 = vpop.permute.xlu0 %1584
          %s1586 = vtos %v1585
          %v1587 = vstv %s1586
          %v1589 = vmul.f32 %v1587, %v1577
          %1591 = vrot.lane.b32.xlu0 %v1589, 127
          %v1592 = vpop.permute.xlu0 %1591
          %v1594 = vadd.f32 %v1583, %v1592
          %1595 = vrot.lane.b32.xlu0 %v1574, 126
          %v1596 = vpop.permute.xlu0 %1595
          %s1597 = vtos %v1596
          %v1598 = vstv %s1597
          %v1600 = vmul.f32 %v1598, %v1577
          %1602 = vrot.lane.b32.xlu0 %v1600, 126
          %v1603 = vpop.permute.xlu0 %1602
          %v1605 = vadd.f32 %v1594, %v1603
          %1606 = vrot.lane.b32.xlu0 %v1574, 125
          %v1607 = vpop.permute.xlu0 %1606
          %s1608 = vtos %v1607
          %v1609 = vstv %s1608
          %v1611 = vmul.f32 %v1609, %v1577
          %1613 = vrot.lane.b32.xlu0 %v1611, 125
          %v1614 = vpop.permute.xlu0 %1613
          %v1616 = vadd.f32 %v1605, %v1614
          %1617 = vrot.lane.b32.xlu0 %v1574, 124
          %v1618 = vpop.permute.xlu0 %1617
          %s1619 = vtos %v1618
          %v1620 = vstv %s1619
          %v1622 = vmul.f32 %v1620, %v1577
          %1624 = vrot.lane.b32.xlu0 %v1622, 124
          %v1625 = vpop.permute.xlu0 %1624
          %v1627 = vadd.f32 %v1616, %v1625
          %1628 = vrot.lane.b32.xlu0 %v1574, 123
          %v1629 = vpop.permute.xlu0 %1628
          %s1630 = vtos %v1629
          %v1631 = vstv %s1630
          %v1633 = vmul.f32 %v1631, %v1577
          %1635 = vrot.lane.b32.xlu0 %v1633, 123
          %v1636 = vpop.permute.xlu0 %1635
          %v1638 = vadd.f32 %v1627, %v1636
          %1639 = vrot.lane.b32.xlu0 %v1574, 122
          %v1640 = vpop.permute.xlu0 %1639
          %s1641 = vtos %v1640
          %v1642 = vstv %s1641
          %v1644 = vmul.f32 %v1642, %v1577
          %1646 = vrot.lane.b32.xlu0 %v1644, 122
          %v1647 = vpop.permute.xlu0 %1646
          %v1649 = vadd.f32 %v1638, %v1647
          %1650 = vrot.lane.b32.xlu0 %v1574, 121
          %v1651 = vpop.permute.xlu0 %1650
          %s1652 = vtos %v1651
          %v1653 = vstv %s1652
          %v1655 = vmul.f32 %v1653, %v1577
          %1657 = vrot.lane.b32.xlu0 %v1655, 121
          %v1658 = vpop.permute.xlu0 %1657
          %v1660 = vadd.f32 %v1649, %v1658
          %1661 = vrot.lane.b32.xlu0 %v1574, 120
          %v1662 = vpop.permute.xlu0 %1661
          %s1663 = vtos %v1662
          %v1664 = vstv %s1663
          %v1666 = vmul.f32 %v1664, %v1577
          %1668 = vrot.lane.b32.xlu0 %v1666, 120
          %v1669 = vpop.permute.xlu0 %1668
          %v1671 = vadd.f32 %v1660, %v1669
          %1672 = vrot.lane.b32.xlu0 %v1574, 119
          %v1673 = vpop.permute.xlu0 %1672
          %s1674 = vtos %v1673
          %v1675 = vstv %s1674
          %v1677 = vmul.f32 %v1675, %v1577
          %1679 = vrot.lane.b32.xlu0 %v1677, 119
          %v1680 = vpop.permute.xlu0 %1679
          %v1682 = vadd.f32 %v1671, %v1680
          %1683 = vrot.lane.b32.xlu0 %v1574, 118
          %v1684 = vpop.permute.xlu0 %1683
          %s1685 = vtos %v1684
          %v1686 = vstv %s1685
          %v1688 = vmul.f32 %v1686, %v1577
          %1690 = vrot.lane.b32.xlu0 %v1688, 118
          %v1691 = vpop.permute.xlu0 %1690
          %v1693 = vadd.f32 %v1682, %v1691
          %v1694 = vld [vmem:[%s424 + $0xa] sm:$0x1]
          %s1695 = sadd.s32 %s494, 10
          %s1696 = scalar_lea.vmem [#allocation2], %s1695
          %v1697 = vld [vmem:[%s1696] sm:$0xff]
          %s1699 = vtos %v1694
          %v1700 = vstv %s1699
          %v1702 = vmul.f32 %v1700, %v1697
          %v1703 = vadd.f32 %v1693, %v1702
          %1704 = vrot.lane.b32.xlu0 %v1694, 127
          %v1705 = vpop.permute.xlu0 %1704
          %s1706 = vtos %v1705
          %v1707 = vstv %s1706
          %v1709 = vmul.f32 %v1707, %v1697
          %1711 = vrot.lane.b32.xlu0 %v1709, 127
          %v1712 = vpop.permute.xlu0 %1711
          %v1714 = vadd.f32 %v1703, %v1712
          %1715 = vrot.lane.b32.xlu0 %v1694, 126
          %v1716 = vpop.permute.xlu0 %1715
          %s1717 = vtos %v1716
          %v1718 = vstv %s1717
          %v1720 = vmul.f32 %v1718, %v1697
          %1722 = vrot.lane.b32.xlu0 %v1720, 126
          %v1723 = vpop.permute.xlu0 %1722
          %v1725 = vadd.f32 %v1714, %v1723
          %1726 = vrot.lane.b32.xlu0 %v1694, 125
          %v1727 = vpop.permute.xlu0 %1726
          %s1728 = vtos %v1727
          %v1729 = vstv %s1728
          %v1731 = vmul.f32 %v1729, %v1697
          %1733 = vrot.lane.b32.xlu0 %v1731, 125
          %v1734 = vpop.permute.xlu0 %1733
          %v1736 = vadd.f32 %v1725, %v1734
          %1737 = vrot.lane.b32.xlu0 %v1694, 124
          %v1738 = vpop.permute.xlu0 %1737
          %s1739 = vtos %v1738
          %v1740 = vstv %s1739
          %v1742 = vmul.f32 %v1740, %v1697
          %1744 = vrot.lane.b32.xlu0 %v1742, 124
          %v1745 = vpop.permute.xlu0 %1744
          %v1747 = vadd.f32 %v1736, %v1745
          %1748 = vrot.lane.b32.xlu0 %v1694, 123
          %v1749 = vpop.permute.xlu0 %1748
          %s1750 = vtos %v1749
          %v1751 = vstv %s1750
          %v1753 = vmul.f32 %v1751, %v1697
          %1755 = vrot.lane.b32.xlu0 %v1753, 123
          %v1756 = vpop.permute.xlu0 %1755
          %v1758 = vadd.f32 %v1747, %v1756
          %1759 = vrot.lane.b32.xlu0 %v1694, 122
          %v1760 = vpop.permute.xlu0 %1759
          %s1761 = vtos %v1760
          %v1762 = vstv %s1761
          %v1764 = vmul.f32 %v1762, %v1697
          %1766 = vrot.lane.b32.xlu0 %v1764, 122
          %v1767 = vpop.permute.xlu0 %1766
          %v1769 = vadd.f32 %v1758, %v1767
          %1770 = vrot.lane.b32.xlu0 %v1694, 121
          %v1771 = vpop.permute.xlu0 %1770
          %s1772 = vtos %v1771
          %v1773 = vstv %s1772
          %v1775 = vmul.f32 %v1773, %v1697
          %1777 = vrot.lane.b32.xlu0 %v1775, 121
          %v1778 = vpop.permute.xlu0 %1777
          %v1780 = vadd.f32 %v1769, %v1778
          %1781 = vrot.lane.b32.xlu0 %v1694, 120
          %v1782 = vpop.permute.xlu0 %1781
          %s1783 = vtos %v1782
          %v1784 = vstv %s1783
          %v1786 = vmul.f32 %v1784, %v1697
          %1788 = vrot.lane.b32.xlu0 %v1786, 120
          %v1789 = vpop.permute.xlu0 %1788
          %v1791 = vadd.f32 %v1780, %v1789
          %1792 = vrot.lane.b32.xlu0 %v1694, 119
          %v1793 = vpop.permute.xlu0 %1792
          %s1794 = vtos %v1793
          %v1795 = vstv %s1794
          %v1797 = vmul.f32 %v1795, %v1697
          %1799 = vrot.lane.b32.xlu0 %v1797, 119
          %v1800 = vpop.permute.xlu0 %1799
          %v1802 = vadd.f32 %v1791, %v1800
          %1803 = vrot.lane.b32.xlu0 %v1694, 118
          %v1804 = vpop.permute.xlu0 %1803
          %s1805 = vtos %v1804
          %v1806 = vstv %s1805
          %v1808 = vmul.f32 %v1806, %v1697
          %1810 = vrot.lane.b32.xlu0 %v1808, 118
          %v1811 = vpop.permute.xlu0 %1810
          %v1813 = vadd.f32 %v1802, %v1811
          %s1814 = scalar_lea.vmem %s348, %s494 [#allocation3]
          %v1815 = vld [vmem:[%s1814] sm:$0xff]
          %v1817 = vlaneseq
          %v1818 = vshrl.u32 %v1817, 7
          %v1819 = vsub.s32 0, %v1818
          %v1820 = vrot.slane %v487, %v1819
          %1821 = vset.pattern.permute.xlu0 0
          %1822 = vperm.xlu0 %1821, %v1820
          %v1823 = vpop.permute.xlu0 %1822
          %v1825 = vadd.f32 %v1813, %v1823
          %v1826 = vsub.f32 0.0, %v1825
          %v1827 = vmul.f32 %v1826, 1.442695
          %v1828 = vpow.pop %v1827
          %v1829 = vadd.f32 %v1828, 1.0
          %v1830 = vrcp.pop %v1829
          %v1831 = vmul.f32 1.0, %v1830
          %v1832 = vmul.f32 %v1831, %v1815
          %s1833 = scalar_lea.vmem %s410, %s494 [#allocation9]
          %vm1834 = vcmask 130048
          %1835 = vst.msk [vmem:[%s1833] sm:$0xff] %vm1834, %v1832
        $region73: #{pixel_attention.1} parent=39 // loop_footer
          %s493 = sadd.s32 1, %s489
        $region74: #{pixel_attention.1} parent=39 // loop_footer_branch
          %488 = sbr.rel target = $region70
        $region75: #{pixel_attention.1} parent=39 // loop_exit
          _
        %s1836 = sand.u32 %s214, 1
        %s1837 = scalar_lea.sflag [#allocation5], %s1836
        %s1838 = sand.u32 %s214, 1
        %s1839 = smul.addr %s1838, 16
        %s1840 = scalar_lea.vmem [#allocation9], %s1839
        // Predicated region
        $region76: #{pixel_attention.1} parent=39 // pred_check
          %p1841 = pneg %p224
        $region77: #{pixel_attention.1} parent=39 // pred_check_branch
          %1843 = sbr.rel (%p1841) target = $region79
        $region78: #{pixel_attention.1} parent=39 // pred_region
          %s1844 = smul.u32 2, %s32
          %s1846 = ssub.s32 256, 256
          %1847 = vsyncadd %s1837, %s1846
          %s1848 = smul.addr %s31, 2
          %s1849 = sadd.s32 %s1844, %s1848
          %s1850 = smul.addr %s30, 8
          %s1851 = sadd.s32 %s1849, %s1850
          %s1852 = smul.addr %s1851, 128
          %s1853 = scalar_lea.hbm %s5, %s1852
          %s1854 = sshll.u32 %s1840, 4
          %s1855 = int_to_ptr.vmem [resolvable:$true] %s1854
          %1860 = dma.vmem_to_hbm [thread:$0]  %s1855, 256, %s1853, %s1837, 128, 128, 8
        $region79: #{pixel_attention.1} parent=39 // pred_fallthru
          _
      $region40: #{pixel_attention.1} parent=5 // pred_fallthru
        _
      %p1861 = scmp.le.s32.totalorder 2, %s20
      // Predicated region
      $region80: #{pixel_attention.1} parent=5 // pred_check
        %p1862 = pneg %p1861
      $region81: #{pixel_attention.1} parent=5 // pred_check_branch
        %1864 = sbr.rel (%p1862) target = $region83
      $region82: #{pixel_attention.1} parent=5 // pred_region
        %s1865 = ssub.s32 %s20, 2
        // Predicated region
        $region84: #{pixel_attention.1} parent=82 // pred_check
          %p1866 = pneg %p230
        $region85: #{pixel_attention.1} parent=82 // pred_check_branch
          %1868 = sbr.rel (%p1866) target = $region87
        $region86: #{pixel_attention.1} parent=82 // pred_region
          %s1869 = sand.u32 %s215, 1
          %s1870 = scalar_lea.sflag [#allocation5], %s1869
          %s1871 = sand.u32 %s215, 1
          %s1872 = smul.addr %s1871, 16
          %s1873 = scalar_lea.vmem [#allocation9], %s1872
          %1874 = dma.done %s1870, 256
        $region87: #{pixel_attention.1} parent=82 // pred_fallthru
          _
      $region83: #{pixel_attention.1} parent=5 // pred_fallthru
        _
    $region6: #{pixel_attention.1} parent=1 // loop_footer
      %s24 = sadd.s32 1, %s20
    $region7: #{pixel_attention.1} parent=1 // loop_footer_branch
      %19 = sbr.rel target = $region3
    $region8: #{pixel_attention.1} parent=1 // loop_exit
      _
    %1875 = vsyncpa [#allocation4], 1
    %s1876 = scalar_lea.sflag [#allocation4], 1
    %1877 = vsyncpa %s1876, 1
    %1878 = vsyncpa [#allocation7], 1
    %s1879 = scalar_lea.sflag [#allocation7], 1
    %1880 = vsyncpa %s1879, 1
    %1881 = vsyncpa [#allocation5], 1
    %s1882 = scalar_lea.sflag [#allocation5], 1
    %1883 = vsyncpa %s1882, 1

</llo_original>
